<compile_context>
chip_gen: v7x
topology: tpu7x:2x2x1
jax: 0.10.0
libtpu: 0.0.40
codegen_flags: <defaults>
</compile_context>

<pallas_src>
import math
import functools

import jax
import jax.numpy as jnp
from jax import lax
from jax.experimental import pallas as pl
from jax.experimental.pallas import tpu as pltpu


# ----------------------------- shared math helpers ----------------------------

def _layernorm(x, gamma, beta, eps=1e-5):
    mu = jnp.mean(x, axis=-1, keepdims=True)
    var = jnp.mean((x - mu) ** 2, axis=-1, keepdims=True)
    return (x - mu) * lax.rsqrt(var + eps) * gamma + beta


def _gelu_exact(x):
    # torch.nn.functional.gelu default = exact erf-based gelu
    return 0.5 * x * (1.0 + lax.erf(x * (1.0 / math.sqrt(2.0))))


LAYER_WEIGHT_NAMES = ("wq", "bq", "wk", "bk", "wv", "bv", "wo", "bo",
                      "w1", "b1", "w2", "b2", "g1", "be1", "g2", "be2")


# ------------------------------- Pallas kernel ---------------------------------

def transformer_kernel(x_ref, pos_ref,
                       wq_ref, bq_ref, wk_ref, bk_ref, wv_ref, bv_ref,
                       wo_ref, bo_ref, w1_ref, b1_ref, w2_ref, b2_ref,
                       g1_ref, be1_ref, g2_ref, be2_ref,
                       gf_ref, bf_ref, embt_ref,
                       out_ref, h_ref, *, heads):
    bt, S, D = x_ref.shape
    hd = D // heads
    scale = 1.0 / math.sqrt(hd)
    mdt = wq_ref.dtype                       # bf16 MXU operand dtype
    layer = pl.program_id(1)

    # Initialize the residual stream from the token embeddings on the first
    # layer step of this batch block.
    @pl.when(layer == 0)
    def _init():
        h_ref[...] = x_ref[...].reshape(bt * S, D)

    h = h_ref[...]                           # (bt*S, D) f32 residual stream

    def mm(a, w_ref, b_ref=None):
        out = jnp.dot(a.astype(w_ref.dtype), w_ref[...],
                      preferred_element_type=jnp.float32)
        return out if b_ref is None else out + b_ref[...]

    # ----------------------- self-attention (q = k = x + pos, v = x) ----------
    qk_in = (h.reshape(bt, S, D) + pos_ref[...][None]).reshape(bt * S, D)
    q = mm(qk_in, wq_ref, bq_ref)            # full-width lane-dense (M,D)@(D,D)
    k = mm(qk_in, wk_ref, bk_ref)
    v = mm(h, wv_ref, bv_ref)

    def split_heads(x2d):                    # (bt*S, D) -> (heads*bt, S, hd)
        return jnp.stack([x2d[:, i * hd:(i + 1) * hd] for i in range(heads)],
                         axis=0).reshape(heads * bt, S, hd)

    qh, kh, vh = split_heads(q), split_heads(k), split_heads(v)

    s = jnp.einsum('nqe,nke->nqk', qh.astype(mdt), kh.astype(mdt),
                   preferred_element_type=jnp.float32) * scale
    # Causal mask built in-kernel from iota (no (S,S) HBM input); finite large
    # negative instead of -inf so fully-masked reuse can never NaN.
    rows = lax.broadcasted_iota(jnp.int32, (S, S), 0)
    cols = lax.broadcasted_iota(jnp.int32, (S, S), 1)
    s = jnp.where((cols <= rows)[None], s, -1e30)

    m = jnp.max(s, axis=-1, keepdims=True)
    p = jnp.exp(s - m)
    p = p * pl.reciprocal(jnp.sum(p, axis=-1, keepdims=True), approx=True)

    ao = jnp.einsum('nqk,nke->nqe', p.astype(mdt), vh.astype(mdt),
                    preferred_element_type=jnp.float32)      # (heads*bt, S, hd)
    ao = ao.reshape(heads, bt * S, hd)
    ao = jnp.concatenate([ao[i] for i in range(heads)], axis=-1)   # (bt*S, D)

    attn = mm(ao, wo_ref, bo_ref)            # single (M,D)@(D,D) out-projection

    h1 = _layernorm(h + attn, g1_ref[...], be1_ref[...])

    # ------------------------------- feed-forward -----------------------------
    ff = _gelu_exact(mm(h1, w1_ref, b1_ref))
    ff = mm(ff, w2_ref, b2_ref)
    h2 = _layernorm(h1 + ff, g2_ref[...], be2_ref[...])
    h_ref[...] = h2

    # ---------------- final norm + tied logits on the last layer step ---------
    @pl.when(layer == pl.num_programs(1) - 1)
    def _finalize():
        hf = _layernorm(h2, gf_ref[...], bf_ref[...])
        logits = jnp.dot(hf.astype(embt_ref.dtype), embt_ref[...],
                         preferred_element_type=jnp.float32)  # (bt*S, Vp) lane-dense
        out_ref[...] = logits.reshape(bt, S, out_ref.shape[-1])


# --------------------------------- wrapper --------------------------------------

def transformer_forward(tokens, embed, packed, final_gamma, final_beta,
                        *, heads, n_layers, batch_block=None):
    B, S = tokens.shape
    V, D = embed.shape
    F = packed["w1"].shape[-1]

    # Embedding gather stays as XLA glue outside the kernel.
    h0 = jnp.take(embed, tokens, axis=0).astype(jnp.float32)        # (B, S, D)
    pos = fixed_positional_embedding(S, D)                          # (S, D)

    # Pad the tied-embedding logits weight to a multiple of 128 lanes.
    Vp = ((V + 127) // 128) * 128
    embt = jnp.zeros((D, Vp), jnp.bfloat16).at[:, :V].set(
        embed.T.astype(jnp.bfloat16))

    # Fold batch elements into the MXU M dimension (target >=128 rows per step).
    if batch_block is None:
        batch_block = min(B, max(1, 128 // S))
    while B % batch_block:
        batch_block -= 1
    bt = batch_block

    layer_ws = [packed[n] for n in LAYER_WEIGHT_NAMES]
    const_ws = [final_gamma[None, :].astype(jnp.float32),
                final_beta[None, :].astype(jnp.float32),
                embt]

    def layer_spec(w):
        nd = w.ndim
        return pl.BlockSpec((None,) + w.shape[1:],
                            lambda b, l: (l,) + (0,) * (nd - 1))

    def const_spec(w):
        nd = w.ndim
        return pl.BlockSpec(w.shape, lambda b, l: (0,) * nd)

    in_specs = ([pl.BlockSpec((bt, S, D), lambda b, l: (b, 0, 0)),
                 const_spec(pos)]
                + [layer_spec(w) for w in layer_ws]
                + [const_spec(w) for w in const_ws])

    flops = int(2 * B * n_layers * (4 * S * D * D + 2 * S * S * D + 2 * S * D * F)
                + 2 * B * S * D * Vp)
    transcendentals = int(B * n_layers * (heads * S * S + S * F))
    bytes_accessed = int(
        h0.size * 4 + B * S * Vp * 4 + pos.size * 4
        + (B // bt) * sum(int(w.size) * w.dtype.itemsize for w in layer_ws)
        + sum(int(w.size) * w.dtype.itemsize for w in const_ws))

    out = pl.pallas_call(
        functools.partial(transformer_kernel, heads=heads),
        out_shape=jax.ShapeDtypeStruct((B, S, Vp), jnp.float32),
        grid=(B // bt, n_layers),
        in_specs=in_specs,
        out_specs=pl.BlockSpec((bt, S, Vp), lambda b, l: (b, 0, 0)),
        scratch_shapes=[pltpu.VMEM((bt * S, D), jnp.float32)],
        compiler_params=pltpu.CompilerParams(
            dimension_semantics=("parallel", "arbitrary"),
            vmem_limit_bytes=32 * 1024 * 1024),
        cost_estimate=pl.CostEstimate(flops=flops,
                                      transcendentals=transcendentals,
                                      bytes_accessed=bytes_accessed),
    )(h0, pos, *layer_ws, *const_ws)

    return out[:, :, :V]


# --------------------------- pure-JAX reference (mirror) -------------------------

def reference_forward(tokens, embed, packed, final_gamma, final_beta,
                      *, heads, n_layers):
    B, S = tokens.shape
    V, D = embed.shape
    hd = D // heads
    scale = 1.0 / math.sqrt(hd)
    mdt = packed["wq"].dtype

    h = jnp.take(embed, tokens, axis=0).astype(jnp.float32)
    pos = fixed_positional_embedding(S, D)
    causal = jnp.arange(S)[None, :] <= jnp.arange(S)[:, None]

    def mm(a, w, b=None):
        o = jnp.dot(a.astype(w.dtype), w, preferred_element_type=jnp.float32)
        return o if b is None else o + b

    for li in range(n_layers):
        qk_in = h + pos[None]
        q = mm(qk_in, packed["wq"][li], packed["bq"][li])
        k = mm(qk_in, packed["wk"][li], packed["bk"][li])
        v = mm(h, packed["wv"][li], packed["bv"][li])

        q4 = q.reshape(B, S, heads, hd)
        k4 = k.reshape(B, S, heads, hd)
        v4 = v.reshape(B, S, heads, hd)
        s = jnp.einsum('bqhe,bkhe->bhqk', q4.astype(mdt), k4.astype(mdt),
                       preferred_element_type=jnp.float32) * scale
        s = jnp.where(causal[None, None], s, -1e30)
        p = jax.nn.softmax(s, axis=-1)
        ao = jnp.einsum('bhqk,bkhe->bqhe', p.astype(mdt), v4.astype(mdt),
                        preferred_element_type=jnp.float32).reshape(B, S, D)

        attn = mm(ao, packed["wo"][li], packed["bo"][li])
        h1 = _layernorm(h + attn, packed["g1"][li], packed["be1"][li])
        ff = _gelu_exact(mm(h1, packed["w1"][li], packed["b1"][li]))
        ff = mm(ff, packed["w2"][li], packed["b2"][li])
        h = _layernorm(h1 + ff, packed["g2"][li], packed["be2"][li])

    hf = _layernorm(h, final_gamma[None, :], final_beta[None, :])
    return mm(hf, embed.T.astype(mdt))


# ------------------------------ params & packing --------------------------------

def make_layer_params(key, D, F):
    ks = jax.random.split(key, 6)
    s = 0.02
    return dict(
        wq=s * jax.random.normal(ks[0], (D, D), jnp.float32),
        wk=s * jax.random.normal(ks[1], (D, D), jnp.float32),
        wv=s * jax.random.normal(ks[2], (D, D), jnp.float32),
        bq=jnp.zeros((D,), jnp.float32),
        bk=jnp.zeros((D,), jnp.float32),
        bv=jnp.zeros((D,), jnp.float32),
        wo=s * jax.random.normal(ks[3], (D, D), jnp.float32),
        bo=jnp.zeros((D,), jnp.float32),
        w1=s * jax.random.normal(ks[4], (D, F), jnp.float32),
        b1=jnp.zeros((F,), jnp.float32),
        w2=s * jax.random.normal(ks[5], (F, D), jnp.float32),
        b2=jnp.zeros((D,), jnp.float32),
        g1=jnp.ones((D,), jnp.float32), be1=jnp.zeros((D,), jnp.float32),
        g2=jnp.ones((D,), jnp.float32), be2=jnp.zeros((D,), jnp.float32),
    )


def pack_params(layers, mm_dtype=jnp.bfloat16):
    """Stack per-layer params on a leading L axis; matmul weights in bf16."""
    stk = lambda xs: jnp.stack(xs, axis=0)
    wmat = lambda n: stk([p[n] for p in layers]).astype(mm_dtype)     # (L, ., .)
    vecs = lambda n: stk([p[n][None, :] for p in layers]).astype(jnp.float32)
    out = {}
    for n in ("wq", "wk", "wv", "wo", "w1", "w2"):
        out[n] = wmat(n)
    for n in ("bq", "bk", "bv", "bo", "b1", "b2", "g1", "be1", "g2", "be2"):
        out[n] = vecs(n)                                              # (L, 1, .)
    return out


def fixed_positional_embedding(seq_len, dim):
    inv_freq = 1.0 / (10000.0 ** (jnp.arange(0, dim, 2, dtype=jnp.float32) / dim))
    position = jnp.arange(0, seq_len, dtype=jnp.float32)
    sinusoid = jnp.einsum("i,j->ij", position, inv_freq)
    return jnp.concatenate([jnp.sin(sinusoid), jnp.cos(sinusoid)], axis=-1)  # (S, D)


# ------------------------------------- main --------------------------------------

if __name__ == "__main__":
    VOCAB, D, N_LAYERS, HEADS, F = 64, 32, 2, 4, 64
    B, S = 2, 8

    key = jax.random.PRNGKey(0)
    keys = jax.random.split(key, 2 + N_LAYERS)
    k_tok, k_emb, k_layers = keys[0], keys[1], keys[2:]

    tokens = jax.random.randint(k_tok, (B, S), 0, VOCAB, dtype=jnp.int32)
    embed = 0.02 * jax.random.normal(k_emb, (VOCAB, D), jnp.float32)
    layers = [make_layer_params(k, D, F) for k in k_layers]
    packed = pack_params(layers)
    final_gamma = jnp.ones((D,), jnp.float32)
    final_beta = jnp.zeros((D,), jnp.float32)

    logits = transformer_forward(tokens, embed, packed, final_gamma, final_beta,
                                 heads=HEADS, n_layers=N_LAYERS)
    logits = jax.block_until_ready(logits)

    ref = reference_forward(tokens, embed, packed, final_gamma, final_beta,
                            heads=HEADS, n_layers=N_LAYERS)
    ref = jax.block_until_ready(ref)

    assert logits.shape == (B, S, VOCAB)
    assert bool(jnp.all(jnp.isfinite(logits)))
    assert bool(jnp.allclose(logits, ref, rtol=0.0, atol=3e-2)), (
        "max abs diff %e" % float(jnp.max(jnp.abs(logits - ref))))
    print("KERNEL_OK")
</pallas_src>

<mosaic_0001>
module attributes {stable_mosaic.version = 11 : i64} {
  func.func @transformer_kernel(%arg0: i32, %arg1: i32, %arg2: memref<2x8x32xf32, #tpu.memory_space<vmem>>, %arg3: memref<8x32xf32, #tpu.memory_space<vmem>>, %arg4: memref<1x32x32xbf16, #tpu.memory_space<vmem>>, %arg5: memref<1x1x32xf32, #tpu.memory_space<vmem>>, %arg6: memref<1x32x32xbf16, #tpu.memory_space<vmem>>, %arg7: memref<1x1x32xf32, #tpu.memory_space<vmem>>, %arg8: memref<1x32x32xbf16, #tpu.memory_space<vmem>>, %arg9: memref<1x1x32xf32, #tpu.memory_space<vmem>>, %arg10: memref<1x32x32xbf16, #tpu.memory_space<vmem>>, %arg11: memref<1x1x32xf32, #tpu.memory_space<vmem>>, %arg12: memref<1x32x64xbf16, #tpu.memory_space<vmem>>, %arg13: memref<1x1x64xf32, #tpu.memory_space<vmem>>, %arg14: memref<1x64x32xbf16, #tpu.memory_space<vmem>>, %arg15: memref<1x1x32xf32, #tpu.memory_space<vmem>>, %arg16: memref<1x1x32xf32, #tpu.memory_space<vmem>>, %arg17: memref<1x1x32xf32, #tpu.memory_space<vmem>>, %arg18: memref<1x1x32xf32, #tpu.memory_space<vmem>>, %arg19: memref<1x1x32xf32, #tpu.memory_space<vmem>>, %arg20: memref<1x32xf32, #tpu.memory_space<vmem>>, %arg21: memref<1x32xf32, #tpu.memory_space<vmem>>, %arg22: memref<32x128xbf16, #tpu.memory_space<vmem>>, %arg23: memref<2x8x128xf32, #tpu.memory_space<vmem>>, %arg24: memref<16x32xf32, #tpu.memory_space<vmem>>) attributes {dimension_semantics = [#tpu.dimension_semantics<parallel>, #tpu.dimension_semantics<arbitrary>], iteration_bounds = array<i64: 1, 2>, scalar_prefetch = 0 : i64, scratch_operands = 1 : i64, tpu.core_type = #tpu.core_type<tc>, window_params = [{transform_indices = @transform_0, window_bounds = array<i64: 2, 8, 32>}, {pipeline_mode = #tpu.pipeline_mode<synchronous>, transform_indices = @transform_1, window_bounds = array<i64: 8, 32>}, {transform_indices = @transform_2, window_bounds = array<i64: 1, 32, 32>}, {transform_indices = @transform_3, window_bounds = array<i64: 1, 1, 32>}, {transform_indices = @transform_4, window_bounds = array<i64: 1, 32, 32>}, {transform_indices = @transform_5, window_bounds = array<i64: 1, 1, 32>}, {transform_indices = @transform_6, window_bounds = array<i64: 1, 32, 32>}, {transform_indices = @transform_7, window_bounds = array<i64: 1, 1, 32>}, {transform_indices = @transform_8, window_bounds = array<i64: 1, 32, 32>}, {transform_indices = @transform_9, window_bounds = array<i64: 1, 1, 32>}, {transform_indices = @transform_10, window_bounds = array<i64: 1, 32, 64>}, {transform_indices = @transform_11, window_bounds = array<i64: 1, 1, 64>}, {transform_indices = @transform_12, window_bounds = array<i64: 1, 64, 32>}, {transform_indices = @transform_13, window_bounds = array<i64: 1, 1, 32>}, {transform_indices = @transform_14, window_bounds = array<i64: 1, 1, 32>}, {transform_indices = @transform_15, window_bounds = array<i64: 1, 1, 32>}, {transform_indices = @transform_16, window_bounds = array<i64: 1, 1, 32>}, {transform_indices = @transform_17, window_bounds = array<i64: 1, 1, 32>}, {pipeline_mode = #tpu.pipeline_mode<synchronous>, transform_indices = @transform_18, window_bounds = array<i64: 1, 32>}, {pipeline_mode = #tpu.pipeline_mode<synchronous>, transform_indices = @transform_19, window_bounds = array<i64: 1, 32>}, {pipeline_mode = #tpu.pipeline_mode<synchronous>, transform_indices = @transform_20, window_bounds = array<i64: 32, 128>}, {transform_indices = @transform_21, window_bounds = array<i64: 2, 8, 128>}]} {
    %c0_i32 = arith.constant 0 : i32
    %0 = arith.cmpi eq, %arg1, %c0_i32 : i32
    %1 = arith.extui %0 : i1 to i32
    %c0_i32_0 = arith.constant 0 : i32
    %2 = arith.cmpi ne, %1, %c0_i32_0 : i32
    scf.if %2 {
      %c0_79 = arith.constant 0 : index
      %c0_80 = arith.constant 0 : index
      %c0_81 = arith.constant 0 : index
      %190 = vector.load %arg2[%c0_79, %c0_80, %c0_81] : memref<2x8x32xf32, #tpu.memory_space<vmem>>, vector<2x8x32xf32>
      %191 = vector.shape_cast %190 : vector<2x8x32xf32> to vector<16x32xf32>
      %c0_82 = arith.constant 0 : index
      %c0_83 = arith.constant 0 : index
      %192 = vector.load %arg24[%c0_82, %c0_83] : memref<16x32xf32, #tpu.memory_space<vmem>>, vector<16x32xf32>
      tpu.vector_store %arg24[%c0_82, %c0_83], %191 {strides = array<i32>} : memref<16x32xf32, #tpu.memory_space<vmem>>, vector<16x32xf32>,
    } else {
    }
    %c0 = arith.constant 0 : index
    %c0_1 = arith.constant 0 : index
    %3 = vector.load %arg24[%c0, %c0_1] : memref<16x32xf32, #tpu.memory_space<vmem>>, vector<16x32xf32>
    %4 = vector.shape_cast %3 : vector<16x32xf32> to vector<2x8x32xf32>
    %c0_2 = arith.constant 0 : index
    %c0_3 = arith.constant 0 : index
    %5 = vector.load %arg3[%c0_2, %c0_3] : memref<8x32xf32, #tpu.memory_space<vmem>>, vector<8x32xf32>
    %6 = vector.shape_cast %5 : vector<8x32xf32> to vector<1x8x32xf32>
    %7 = vector.broadcast %6 : vector<1x8x32xf32> to vector<2x8x32xf32>
    %8 = arith.addf %4, %7 : vector<2x8x32xf32>
    %9 = vector.shape_cast %8 : vector<2x8x32xf32> to vector<16x32xf32>
    %10 = arith.truncf %9 : vector<16x32xf32> to vector<16x32xbf16>
    %c0_4 = arith.constant 0 : index
    %c0_5 = arith.constant 0 : index
    %c0_6 = arith.constant 0 : index
    %11 = vector.load %arg4[%c0_4, %c0_5, %c0_6] : memref<1x32x32xbf16, #tpu.memory_space<vmem>>, vector<1x32x32xbf16>
    %12 = vector.shape_cast %11 : vector<1x32x32xbf16> to vector<32x32xbf16>
    %cst = arith.constant dense<0.000000e+00> : vector<16x32xf32>
    %13 = tpu.matmul %10, %12, %cst {dimension_numbers = #tpu.dot_dimension_numbers<[1], [0], [0], [1], [0, 0, 1, 1], [], []>} : vector<16x32xbf16>, vector<32x32xbf16>, vector<16x32xf32> -> vector<16x32xf32>
    %c0_7 = arith.constant 0 : index
    %c0_8 = arith.constant 0 : index
    %c0_9 = arith.constant 0 : index
    %14 = vector.load %arg5[%c0_7, %c0_8, %c0_9] : memref<1x1x32xf32, #tpu.memory_space<vmem>>, vector<1x1x32xf32>
    %15 = vector.shape_cast %14 : vector<1x1x32xf32> to vector<1x32xf32>
    %16 = vector.broadcast %15 : vector<1x32xf32> to vector<16x32xf32>
    %17 = arith.addf %13, %16 : vector<16x32xf32>
    %18 = arith.truncf %9 : vector<16x32xf32> to vector<16x32xbf16>
    %c0_10 = arith.constant 0 : index
    %c0_11 = arith.constant 0 : index
    %c0_12 = arith.constant 0 : index
    %19 = vector.load %arg6[%c0_10, %c0_11, %c0_12] : memref<1x32x32xbf16, #tpu.memory_space<vmem>>, vector<1x32x32xbf16>
    %20 = vector.shape_cast %19 : vector<1x32x32xbf16> to vector<32x32xbf16>
    %cst_13 = arith.constant dense<0.000000e+00> : vector<16x32xf32>
    %21 = tpu.matmul %18, %20, %cst_13 {dimension_numbers = #tpu.dot_dimension_numbers<[1], [0], [0], [1], [0, 0, 1, 1], [], []>} : vector<16x32xbf16>, vector<32x32xbf16>, vector<16x32xf32> -> vector<16x32xf32>
    %c0_14 = arith.constant 0 : index
    %c0_15 = arith.constant 0 : index
    %c0_16 = arith.constant 0 : index
    %22 = vector.load %arg7[%c0_14, %c0_15, %c0_16] : memref<1x1x32xf32, #tpu.memory_space<vmem>>, vector<1x1x32xf32>
    %23 = vector.shape_cast %22 : vector<1x1x32xf32> to vector<1x32xf32>
    %24 = vector.broadcast %23 : vector<1x32xf32> to vector<16x32xf32>
    %25 = arith.addf %21, %24 : vector<16x32xf32>
    %26 = arith.truncf %3 : vector<16x32xf32> to vector<16x32xbf16>
    %c0_17 = arith.constant 0 : index
    %c0_18 = arith.constant 0 : index
    %c0_19 = arith.constant 0 : index
    %27 = vector.load %arg8[%c0_17, %c0_18, %c0_19] : memref<1x32x32xbf16, #tpu.memory_space<vmem>>, vector<1x32x32xbf16>
    %28 = vector.shape_cast %27 : vector<1x32x32xbf16> to vector<32x32xbf16>
    %cst_20 = arith.constant dense<0.000000e+00> : vector<16x32xf32>
    %29 = tpu.matmul %26, %28, %cst_20 {dimension_numbers = #tpu.dot_dimension_numbers<[1], [0], [0], [1], [0, 0, 1, 1], [], []>} : vector<16x32xbf16>, vector<32x32xbf16>, vector<16x32xf32> -> vector<16x32xf32>
    %c0_21 = arith.constant 0 : index
    %c0_22 = arith.constant 0 : index
    %c0_23 = arith.constant 0 : index
    %30 = vector.load %arg9[%c0_21, %c0_22, %c0_23] : memref<1x1x32xf32, #tpu.memory_space<vmem>>, vector<1x1x32xf32>
    %31 = vector.shape_cast %30 : vector<1x1x32xf32> to vector<1x32xf32>
    %32 = vector.broadcast %31 : vector<1x32xf32> to vector<16x32xf32>
    %33 = arith.addf %29, %32 : vector<16x32xf32>
    %34 = vector.extract_strided_slice %17 {offsets = [0, 0], sizes = [16, 8], strides = [1, 1]} : vector<16x32xf32> to vector<16x8xf32>
    %35 = vector.extract_strided_slice %17 {offsets = [0, 8], sizes = [16, 8], strides = [1, 1]} : vector<16x32xf32> to vector<16x8xf32>
    %36 = vector.extract_strided_slice %17 {offsets = [0, 16], sizes = [16, 8], strides = [1, 1]} : vector<16x32xf32> to vector<16x8xf32>
    %37 = vector.extract_strided_slice %17 {offsets = [0, 24], sizes = [16, 8], strides = [1, 1]} : vector<16x32xf32> to vector<16x8xf32>
    %38 = vector.shape_cast %34 : vector<16x8xf32> to vector<1x16x8xf32>
    %39 = vector.shape_cast %35 : vector<16x8xf32> to vector<1x16x8xf32>
    %40 = vector.shape_cast %36 : vector<16x8xf32> to vector<1x16x8xf32>
    %41 = vector.shape_cast %37 : vector<16x8xf32> to vector<1x16x8xf32>
    %42 = tpu.concatenate %38, %39, %40, %41 in 0 : vector<1x16x8xf32>, vector<1x16x8xf32>, vector<1x16x8xf32>, vector<1x16x8xf32> -> vector<4x16x8xf32>
    %43 = vector.shape_cast %42 : vector<4x16x8xf32> to vector<8x8x8xf32>
    %44 = vector.extract_strided_slice %25 {offsets = [0, 0], sizes = [16, 8], strides = [1, 1]} : vector<16x32xf32> to vector<16x8xf32>
    %45 = vector.extract_strided_slice %25 {offsets = [0, 8], sizes = [16, 8], strides = [1, 1]} : vector<16x32xf32> to vector<16x8xf32>
    %46 = vector.extract_strided_slice %25 {offsets = [0, 16], sizes = [16, 8], strides = [1, 1]} : vector<16x32xf32> to vector<16x8xf32>
    %47 = vector.extract_strided_slice %25 {offsets = [0, 24], sizes = [16, 8], strides = [1, 1]} : vector<16x32xf32> to vector<16x8xf32>
    %48 = vector.shape_cast %44 : vector<16x8xf32> to vector<1x16x8xf32>
    %49 = vector.shape_cast %45 : vector<16x8xf32> to vector<1x16x8xf32>
    %50 = vector.shape_cast %46 : vector<16x8xf32> to vector<1x16x8xf32>
    %51 = vector.shape_cast %47 : vector<16x8xf32> to vector<1x16x8xf32>
    %52 = tpu.concatenate %48, %49, %50, %51 in 0 : vector<1x16x8xf32>, vector<1x16x8xf32>, vector<1x16x8xf32>, vector<1x16x8xf32> -> vector<4x16x8xf32>
    %53 = vector.shape_cast %52 : vector<4x16x8xf32> to vector<8x8x8xf32>
    %54 = vector.extract_strided_slice %33 {offsets = [0, 0], sizes = [16, 8], strides = [1, 1]} : vector<16x32xf32> to vector<16x8xf32>
    %55 = vector.extract_strided_slice %33 {offsets = [0, 8], sizes = [16, 8], strides = [1, 1]} : vector<16x32xf32> to vector<16x8xf32>
    %56 = vector.extract_strided_slice %33 {offsets = [0, 16], sizes = [16, 8], strides = [1, 1]} : vector<16x32xf32> to vector<16x8xf32>
    %57 = vector.extract_strided_slice %33 {offsets = [0, 24], sizes = [16, 8], strides = [1, 1]} : vector<16x32xf32> to vector<16x8xf32>
    %58 = vector.shape_cast %54 : vector<16x8xf32> to vector<1x16x8xf32>
    %59 = vector.shape_cast %55 : vector<16x8xf32> to vector<1x16x8xf32>
    %60 = vector.shape_cast %56 : vector<16x8xf32> to vector<1x16x8xf32>
    %61 = vector.shape_cast %57 : vector<16x8xf32> to vector<1x16x8xf32>
    %62 = tpu.concatenate %58, %59, %60, %61 in 0 : vector<1x16x8xf32>, vector<1x16x8xf32>, vector<1x16x8xf32>, vector<1x16x8xf32> -> vector<4x16x8xf32>
    %63 = vector.shape_cast %62 : vector<4x16x8xf32> to vector<8x8x8xf32>
    %64 = arith.truncf %43 : vector<8x8x8xf32> to vector<8x8x8xbf16>
    %65 = arith.truncf %53 : vector<8x8x8xf32> to vector<8x8x8xbf16>
    "tpu.trace_start"() <{level = 10 : i32, message = "nqe,nke->nqk"}> : () -> ()
    %cst_24 = arith.constant dense<0.000000e+00> : vector<8x8x8xf32>
    %66 = tpu.matmul %64, %65, %cst_24 {dimension_numbers = #tpu.dot_dimension_numbers<[2], [2], [1], [1], [0, 0, 0, 1, 1, 1], [0], [0]>} : vector<8x8x8xbf16>, vector<8x8x8xbf16>, vector<8x8x8xf32> -> vector<8x8x8xf32>
    "tpu.trace_stop"() : () -> ()
    %cst_25 = arith.constant 0.353553385 : f32
    %67 = vector.broadcast %cst_25 : f32 to vector<8x8x8xf32>
    %68 = arith.mulf %66, %67 : vector<8x8x8xf32>
    %69 = tpu.iota {dimensions = array<i32: 0>} : vector<8x8xi32>
    %70 = tpu.iota {dimensions = array<i32: 1>} : vector<8x8xi32>
    %71 = arith.cmpi sle, %70, %69 : vector<8x8xi32>
    %72 = vector.shape_cast %71 : vector<8x8xi1> to vector<1x8x8xi1>
    %cst_26 = arith.constant -1.000000e+30 : f32
    %73 = vector.shape_cast %72 : vector<1x8x8xi1> to vector<1x8x8xi1>
    %74 = vector.broadcast %73 : vector<1x8x8xi1> to vector<8x8x8xi1>
    %75 = vector.broadcast %cst_26 : f32 to vector<8x8x8xf32>
    %76 = arith.select %74, %68, %75 : vector<8x8x8xi1>, vector<8x8x8xf32>
    %cst_27 = arith.constant dense<0xFF800000> : vector<8x8xf32>
    %77 = vector.multi_reduction <maximumf>, %76, %cst_27 [2] : vector<8x8x8xf32> to vector<8x8xf32>
    %78 = vector.shape_cast %77 : vector<8x8xf32> to vector<8x8x1xf32>
    %79 = vector.broadcast %78 : vector<8x8x1xf32> to vector<8x8x8xf32>
    %80 = arith.subf %76, %79 : vector<8x8x8xf32>
    %81 = math.exp %80 : vector<8x8x8xf32>
    %cst_28 = arith.constant dense<0.000000e+00> : vector<8x8xf32>
    %82 = vector.multi_reduction <add>, %81, %cst_28 [2] : vector<8x8x8xf32> to vector<8x8xf32>
    %83 = vector.shape_cast %82 : vector<8x8xf32> to vector<8x8x1xf32>
    %84 = tpu.reciprocal %83 {approx = true} : vector<8x8x1xf32> -> vector<8x8x1xf32>
    %85 = vector.broadcast %84 : vector<8x8x1xf32> to vector<8x8x8xf32>
    %86 = arith.mulf %81, %85 : vector<8x8x8xf32>
    %87 = arith.truncf %86 : vector<8x8x8xf32> to vector<8x8x8xbf16>
    %88 = arith.truncf %63 : vector<8x8x8xf32> to vector<8x8x8xbf16>
    "tpu.trace_start"() <{level = 10 : i32, message = "nqk,nke->nqe"}> : () -> ()
    %cst_29 = arith.constant dense<0.000000e+00> : vector<8x8x8xf32>
    %89 = tpu.matmul %87, %88, %cst_29 {dimension_numbers = #tpu.dot_dimension_numbers<[2], [1], [1], [2], [0, 0, 0, 1, 1, 2], [0], [0]>} : vector<8x8x8xbf16>, vector<8x8x8xbf16>, vector<8x8x8xf32> -> vector<8x8x8xf32>
    "tpu.trace_stop"() : () -> ()
    %90 = vector.shape_cast %89 : vector<8x8x8xf32> to vector<4x16x8xf32>
    %91 = vector.extract_strided_slice %90 {offsets = [0, 0, 0], sizes = [1, 16, 8], strides = [1, 1, 1]} : vector<4x16x8xf32> to vector<1x16x8xf32>
    %92 = vector.shape_cast %91 : vector<1x16x8xf32> to vector<16x8xf32>
    %93 = vector.extract_strided_slice %90 {offsets = [1, 0, 0], sizes = [1, 16, 8], strides = [1, 1, 1]} : vector<4x16x8xf32> to vector<1x16x8xf32>
    %94 = vector.shape_cast %93 : vector<1x16x8xf32> to vector<16x8xf32>
    %95 = vector.extract_strided_slice %90 {offsets = [2, 0, 0], sizes = [1, 16, 8], strides = [1, 1, 1]} : vector<4x16x8xf32> to vector<1x16x8xf32>
    %96 = vector.shape_cast %95 : vector<1x16x8xf32> to vector<16x8xf32>
    %97 = vector.extract_strided_slice %90 {offsets = [3, 0, 0], sizes = [1, 16, 8], strides = [1, 1, 1]} : vector<4x16x8xf32> to vector<1x16x8xf32>
    %98 = vector.shape_cast %97 : vector<1x16x8xf32> to vector<16x8xf32>
    %99 = tpu.concatenate %92, %94, %96, %98 in 1 : vector<16x8xf32>, vector<16x8xf32>, vector<16x8xf32>, vector<16x8xf32> -> vector<16x32xf32>
    %100 = arith.truncf %99 : vector<16x32xf32> to vector<16x32xbf16>
    %c0_30 = arith.constant 0 : index
    %c0_31 = arith.constant 0 : index
    %c0_32 = arith.constant 0 : index
    %101 = vector.load %arg10[%c0_30, %c0_31, %c0_32] : memref<1x32x32xbf16, #tpu.memory_space<vmem>>, vector<1x32x32xbf16>
    %102 = vector.shape_cast %101 : vector<1x32x32xbf16> to vector<32x32xbf16>
    %cst_33 = arith.constant dense<0.000000e+00> : vector<16x32xf32>
    %103 = tpu.matmul %100, %102, %cst_33 {dimension_numbers = #tpu.dot_dimension_numbers<[1], [0], [0], [1], [0, 0, 1, 1], [], []>} : vector<16x32xbf16>, vector<32x32xbf16>, vector<16x32xf32> -> vector<16x32xf32>
    %c0_34 = arith.constant 0 : index
    %c0_35 = arith.constant 0 : index
    %c0_36 = arith.constant 0 : index
    %104 = vector.load %arg11[%c0_34, %c0_35, %c0_36] : memref<1x1x32xf32, #tpu.memory_space<vmem>>, vector<1x1x32xf32>
    %105 = vector.shape_cast %104 : vector<1x1x32xf32> to vector<1x32xf32>
    %106 = vector.broadcast %105 : vector<1x32xf32> to vector<16x32xf32>
    %107 = arith.addf %103, %106 : vector<16x32xf32>
    %108 = arith.addf %3, %107 : vector<16x32xf32>
    %c0_37 = arith.constant 0 : index
    %c0_38 = arith.constant 0 : index
    %c0_39 = arith.constant 0 : index
    %109 = vector.load %arg16[%c0_37, %c0_38, %c0_39] : memref<1x1x32xf32, #tpu.memory_space<vmem>>, vector<1x1x32xf32>
    %110 = vector.shape_cast %109 : vector<1x1x32xf32> to vector<1x32xf32>
    %c0_40 = arith.constant 0 : index
    %c0_41 = arith.constant 0 : index
    %c0_42 = arith.constant 0 : index
    %111 = vector.load %arg17[%c0_40, %c0_41, %c0_42] : memref<1x1x32xf32, #tpu.memory_space<vmem>>, vector<1x1x32xf32>
    %112 = vector.shape_cast %111 : vector<1x1x32xf32> to vector<1x32xf32>
    %cst_43 = arith.constant dense<0.000000e+00> : vector<16xf32>
    %113 = vector.multi_reduction <add>, %108, %cst_43 [1] : vector<16x32xf32> to vector<16xf32>
    %114 = vector.shape_cast %113 : vector<16xf32> to vector<16x1xf32>
    %cst_44 = arith.constant 3.200000e+01 : f32
    %115 = vector.broadcast %cst_44 : f32 to vector<16x1xf32>
    %116 = arith.divf %114, %115 : vector<16x1xf32>
    %117 = vector.broadcast %116 : vector<16x1xf32> to vector<16x32xf32>
    %118 = arith.subf %108, %117 : vector<16x32xf32>
    %119 = arith.mulf %118, %118 : vector<16x32xf32>
    %cst_45 = arith.constant dense<0.000000e+00> : vector<16xf32>
    %120 = vector.multi_reduction <add>, %119, %cst_45 [1] : vector<16x32xf32> to vector<16xf32>
    %121 = vector.shape_cast %120 : vector<16xf32> to vector<16x1xf32>
    %cst_46 = arith.constant 3.200000e+01 : f32
    %122 = vector.broadcast %cst_46 : f32 to vector<16x1xf32>
    %123 = arith.divf %121, %122 : vector<16x1xf32>
    %124 = vector.broadcast %116 : vector<16x1xf32> to vector<16x32xf32>
    %125 = arith.subf %108, %124 : vector<16x32xf32>
    %cst_47 = arith.constant 9.99999974E-6 : f32
    %126 = vector.broadcast %cst_47 : f32 to vector<16x1xf32>
    %127 = arith.addf %123, %126 : vector<16x1xf32>
    %128 = math.rsqrt %127 : vector<16x1xf32>
    %129 = vector.broadcast %128 : vector<16x1xf32> to vector<16x32xf32>
    %130 = arith.mulf %125, %129 : vector<16x32xf32>
    %131 = vector.broadcast %110 : vector<1x32xf32> to vector<16x32xf32>
    %132 = arith.mulf %130, %131 : vector<16x32xf32>
    %133 = vector.broadcast %112 : vector<1x32xf32> to vector<16x32xf32>
    %134 = arith.addf %132, %133 : vector<16x32xf32>
    %135 = arith.truncf %134 : vector<16x32xf32> to vector<16x32xbf16>
    %c0_48 = arith.constant 0 : index
    %c0_49 = arith.constant 0 : index
    %c0_50 = arith.constant 0 : index
    %136 = vector.load %arg12[%c0_48, %c0_49, %c0_50] : memref<1x32x64xbf16, #tpu.memory_space<vmem>>, vector<1x32x64xbf16>
    %137 = vector.shape_cast %136 : vector<1x32x64xbf16> to vector<32x64xbf16>
    %cst_51 = arith.constant dense<0.000000e+00> : vector<16x64xf32>
    %138 = tpu.matmul %135, %137, %cst_51 {dimension_numbers = #tpu.dot_dimension_numbers<[1], [0], [0], [1], [0, 0, 1, 1], [], []>} : vector<16x32xbf16>, vector<32x64xbf16>, vector<16x64xf32> -> vector<16x64xf32>
    %c0_52 = arith.constant 0 : index
    %c0_53 = arith.constant 0 : index
    %c0_54 = arith.constant 0 : index
    %139 = vector.load %arg13[%c0_52, %c0_53, %c0_54] : memref<1x1x64xf32, #tpu.memory_space<vmem>>, vector<1x1x64xf32>
    %140 = vector.shape_cast %139 : vector<1x1x64xf32> to vector<1x64xf32>
    %141 = vector.broadcast %140 : vector<1x64xf32> to vector<16x64xf32>
    %142 = arith.addf %138, %141 : vector<16x64xf32>
    %cst_55 = arith.constant 5.000000e-01 : f32
    %143 = vector.broadcast %cst_55 : f32 to vector<16x64xf32>
    %144 = arith.mulf %143, %142 : vector<16x64xf32>
    %cst_56 = arith.constant 0.707106769 : f32
    %145 = vector.broadcast %cst_56 : f32 to vector<16x64xf32>
    %146 = arith.mulf %142, %145 : vector<16x64xf32>
    %147 = math.erf %146 : vector<16x64xf32>
    %cst_57 = arith.constant 1.000000e+00 : f32
    %148 = vector.broadcast %cst_57 : f32 to vector<16x64xf32>
    %149 = arith.addf %148, %147 : vector<16x64xf32>
    %150 = arith.mulf %144, %149 : vector<16x64xf32>
    %151 = arith.truncf %150 : vector<16x64xf32> to vector<16x64xbf16>
    %c0_58 = arith.constant 0 : index
    %c0_59 = arith.constant 0 : index
    %c0_60 = arith.constant 0 : index
    %152 = vector.load %arg14[%c0_58, %c0_59, %c0_60] : memref<1x64x32xbf16, #tpu.memory_space<vmem>>, vector<1x64x32xbf16>
    %153 = vector.shape_cast %152 : vector<1x64x32xbf16> to vector<64x32xbf16>
    %cst_61 = arith.constant dense<0.000000e+00> : vector<16x32xf32>
    %154 = tpu.matmul %151, %153, %cst_61 {dimension_numbers = #tpu.dot_dimension_numbers<[1], [0], [0], [1], [0, 0, 1, 1], [], []>} : vector<16x64xbf16>, vector<64x32xbf16>, vector<16x32xf32> -> vector<16x32xf32>
    %c0_62 = arith.constant 0 : index
    %c0_63 = arith.constant 0 : index
    %c0_64 = arith.constant 0 : index
    %155 = vector.load %arg15[%c0_62, %c0_63, %c0_64] : memref<1x1x32xf32, #tpu.memory_space<vmem>>, vector<1x1x32xf32>
    %156 = vector.shape_cast %155 : vector<1x1x32xf32> to vector<1x32xf32>
    %157 = vector.broadcast %156 : vector<1x32xf32> to vector<16x32xf32>
    %158 = arith.addf %154, %157 : vector<16x32xf32>
    %159 = arith.addf %134, %158 : vector<16x32xf32>
    %c0_65 = arith.constant 0 : index
    %c0_66 = arith.constant 0 : index
    %c0_67 = arith.constant 0 : index
    %160 = vector.load %arg18[%c0_65, %c0_66, %c0_67] : memref<1x1x32xf32, #tpu.memory_space<vmem>>, vector<1x1x32xf32>
    %161 = vector.shape_cast %160 : vector<1x1x32xf32> to vector<1x32xf32>
    %c0_68 = arith.constant 0 : index
    %c0_69 = arith.constant 0 : index
    %c0_70 = arith.constant 0 : index
    %162 = vector.load %arg19[%c0_68, %c0_69, %c0_70] : memref<1x1x32xf32, #tpu.memory_space<vmem>>, vector<1x1x32xf32>
    %163 = vector.shape_cast %162 : vector<1x1x32xf32> to vector<1x32xf32>
    %cst_71 = arith.constant dense<0.000000e+00> : vector<16xf32>
    %164 = vector.multi_reduction <add>, %159, %cst_71 [1] : vector<16x32xf32> to vector<16xf32>
    %165 = vector.shape_cast %164 : vector<16xf32> to vector<16x1xf32>
    %cst_72 = arith.constant 3.200000e+01 : f32
    %166 = vector.broadcast %cst_72 : f32 to vector<16x1xf32>
    %167 = arith.divf %165, %166 : vector<16x1xf32>
    %168 = vector.broadcast %167 : vector<16x1xf32> to vector<16x32xf32>
    %169 = arith.subf %159, %168 : vector<16x32xf32>
    %170 = arith.mulf %169, %169 : vector<16x32xf32>
    %cst_73 = arith.constant dense<0.000000e+00> : vector<16xf32>
    %171 = vector.multi_reduction <add>, %170, %cst_73 [1] : vector<16x32xf32> to vector<16xf32>
    %172 = vector.shape_cast %171 : vector<16xf32> to vector<16x1xf32>
    %cst_74 = arith.constant 3.200000e+01 : f32
    %173 = vector.broadcast %cst_74 : f32 to vector<16x1xf32>
    %174 = arith.divf %172, %173 : vector<16x1xf32>
    %175 = vector.broadcast %167 : vector<16x1xf32> to vector<16x32xf32>
    %176 = arith.subf %159, %175 : vector<16x32xf32>
    %cst_75 = arith.constant 9.99999974E-6 : f32
    %177 = vector.broadcast %cst_75 : f32 to vector<16x1xf32>
    %178 = arith.addf %174, %177 : vector<16x1xf32>
    %179 = math.rsqrt %178 : vector<16x1xf32>
    %180 = vector.broadcast %179 : vector<16x1xf32> to vector<16x32xf32>
    %181 = arith.mulf %176, %180 : vector<16x32xf32>
    %182 = vector.broadcast %161 : vector<1x32xf32> to vector<16x32xf32>
    %183 = arith.mulf %181, %182 : vector<16x32xf32>
    %184 = vector.broadcast %163 : vector<1x32xf32> to vector<16x32xf32>
    %185 = arith.addf %183, %184 : vector<16x32xf32>
    %c0_76 = arith.constant 0 : index
    %c0_77 = arith.constant 0 : index
    %186 = vector.load %arg24[%c0_76, %c0_77] : memref<16x32xf32, #tpu.memory_space<vmem>>, vector<16x32xf32>
    tpu.vector_store %arg24[%c0_76, %c0_77], %185 {strides = array<i32>} : memref<16x32xf32, #tpu.memory_space<vmem>>, vector<16x32xf32>,
    %c1_i32 = arith.constant 1 : i32
    %187 = arith.cmpi eq, %arg1, %c1_i32 : i32
    %188 = arith.extui %187 : i1 to i32
    %c0_i32_78 = arith.constant 0 : i32
    %189 = arith.cmpi ne, %188, %c0_i32_78 : i32
    scf.if %189 {
      %c0_79 = arith.constant 0 : index
      %c0_80 = arith.constant 0 : index
      %190 = vector.load %arg20[%c0_79, %c0_80] : memref<1x32xf32, #tpu.memory_space<vmem>>, vector<1x32xf32>
      %c0_81 = arith.constant 0 : index
      %c0_82 = arith.constant 0 : index
      %191 = vector.load %arg21[%c0_81, %c0_82] : memref<1x32xf32, #tpu.memory_space<vmem>>, vector<1x32xf32>
      %cst_83 = arith.constant dense<0.000000e+00> : vector<16xf32>
      %192 = vector.multi_reduction <add>, %185, %cst_83 [1] : vector<16x32xf32> to vector<16xf32>
      %193 = vector.shape_cast %192 : vector<16xf32> to vector<16x1xf32>
      %cst_84 = arith.constant 3.200000e+01 : f32
      %194 = vector.broadcast %cst_84 : f32 to vector<16x1xf32>
      %195 = arith.divf %193, %194 : vector<16x1xf32>
      %196 = vector.broadcast %195 : vector<16x1xf32> to vector<16x32xf32>
      %197 = arith.subf %185, %196 : vector<16x32xf32>
      %198 = arith.mulf %197, %197 : vector<16x32xf32>
      %cst_85 = arith.constant dense<0.000000e+00> : vector<16xf32>
      %199 = vector.multi_reduction <add>, %198, %cst_85 [1] : vector<16x32xf32> to vector<16xf32>
      %200 = vector.shape_cast %199 : vector<16xf32> to vector<16x1xf32>
      %cst_86 = arith.constant 3.200000e+01 : f32
      %201 = vector.broadcast %cst_86 : f32 to vector<16x1xf32>
      %202 = arith.divf %200, %201 : vector<16x1xf32>
      %203 = vector.broadcast %195 : vector<16x1xf32> to vector<16x32xf32>
      %204 = arith.subf %185, %203 : vector<16x32xf32>
      %cst_87 = arith.constant 9.99999974E-6 : f32
      %205 = vector.broadcast %cst_87 : f32 to vector<16x1xf32>
      %206 = arith.addf %202, %205 : vector<16x1xf32>
      %207 = math.rsqrt %206 : vector<16x1xf32>
      %208 = vector.broadcast %207 : vector<16x1xf32> to vector<16x32xf32>
      %209 = arith.mulf %204, %208 : vector<16x32xf32>
      %210 = vector.broadcast %190 : vector<1x32xf32> to vector<16x32xf32>
      %211 = arith.mulf %209, %210 : vector<16x32xf32>
      %212 = vector.broadcast %191 : vector<1x32xf32> to vector<16x32xf32>
      %213 = arith.addf %211, %212 : vector<16x32xf32>
      %214 = arith.truncf %213 : vector<16x32xf32> to vector<16x32xbf16>
      %c0_88 = arith.constant 0 : index
      %c0_89 = arith.constant 0 : index
      %215 = vector.load %arg22[%c0_88, %c0_89] : memref<32x128xbf16, #tpu.memory_space<vmem>>, vector<32x128xbf16>
      %cst_90 = arith.constant dense<0.000000e+00> : vector<16x128xf32>
      %216 = tpu.matmul %214, %215, %cst_90 {dimension_numbers = #tpu.dot_dimension_numbers<[1], [0], [0], [1], [0, 0, 1, 1], [], []>} : vector<16x32xbf16>, vector<32x128xbf16>, vector<16x128xf32> -> vector<16x128xf32>
      %217 = vector.shape_cast %216 : vector<16x128xf32> to vector<2x8x128xf32>
      %c0_91 = arith.constant 0 : index
      %c0_92 = arith.constant 0 : index
      %c0_93 = arith.constant 0 : index
      %218 = vector.load %arg23[%c0_91, %c0_92, %c0_93] : memref<2x8x128xf32, #tpu.memory_space<vmem>>, vector<2x8x128xf32>
      tpu.vector_store %arg23[%c0_91, %c0_92, %c0_93], %217 {strides = array<i32>} : memref<2x8x128xf32, #tpu.memory_space<vmem>>, vector<2x8x128xf32>,
    } else {
    }
    return
  }
  func.func @transform_0(%arg0: i32, %arg1: i32) -> (i32, i32, i32) {
    %c0_i32 = arith.constant 0 : i32
    %c0_i32_0 = arith.constant 0 : i32
    %c0_i32_1 = arith.constant 0 : i32
    return %arg0, %c0_i32, %c0_i32_0 : i32, i32, i32
  }
  func.func @transform_1(%arg0: i32, %arg1: i32) -> (i32, i32) {
    %c0_i32 = arith.constant 0 : i32
    %c0_i32_0 = arith.constant 0 : i32
    %c0_i32_1 = arith.constant 0 : i32
    return %c0_i32, %c0_i32_0 : i32, i32
  }
  func.func @transform_2(%arg0: i32, %arg1: i32) -> (i32, i32, i32) {
    %c0_i32 = arith.constant 0 : i32
    %c0_i32_0 = arith.constant 0 : i32
    %c0_i32_1 = arith.constant 0 : i32
    return %arg1, %c0_i32, %c0_i32_0 : i32, i32, i32
  }
  func.func @transform_3(%arg0: i32, %arg1: i32) -> (i32, i32, i32) {
    %c0_i32 = arith.constant 0 : i32
    %c0_i32_0 = arith.constant 0 : i32
    %c0_i32_1 = arith.constant 0 : i32
    return %arg1, %c0_i32, %c0_i32_0 : i32, i32, i32
  }
  func.func @transform_4(%arg0: i32, %arg1: i32) -> (i32, i32, i32) {
    %c0_i32 = arith.constant 0 : i32
    %c0_i32_0 = arith.constant 0 : i32
    %c0_i32_1 = arith.constant 0 : i32
    return %arg1, %c0_i32, %c0_i32_0 : i32, i32, i32
  }
  func.func @transform_5(%arg0: i32, %arg1: i32) -> (i32, i32, i32) {
    %c0_i32 = arith.constant 0 : i32
    %c0_i32_0 = arith.constant 0 : i32
    %c0_i32_1 = arith.constant 0 : i32
    return %arg1, %c0_i32, %c0_i32_0 : i32, i32, i32
  }
  func.func @transform_6(%arg0: i32, %arg1: i32) -> (i32, i32, i32) {
    %c0_i32 = arith.constant 0 : i32
    %c0_i32_0 = arith.constant 0 : i32
    %c0_i32_1 = arith.constant 0 : i32
    return %arg1, %c0_i32, %c0_i32_0 : i32, i32, i32
  }
  func.func @transform_7(%arg0: i32, %arg1: i32) -> (i32, i32, i32) {
    %c0_i32 = arith.constant 0 : i32
    %c0_i32_0 = arith.constant 0 : i32
    %c0_i32_1 = arith.constant 0 : i32
    return %arg1, %c0_i32, %c0_i32_0 : i32, i32, i32
  }
  func.func @transform_8(%arg0: i32, %arg1: i32) -> (i32, i32, i32) {
    %c0_i32 = arith.constant 0 : i32
    %c0_i32_0 = arith.constant 0 : i32
    %c0_i32_1 = arith.constant 0 : i32
    return %arg1, %c0_i32, %c0_i32_0 : i32, i32, i32
  }
  func.func @transform_9(%arg0: i32, %arg1: i32) -> (i32, i32, i32) {
    %c0_i32 = arith.constant 0 : i32
    %c0_i32_0 = arith.constant 0 : i32
    %c0_i32_1 = arith.constant 0 : i32
    return %arg1, %c0_i32, %c0_i32_0 : i32, i32, i32
  }
  func.func @transform_10(%arg0: i32, %arg1: i32) -> (i32, i32, i32) {
    %c0_i32 = arith.constant 0 : i32
    %c0_i32_0 = arith.constant 0 : i32
    %c0_i32_1 = arith.constant 0 : i32
    return %arg1, %c0_i32, %c0_i32_0 : i32, i32, i32
  }
  func.func @transform_11(%arg0: i32, %arg1: i32) -> (i32, i32, i32) {
    %c0_i32 = arith.constant 0 : i32
    %c0_i32_0 = arith.constant 0 : i32
    %c0_i32_1 = arith.constant 0 : i32
    return %arg1, %c0_i32, %c0_i32_0 : i32, i32, i32
  }
  func.func @transform_12(%arg0: i32, %arg1: i32) -> (i32, i32, i32) {
    %c0_i32 = arith.constant 0 : i32
    %c0_i32_0 = arith.constant 0 : i32
    %c0_i32_1 = arith.constant 0 : i32
    return %arg1, %c0_i32, %c0_i32_0 : i32, i32, i32
  }
  func.func @transform_13(%arg0: i32, %arg1: i32) -> (i32, i32, i32) {
    %c0_i32 = arith.constant 0 : i32
    %c0_i32_0 = arith.constant 0 : i32
    %c0_i32_1 = arith.constant 0 : i32
    return %arg1, %c0_i32, %c0_i32_0 : i32, i32, i32
  }
  func.func @transform_14(%arg0: i32, %arg1: i32) -> (i32, i32, i32) {
    %c0_i32 = arith.constant 0 : i32
    %c0_i32_0 = arith.constant 0 : i32
    %c0_i32_1 = arith.constant 0 : i32
    return %arg1, %c0_i32, %c0_i32_0 : i32, i32, i32
  }
  func.func @transform_15(%arg0: i32, %arg1: i32) -> (i32, i32, i32) {
    %c0_i32 = arith.constant 0 : i32
    %c0_i32_0 = arith.constant 0 : i32
    %c0_i32_1 = arith.constant 0 : i32
    return %arg1, %c0_i32, %c0_i32_0 : i32, i32, i32
  }
  func.func @transform_16(%arg0: i32, %arg1: i32) -> (i32, i32, i32) {
    %c0_i32 = arith.constant 0 : i32
    %c0_i32_0 = arith.constant 0 : i32
    %c0_i32_1 = arith.constant 0 : i32
    return %arg1, %c0_i32, %c0_i32_0 : i32, i32, i32
  }
  func.func @transform_17(%arg0: i32, %arg1: i32) -> (i32, i32, i32) {
    %c0_i32 = arith.constant 0 : i32
    %c0_i32_0 = arith.constant 0 : i32
    %c0_i32_1 = arith.constant 0 : i32
    return %arg1, %c0_i32, %c0_i32_0 : i32, i32, i32
  }
  func.func @transform_18(%arg0: i32, %arg1: i32) -> (i32, i32) {
    %c0_i32 = arith.constant 0 : i32
    %c0_i32_0 = arith.constant 0 : i32
    %c0_i32_1 = arith.constant 0 : i32
    return %c0_i32, %c0_i32_0 : i32, i32
  }
  func.func @transform_19(%arg0: i32, %arg1: i32) -> (i32, i32) {
    %c0_i32 = arith.constant 0 : i32
    %c0_i32_0 = arith.constant 0 : i32
    %c0_i32_1 = arith.constant 0 : i32
    return %c0_i32, %c0_i32_0 : i32, i32
  }
  func.func @transform_20(%arg0: i32, %arg1: i32) -> (i32, i32) {
    %c0_i32 = arith.constant 0 : i32
    %c0_i32_0 = arith.constant 0 : i32
    %c0_i32_1 = arith.constant 0 : i32
    return %c0_i32, %c0_i32_0 : i32, i32
  }
  func.func @transform_21(%arg0: i32, %arg1: i32) -> (i32, i32, i32) {
    %c0_i32 = arith.constant 0 : i32
    %c0_i32_0 = arith.constant 0 : i32
    %c0_i32_1 = arith.constant 0 : i32
    return %arg0, %c0_i32, %c0_i32_0 : i32, i32, i32
  }
}

</mosaic_0001>

<llo_original>
// kernel: tpu_custom_call.1
$region0: #{tpu_custom_call.1}
  #allocation0 [shape = 'u32[]', space=smem, size = 0x4, offset = 0x4, fixed_abs, tag = 'smem constant byte address 0x4 - core index']
  #allocation1 [shape = 'u32[144,128]{1,0:T(1,128)}', space=vmem, size = 0x12000, scoped, tag = 'internal scratch']
  #allocation2 [shape = 'f32[16,32]{1,0:T(8,128)}', space=vmem, size = 0x2000, scoped, tag = 'scratch operand']
  %s0 = inlined_call_operand.hbm [shape: f32[2,8,32], index: 0, kind: input, shape index: {}]
  %s1 = inlined_call_operand.hbm [shape: f32[8,32], index: 1, kind: input, shape index: {}]
  %s2 = inlined_call_operand.vmem [shape: bf16[2,32,32], index: 2, kind: input, shape index: {}]
  %s3 = inlined_call_operand.hbm [shape: f32[2,1,32], index: 3, kind: input, shape index: {}]
  %s4 = inlined_call_operand.vmem [shape: bf16[2,32,32], index: 4, kind: input, shape index: {}]
  %s5 = inlined_call_operand.hbm [shape: f32[2,1,32], index: 5, kind: input, shape index: {}]
  %s6 = inlined_call_operand.vmem [shape: bf16[2,32,32], index: 6, kind: input, shape index: {}]
  %s7 = inlined_call_operand.hbm [shape: f32[2,1,32], index: 7, kind: input, shape index: {}]
  %s8 = inlined_call_operand.hbm [shape: bf16[2,32,32], index: 8, kind: input, shape index: {}]
  %s9 = inlined_call_operand.hbm [shape: f32[2,1,32], index: 9, kind: input, shape index: {}]
  %s10 = inlined_call_operand.hbm [shape: bf16[2,32,64], index: 10, kind: input, shape index: {}]
  %s11 = inlined_call_operand.hbm [shape: f32[2,1,64], index: 11, kind: input, shape index: {}]
  %s12 = inlined_call_operand.vmem [shape: bf16[2,64,32], index: 12, kind: input, shape index: {}]
  %s13 = inlined_call_operand.hbm [shape: f32[2,1,32], index: 13, kind: input, shape index: {}]
  %s14 = inlined_call_operand.vmem [shape: f32[2,1,32], index: 14, kind: input, shape index: {}]
  %s15 = inlined_call_operand.vmem [shape: f32[2,1,32], index: 15, kind: input, shape index: {}]
  %s16 = inlined_call_operand.vmem [shape: f32[2,1,32], index: 16, kind: input, shape index: {}]
  %s17 = inlined_call_operand.vmem [shape: f32[2,1,32], index: 17, kind: input, shape index: {}]
  %s18 = inlined_call_operand.vmem [shape: f32[1,32], index: 18, kind: input, shape index: {}]
  %s19 = inlined_call_operand.vmem [shape: f32[1,32], index: 19, kind: input, shape index: {}]
  %s20 = inlined_call_operand.vmem [shape: bf16[32,128], index: 20, kind: input, shape index: {}]
  %s21 = inlined_call_operand.hbm [shape: f32[2,8,128], index: 21, kind: output, shape index: {}]
  %s22 = sld [smem:[#allocation0]]
  $region165: #{tpu_custom_call.1} parent=0
    _
  %s24 = ssub.s32 1, %s22
  %s25 = scalar_select 0, %s24, %s22
  $region1: #{tpu_custom_call.1} parent=0
    #allocation3 [shape = 'u8[8192]{0}', space=vmem, size = 0x2000, scoped, tag = 'input window, operand 0, single buffered']
    #allocation4 [shape = 's32[2]{0}', space=sflag, size = 0x8, scoped, tag = 'scoped memory for tpu_custom_call.1']
    #allocation5 [shape = 's32[2]{0}', space=sflag, size = 0x8, scoped, tag = 'scoped memory for tpu_custom_call.1']
    #allocation6 [shape = 'u8[4096]{0}', space=vmem, size = 0x1000, scoped, tag = 'input window, operand 1, single buffered']
    #allocation7 [shape = 's32[1]{0}', space=sflag, size = 0x4, scoped, tag = 'scoped memory for tpu_custom_call.1']
    #allocation8 [shape = 'u8[1024]{0}', space=vmem, size = 0x400, scoped, tag = 'input window, operand 3']
    #allocation9 [shape = 'u8[1024]{0}', space=vmem, size = 0x400, scoped, tag = 'input window, operand 5']
    #allocation10 [shape = 'u8[1024]{0}', space=vmem, size = 0x400, scoped, tag = 'input window, operand 7']
    #allocation11 [shape = 'u8[16384]{0}', space=vmem, size = 0x4000, scoped, tag = 'input window, operand 8']
    #allocation12 [shape = 'u8[1024]{0}', space=vmem, size = 0x400, scoped, tag = 'input window, operand 9']
    #allocation13 [shape = 'u8[16384]{0}', space=vmem, size = 0x4000, scoped, tag = 'input window, operand 10']
    #allocation14 [shape = 'u8[1024]{0}', space=vmem, size = 0x400, scoped, tag = 'input window, operand 11']
    #allocation15 [shape = 'u8[1024]{0}', space=vmem, size = 0x400, scoped, tag = 'input window, operand 13']
    #allocation16 [shape = 'u8[8192]{0}', space=vmem, size = 0x2000, scoped, tag = 'output window, operand 0, single buffered']
    %26 = vsyncpa [#allocation4], 0
    %27 = vsyncpa [#allocation7], 0
    %28 = vsyncpa [#allocation5], 0
    loop: start=0, step=1, limit=4
    $region2: #{tpu_custom_call.1} parent=1 // loop_pre_header
      _
    $region3: #{tpu_custom_call.1} parent=1 // loop_header
      %s30 = sphi 0, %s34
      %p31 = scmp.ge.s32.totalorder %s30, 4
      %s37 = sphi 0, %s49
      %s38 = sphi 0, %s45
      %s39 = sphi 0, %s37
      %s40 = sphi 0, %s38
      %s41 = sphi 0, %s39
      %s42 = sphi 0, %s40
      %s52 = sphi 0, %s54
      %s55 = sphi 0, %s52
      %s56 = sphi 0, %s55
      %s72 = sphi 0, %s56
      %s76 = sphi 0, %s76
      %s78 = sphi 0, %s76
      %s79 = sphi 0, %s78
      %s93 = sphi 0, %s79
      %s99 = sphi 0, %s101
      %s102 = sphi 0, %s99
      %s103 = sphi 0, %s102
      %s119 = sphi 0, %s103
      %s125 = sphi 0, %s127
      %s128 = sphi 0, %s125
      %s129 = sphi 0, %s128
      %s145 = sphi 0, %s129
      %s151 = sphi 0, %s153
      %s154 = sphi 0, %s151
      %s155 = sphi 0, %s154
      %s171 = sphi 0, %s155
      %s177 = sphi 0, %s179
      %s180 = sphi 0, %s177
      %s181 = sphi 0, %s180
      %s197 = sphi 0, %s181
      %s203 = sphi 0, %s205
      %s206 = sphi 0, %s203
      %s207 = sphi 0, %s206
      %s223 = sphi 0, %s207
      %s229 = sphi 0, %s231
      %s232 = sphi 0, %s229
      %s233 = sphi 0, %s232
      %s249 = sphi 0, %s233
      %s255 = sphi 0, %s257
      %s258 = sphi 0, %s255
      %s259 = sphi 0, %s258
      %s275 = sphi 0, %s259
      %s281 = sphi 0, %s283
      %s284 = sphi 0, %s281
      %s285 = sphi 0, %s284
      %s301 = sphi 0, %s285
      %s307 = sphi 0, %s309
      %s310 = sphi 0, %s307
      %s311 = sphi 0, %s310
      %s327 = sphi 0, %s311
      %s333 = sphi 0, %s335
      %s336 = sphi 0, %s333
      %s337 = sphi 0, %s336
      %s353 = sphi 0, %s337
      %s359 = sphi 0, %s361
      %s362 = sphi 0, %s359
      %s363 = sphi 0, %s362
      %s379 = sphi 0, %s363
      %s385 = sphi 0, %s387
      %s388 = sphi 0, %s385
      %s389 = sphi 0, %s388
      %s405 = sphi 0, %s389
      %s411 = sphi 0, %s413
      %s414 = sphi 0, %s411
      %s415 = sphi 0, %s414
      %s431 = sphi 0, %s415
      %s437 = sphi 0, %s439
      %s440 = sphi 0, %s437
      %s441 = sphi 0, %s440
      %s457 = sphi 0, %s441
      %s463 = sphi 0, %s465
      %s466 = sphi 0, %s463
      %s467 = sphi 0, %s466
      %s483 = sphi 0, %s467
      %s489 = sphi 0, %s491
      %s492 = sphi 0, %s489
      %s493 = sphi 0, %s492
      %s509 = sphi 0, %s493
      %s513 = sphi 0, %s513
      %s515 = sphi 0, %s513
      %s516 = sphi 0, %s515
      %s530 = sphi 0, %s516
      %s534 = sphi 0, %s534
      %s536 = sphi 0, %s534
      %s537 = sphi 0, %s536
      %s551 = sphi 0, %s537
      %s555 = sphi 0, %s555
      %s557 = sphi 0, %s555
      %s558 = sphi 0, %s557
      %s572 = sphi 0, %s558
      %s578 = sphi 0, %s580
      %s581 = sphi 0, %s578
      %s582 = sphi 0, %s581
      %s598 = sphi 0, %s582
    $region4: #{tpu_custom_call.1} parent=1 // loop_header_branch
      %33 = sbr.rel (%p31) target = $region8
    $region5: #{tpu_custom_call.1} parent=1 // loop_body
      %s35 = ssub.s32 %s30, 1
      %s36 = ssub.s32 %s30, 2
      %s43 = sadd.s32 1, %s38
      %p44 = scmp.ge.s32.totalorder %s43, 2
      %s45 = scalar_select %p44, 0, %s43
      %s46 = sadd.s32 1, %s37
      %s47 = scalar_select %p44, %s46, %s37
      %p48 = scmp.ge.s32.totalorder %s47, 1
      %s49 = scalar_select %p48, 0, %s47
      %s50 = ssub.s32 %s37, %s49
      %p51 = scmp.eq.s32.totalorder %s50, 0
      %s53 = sadd.s32 %s52, 1
      %s54 = scalar_select %p51, %s52, %s53
      %p57 = pneg %p51
      %p58 = scmp.eq.s32.totalorder %s30, 1
      %p59 = por %p57, %p58
      %p60 = scmp.ne.s32.totalorder %s52, %s55
      %p61 = scmp.eq.s32.totalorder %s30, 0
      %p62 = por %p60, %p61
      %p63 = scmp.ne.s32.totalorder %s52, %s55
      %p64 = scmp.eq.s32.totalorder %s35, 1
      %p65 = por %p63, %p64
      %p66 = scmp.ne.s32.totalorder %s55, %s56
      %p67 = scmp.eq.s32.totalorder %s35, 0
      %p68 = por %p66, %p67
      %p69 = scmp.ne.s32.totalorder %s55, %s56
      %p70 = scmp.eq.s32.totalorder %s36, 1
      %p71 = por %p69, %p70
      %p73 = scmp.ne.s32.totalorder %s56, %s72
      %p74 = scmp.eq.s32.totalorder %s36, 0
      %p75 = por %p73, %p74
      %s77 = sadd.s32 %s76, 1
      %p80 = scmp.eq.s32.totalorder %s30, 1
      %p81 = scmp.ne.s32.totalorder %s76, %s78
      %p82 = scmp.eq.s32.totalorder %s30, 0
      %p83 = por %p81, %p82
      %p84 = scmp.ne.s32.totalorder %s76, %s78
      %p85 = scmp.eq.s32.totalorder %s35, 1
      %p86 = por %p84, %p85
      %p87 = scmp.ne.s32.totalorder %s78, %s79
      %p88 = scmp.eq.s32.totalorder %s35, 0
      %p89 = por %p87, %p88
      %p90 = scmp.ne.s32.totalorder %s78, %s79
      %p91 = scmp.eq.s32.totalorder %s36, 1
      %p92 = por %p90, %p91
      %p94 = scmp.ne.s32.totalorder %s79, %s93
      %p95 = scmp.eq.s32.totalorder %s36, 0
      %p96 = por %p94, %p95
      %s97 = ssub.s32 %s38, %s45
      %p98 = scmp.eq.s32.totalorder %s97, 0
      %s100 = sadd.s32 %s99, 1
      %s101 = scalar_select %p98, %s99, %s100
      %p104 = pneg %p98
      %p105 = scmp.eq.s32.totalorder %s30, 1
      %p106 = por %p104, %p105
      %p107 = scmp.ne.s32.totalorder %s99, %s102
      %p108 = scmp.eq.s32.totalorder %s30, 0
      %p109 = por %p107, %p108
      %p110 = scmp.ne.s32.totalorder %s99, %s102
      %p111 = scmp.eq.s32.totalorder %s35, 1
      %p112 = por %p110, %p111
      %p113 = scmp.ne.s32.totalorder %s102, %s103
      %p114 = scmp.eq.s32.totalorder %s35, 0
      %p115 = por %p113, %p114
      %p116 = scmp.ne.s32.totalorder %s102, %s103
      %p117 = scmp.eq.s32.totalorder %s36, 1
      %p118 = por %p116, %p117
      %p120 = scmp.ne.s32.totalorder %s103, %s119
      %p121 = scmp.eq.s32.totalorder %s36, 0
      %p122 = por %p120, %p121
      %s123 = ssub.s32 %s38, %s45
      %p124 = scmp.eq.s32.totalorder %s123, 0
      %s126 = sadd.s32 %s125, 1
      %s127 = scalar_select %p124, %s125, %s126
      %p130 = pneg %p124
      %p131 = scmp.eq.s32.totalorder %s30, 1
      %p132 = por %p130, %p131
      %p133 = scmp.ne.s32.totalorder %s125, %s128
      %p134 = scmp.eq.s32.totalorder %s30, 0
      %p135 = por %p133, %p134
      %p136 = scmp.ne.s32.totalorder %s125, %s128
      %p137 = scmp.eq.s32.totalorder %s35, 1
      %p138 = por %p136, %p137
      %p139 = scmp.ne.s32.totalorder %s128, %s129
      %p140 = scmp.eq.s32.totalorder %s35, 0
      %p141 = por %p139, %p140
      %p142 = scmp.ne.s32.totalorder %s128, %s129
      %p143 = scmp.eq.s32.totalorder %s36, 1
      %p144 = por %p142, %p143
      %p146 = scmp.ne.s32.totalorder %s129, %s145
      %p147 = scmp.eq.s32.totalorder %s36, 0
      %p148 = por %p146, %p147
      %s149 = ssub.s32 %s38, %s45
      %p150 = scmp.eq.s32.totalorder %s149, 0
      %s152 = sadd.s32 %s151, 1
      %s153 = scalar_select %p150, %s151, %s152
      %p156 = pneg %p150
      %p157 = scmp.eq.s32.totalorder %s30, 1
      %p158 = por %p156, %p157
      %p159 = scmp.ne.s32.totalorder %s151, %s154
      %p160 = scmp.eq.s32.totalorder %s30, 0
      %p161 = por %p159, %p160
      %p162 = scmp.ne.s32.totalorder %s151, %s154
      %p163 = scmp.eq.s32.totalorder %s35, 1
      %p164 = por %p162, %p163
      %p165 = scmp.ne.s32.totalorder %s154, %s155
      %p166 = scmp.eq.s32.totalorder %s35, 0
      %p167 = por %p165, %p166
      %p168 = scmp.ne.s32.totalorder %s154, %s155
      %p169 = scmp.eq.s32.totalorder %s36, 1
      %p170 = por %p168, %p169
      %p172 = scmp.ne.s32.totalorder %s155, %s171
      %p173 = scmp.eq.s32.totalorder %s36, 0
      %p174 = por %p172, %p173
      %s175 = ssub.s32 %s38, %s45
      %p176 = scmp.eq.s32.totalorder %s175, 0
      %s178 = sadd.s32 %s177, 1
      %s179 = scalar_select %p176, %s177, %s178
      %p182 = pneg %p176
      %p183 = scmp.eq.s32.totalorder %s30, 1
      %p184 = por %p182, %p183
      %p185 = scmp.ne.s32.totalorder %s177, %s180
      %p186 = scmp.eq.s32.totalorder %s30, 0
      %p187 = por %p185, %p186
      %p188 = scmp.ne.s32.totalorder %s177, %s180
      %p189 = scmp.eq.s32.totalorder %s35, 1
      %p190 = por %p188, %p189
      %p191 = scmp.ne.s32.totalorder %s180, %s181
      %p192 = scmp.eq.s32.totalorder %s35, 0
      %p193 = por %p191, %p192
      %p194 = scmp.ne.s32.totalorder %s180, %s181
      %p195 = scmp.eq.s32.totalorder %s36, 1
      %p196 = por %p194, %p195
      %p198 = scmp.ne.s32.totalorder %s181, %s197
      %p199 = scmp.eq.s32.totalorder %s36, 0
      %p200 = por %p198, %p199
      %s201 = ssub.s32 %s38, %s45
      %p202 = scmp.eq.s32.totalorder %s201, 0
      %s204 = sadd.s32 %s203, 1
      %s205 = scalar_select %p202, %s203, %s204
      %p208 = pneg %p202
      %p209 = scmp.eq.s32.totalorder %s30, 1
      %p210 = por %p208, %p209
      %p211 = scmp.ne.s32.totalorder %s203, %s206
      %p212 = scmp.eq.s32.totalorder %s30, 0
      %p213 = por %p211, %p212
      %p214 = scmp.ne.s32.totalorder %s203, %s206
      %p215 = scmp.eq.s32.totalorder %s35, 1
      %p216 = por %p214, %p215
      %p217 = scmp.ne.s32.totalorder %s206, %s207
      %p218 = scmp.eq.s32.totalorder %s35, 0
      %p219 = por %p217, %p218
      %p220 = scmp.ne.s32.totalorder %s206, %s207
      %p221 = scmp.eq.s32.totalorder %s36, 1
      %p222 = por %p220, %p221
      %p224 = scmp.ne.s32.totalorder %s207, %s223
      %p225 = scmp.eq.s32.totalorder %s36, 0
      %p226 = por %p224, %p225
      %s227 = ssub.s32 %s38, %s45
      %p228 = scmp.eq.s32.totalorder %s227, 0
      %s230 = sadd.s32 %s229, 1
      %s231 = scalar_select %p228, %s229, %s230
      %p234 = pneg %p228
      %p235 = scmp.eq.s32.totalorder %s30, 1
      %p236 = por %p234, %p235
      %p237 = scmp.ne.s32.totalorder %s229, %s232
      %p238 = scmp.eq.s32.totalorder %s30, 0
      %p239 = por %p237, %p238
      %p240 = scmp.ne.s32.totalorder %s229, %s232
      %p241 = scmp.eq.s32.totalorder %s35, 1
      %p242 = por %p240, %p241
      %p243 = scmp.ne.s32.totalorder %s232, %s233
      %p244 = scmp.eq.s32.totalorder %s35, 0
      %p245 = por %p243, %p244
      %p246 = scmp.ne.s32.totalorder %s232, %s233
      %p247 = scmp.eq.s32.totalorder %s36, 1
      %p248 = por %p246, %p247
      %p250 = scmp.ne.s32.totalorder %s233, %s249
      %p251 = scmp.eq.s32.totalorder %s36, 0
      %p252 = por %p250, %p251
      %s253 = ssub.s32 %s38, %s45
      %p254 = scmp.eq.s32.totalorder %s253, 0
      %s256 = sadd.s32 %s255, 1
      %s257 = scalar_select %p254, %s255, %s256
      %p260 = pneg %p254
      %p261 = scmp.eq.s32.totalorder %s30, 1
      %p262 = por %p260, %p261
      %p263 = scmp.ne.s32.totalorder %s255, %s258
      %p264 = scmp.eq.s32.totalorder %s30, 0
      %p265 = por %p263, %p264
      %p266 = scmp.ne.s32.totalorder %s255, %s258
      %p267 = scmp.eq.s32.totalorder %s35, 1
      %p268 = por %p266, %p267
      %p269 = scmp.ne.s32.totalorder %s258, %s259
      %p270 = scmp.eq.s32.totalorder %s35, 0
      %p271 = por %p269, %p270
      %p272 = scmp.ne.s32.totalorder %s258, %s259
      %p273 = scmp.eq.s32.totalorder %s36, 1
      %p274 = por %p272, %p273
      %p276 = scmp.ne.s32.totalorder %s259, %s275
      %p277 = scmp.eq.s32.totalorder %s36, 0
      %p278 = por %p276, %p277
      %s279 = ssub.s32 %s38, %s45
      %p280 = scmp.eq.s32.totalorder %s279, 0
      %s282 = sadd.s32 %s281, 1
      %s283 = scalar_select %p280, %s281, %s282
      %p286 = pneg %p280
      %p287 = scmp.eq.s32.totalorder %s30, 1
      %p288 = por %p286, %p287
      %p289 = scmp.ne.s32.totalorder %s281, %s284
      %p290 = scmp.eq.s32.totalorder %s30, 0
      %p291 = por %p289, %p290
      %p292 = scmp.ne.s32.totalorder %s281, %s284
      %p293 = scmp.eq.s32.totalorder %s35, 1
      %p294 = por %p292, %p293
      %p295 = scmp.ne.s32.totalorder %s284, %s285
      %p296 = scmp.eq.s32.totalorder %s35, 0
      %p297 = por %p295, %p296
      %p298 = scmp.ne.s32.totalorder %s284, %s285
      %p299 = scmp.eq.s32.totalorder %s36, 1
      %p300 = por %p298, %p299
      %p302 = scmp.ne.s32.totalorder %s285, %s301
      %p303 = scmp.eq.s32.totalorder %s36, 0
      %p304 = por %p302, %p303
      %s305 = ssub.s32 %s38, %s45
      %p306 = scmp.eq.s32.totalorder %s305, 0
      %s308 = sadd.s32 %s307, 1
      %s309 = scalar_select %p306, %s307, %s308
      %p312 = pneg %p306
      %p313 = scmp.eq.s32.totalorder %s30, 1
      %p314 = por %p312, %p313
      %p315 = scmp.ne.s32.totalorder %s307, %s310
      %p316 = scmp.eq.s32.totalorder %s30, 0
      %p317 = por %p315, %p316
      %p318 = scmp.ne.s32.totalorder %s307, %s310
      %p319 = scmp.eq.s32.totalorder %s35, 1
      %p320 = por %p318, %p319
      %p321 = scmp.ne.s32.totalorder %s310, %s311
      %p322 = scmp.eq.s32.totalorder %s35, 0
      %p323 = por %p321, %p322
      %p324 = scmp.ne.s32.totalorder %s310, %s311
      %p325 = scmp.eq.s32.totalorder %s36, 1
      %p326 = por %p324, %p325
      %p328 = scmp.ne.s32.totalorder %s311, %s327
      %p329 = scmp.eq.s32.totalorder %s36, 0
      %p330 = por %p328, %p329
      %s331 = ssub.s32 %s38, %s45
      %p332 = scmp.eq.s32.totalorder %s331, 0
      %s334 = sadd.s32 %s333, 1
      %s335 = scalar_select %p332, %s333, %s334
      %p338 = pneg %p332
      %p339 = scmp.eq.s32.totalorder %s30, 1
      %p340 = por %p338, %p339
      %p341 = scmp.ne.s32.totalorder %s333, %s336
      %p342 = scmp.eq.s32.totalorder %s30, 0
      %p343 = por %p341, %p342
      %p344 = scmp.ne.s32.totalorder %s333, %s336
      %p345 = scmp.eq.s32.totalorder %s35, 1
      %p346 = por %p344, %p345
      %p347 = scmp.ne.s32.totalorder %s336, %s337
      %p348 = scmp.eq.s32.totalorder %s35, 0
      %p349 = por %p347, %p348
      %p350 = scmp.ne.s32.totalorder %s336, %s337
      %p351 = scmp.eq.s32.totalorder %s36, 1
      %p352 = por %p350, %p351
      %p354 = scmp.ne.s32.totalorder %s337, %s353
      %p355 = scmp.eq.s32.totalorder %s36, 0
      %p356 = por %p354, %p355
      %s357 = ssub.s32 %s38, %s45
      %p358 = scmp.eq.s32.totalorder %s357, 0
      %s360 = sadd.s32 %s359, 1
      %s361 = scalar_select %p358, %s359, %s360
      %p364 = pneg %p358
      %p365 = scmp.eq.s32.totalorder %s30, 1
      %p366 = por %p364, %p365
      %p367 = scmp.ne.s32.totalorder %s359, %s362
      %p368 = scmp.eq.s32.totalorder %s30, 0
      %p369 = por %p367, %p368
      %p370 = scmp.ne.s32.totalorder %s359, %s362
      %p371 = scmp.eq.s32.totalorder %s35, 1
      %p372 = por %p370, %p371
      %p373 = scmp.ne.s32.totalorder %s362, %s363
      %p374 = scmp.eq.s32.totalorder %s35, 0
      %p375 = por %p373, %p374
      %p376 = scmp.ne.s32.totalorder %s362, %s363
      %p377 = scmp.eq.s32.totalorder %s36, 1
      %p378 = por %p376, %p377
      %p380 = scmp.ne.s32.totalorder %s363, %s379
      %p381 = scmp.eq.s32.totalorder %s36, 0
      %p382 = por %p380, %p381
      %s383 = ssub.s32 %s38, %s45
      %p384 = scmp.eq.s32.totalorder %s383, 0
      %s386 = sadd.s32 %s385, 1
      %s387 = scalar_select %p384, %s385, %s386
      %p390 = pneg %p384
      %p391 = scmp.eq.s32.totalorder %s30, 1
      %p392 = por %p390, %p391
      %p393 = scmp.ne.s32.totalorder %s385, %s388
      %p394 = scmp.eq.s32.totalorder %s30, 0
      %p395 = por %p393, %p394
      %p396 = scmp.ne.s32.totalorder %s385, %s388
      %p397 = scmp.eq.s32.totalorder %s35, 1
      %p398 = por %p396, %p397
      %p399 = scmp.ne.s32.totalorder %s388, %s389
      %p400 = scmp.eq.s32.totalorder %s35, 0
      %p401 = por %p399, %p400
      %p402 = scmp.ne.s32.totalorder %s388, %s389
      %p403 = scmp.eq.s32.totalorder %s36, 1
      %p404 = por %p402, %p403
      %p406 = scmp.ne.s32.totalorder %s389, %s405
      %p407 = scmp.eq.s32.totalorder %s36, 0
      %p408 = por %p406, %p407
      %s409 = ssub.s32 %s38, %s45
      %p410 = scmp.eq.s32.totalorder %s409, 0
      %s412 = sadd.s32 %s411, 1
      %s413 = scalar_select %p410, %s411, %s412
      %p416 = pneg %p410
      %p417 = scmp.eq.s32.totalorder %s30, 1
      %p418 = por %p416, %p417
      %p419 = scmp.ne.s32.totalorder %s411, %s414
      %p420 = scmp.eq.s32.totalorder %s30, 0
      %p421 = por %p419, %p420
      %p422 = scmp.ne.s32.totalorder %s411, %s414
      %p423 = scmp.eq.s32.totalorder %s35, 1
      %p424 = por %p422, %p423
      %p425 = scmp.ne.s32.totalorder %s414, %s415
      %p426 = scmp.eq.s32.totalorder %s35, 0
      %p427 = por %p425, %p426
      %p428 = scmp.ne.s32.totalorder %s414, %s415
      %p429 = scmp.eq.s32.totalorder %s36, 1
      %p430 = por %p428, %p429
      %p432 = scmp.ne.s32.totalorder %s415, %s431
      %p433 = scmp.eq.s32.totalorder %s36, 0
      %p434 = por %p432, %p433
      %s435 = ssub.s32 %s38, %s45
      %p436 = scmp.eq.s32.totalorder %s435, 0
      %s438 = sadd.s32 %s437, 1
      %s439 = scalar_select %p436, %s437, %s438
      %p442 = pneg %p436
      %p443 = scmp.eq.s32.totalorder %s30, 1
      %p444 = por %p442, %p443
      %p445 = scmp.ne.s32.totalorder %s437, %s440
      %p446 = scmp.eq.s32.totalorder %s30, 0
      %p447 = por %p445, %p446
      %p448 = scmp.ne.s32.totalorder %s437, %s440
      %p449 = scmp.eq.s32.totalorder %s35, 1
      %p450 = por %p448, %p449
      %p451 = scmp.ne.s32.totalorder %s440, %s441
      %p452 = scmp.eq.s32.totalorder %s35, 0
      %p453 = por %p451, %p452
      %p454 = scmp.ne.s32.totalorder %s440, %s441
      %p455 = scmp.eq.s32.totalorder %s36, 1
      %p456 = por %p454, %p455
      %p458 = scmp.ne.s32.totalorder %s441, %s457
      %p459 = scmp.eq.s32.totalorder %s36, 0
      %p460 = por %p458, %p459
      %s461 = ssub.s32 %s38, %s45
      %p462 = scmp.eq.s32.totalorder %s461, 0
      %s464 = sadd.s32 %s463, 1
      %s465 = scalar_select %p462, %s463, %s464
      %p468 = pneg %p462
      %p469 = scmp.eq.s32.totalorder %s30, 1
      %p470 = por %p468, %p469
      %p471 = scmp.ne.s32.totalorder %s463, %s466
      %p472 = scmp.eq.s32.totalorder %s30, 0
      %p473 = por %p471, %p472
      %p474 = scmp.ne.s32.totalorder %s463, %s466
      %p475 = scmp.eq.s32.totalorder %s35, 1
      %p476 = por %p474, %p475
      %p477 = scmp.ne.s32.totalorder %s466, %s467
      %p478 = scmp.eq.s32.totalorder %s35, 0
      %p479 = por %p477, %p478
      %p480 = scmp.ne.s32.totalorder %s466, %s467
      %p481 = scmp.eq.s32.totalorder %s36, 1
      %p482 = por %p480, %p481
      %p484 = scmp.ne.s32.totalorder %s467, %s483
      %p485 = scmp.eq.s32.totalorder %s36, 0
      %p486 = por %p484, %p485
      %s487 = ssub.s32 %s38, %s45
      %p488 = scmp.eq.s32.totalorder %s487, 0
      %s490 = sadd.s32 %s489, 1
      %s491 = scalar_select %p488, %s489, %s490
      %p494 = pneg %p488
      %p495 = scmp.eq.s32.totalorder %s30, 1
      %p496 = por %p494, %p495
      %p497 = scmp.ne.s32.totalorder %s489, %s492
      %p498 = scmp.eq.s32.totalorder %s30, 0
      %p499 = por %p497, %p498
      %p500 = scmp.ne.s32.totalorder %s489, %s492
      %p501 = scmp.eq.s32.totalorder %s35, 1
      %p502 = por %p500, %p501
      %p503 = scmp.ne.s32.totalorder %s492, %s493
      %p504 = scmp.eq.s32.totalorder %s35, 0
      %p505 = por %p503, %p504
      %p506 = scmp.ne.s32.totalorder %s492, %s493
      %p507 = scmp.eq.s32.totalorder %s36, 1
      %p508 = por %p506, %p507
      %p510 = scmp.ne.s32.totalorder %s493, %s509
      %p511 = scmp.eq.s32.totalorder %s36, 0
      %p512 = por %p510, %p511
      %s514 = sadd.s32 %s513, 1
      %p517 = scmp.eq.s32.totalorder %s30, 1
      %p518 = scmp.ne.s32.totalorder %s513, %s515
      %p519 = scmp.eq.s32.totalorder %s30, 0
      %p520 = por %p518, %p519
      %p521 = scmp.ne.s32.totalorder %s513, %s515
      %p522 = scmp.eq.s32.totalorder %s35, 1
      %p523 = por %p521, %p522
      %p524 = scmp.ne.s32.totalorder %s515, %s516
      %p525 = scmp.eq.s32.totalorder %s35, 0
      %p526 = por %p524, %p525
      %p527 = scmp.ne.s32.totalorder %s515, %s516
      %p528 = scmp.eq.s32.totalorder %s36, 1
      %p529 = por %p527, %p528
      %p531 = scmp.ne.s32.totalorder %s516, %s530
      %p532 = scmp.eq.s32.totalorder %s36, 0
      %p533 = por %p531, %p532
      %s535 = sadd.s32 %s534, 1
      %p538 = scmp.eq.s32.totalorder %s30, 1
      %p539 = scmp.ne.s32.totalorder %s534, %s536
      %p540 = scmp.eq.s32.totalorder %s30, 0
      %p541 = por %p539, %p540
      %p542 = scmp.ne.s32.totalorder %s534, %s536
      %p543 = scmp.eq.s32.totalorder %s35, 1
      %p544 = por %p542, %p543
      %p545 = scmp.ne.s32.totalorder %s536, %s537
      %p546 = scmp.eq.s32.totalorder %s35, 0
      %p547 = por %p545, %p546
      %p548 = scmp.ne.s32.totalorder %s536, %s537
      %p549 = scmp.eq.s32.totalorder %s36, 1
      %p550 = por %p548, %p549
      %p552 = scmp.ne.s32.totalorder %s537, %s551
      %p553 = scmp.eq.s32.totalorder %s36, 0
      %p554 = por %p552, %p553
      %s556 = sadd.s32 %s555, 1
      %p559 = scmp.eq.s32.totalorder %s30, 1
      %p560 = scmp.ne.s32.totalorder %s555, %s557
      %p561 = scmp.eq.s32.totalorder %s30, 0
      %p562 = por %p560, %p561
      %p563 = scmp.ne.s32.totalorder %s555, %s557
      %p564 = scmp.eq.s32.totalorder %s35, 1
      %p565 = por %p563, %p564
      %p566 = scmp.ne.s32.totalorder %s557, %s558
      %p567 = scmp.eq.s32.totalorder %s35, 0
      %p568 = por %p566, %p567
      %p569 = scmp.ne.s32.totalorder %s557, %s558
      %p570 = scmp.eq.s32.totalorder %s36, 1
      %p571 = por %p569, %p570
      %p573 = scmp.ne.s32.totalorder %s558, %s572
      %p574 = scmp.eq.s32.totalorder %s36, 0
      %p575 = por %p573, %p574
      %s576 = ssub.s32 %s37, %s49
      %p577 = scmp.eq.s32.totalorder %s576, 0
      %s579 = sadd.s32 %s578, 1
      %s580 = scalar_select %p577, %s578, %s579
      %p583 = pneg %p577
      %p584 = scmp.eq.s32.totalorder %s30, 1
      %p585 = por %p583, %p584
      %p586 = scmp.ne.s32.totalorder %s578, %s581
      %p587 = scmp.eq.s32.totalorder %s30, 0
      %p588 = por %p586, %p587
      %p589 = scmp.ne.s32.totalorder %s578, %s581
      %p590 = scmp.eq.s32.totalorder %s35, 1
      %p591 = por %p589, %p590
      %p592 = scmp.ne.s32.totalorder %s581, %s582
      %p593 = scmp.eq.s32.totalorder %s35, 0
      %p594 = por %p592, %p593
      %p595 = scmp.ne.s32.totalorder %s581, %s582
      %p596 = scmp.eq.s32.totalorder %s36, 1
      %p597 = por %p595, %p596
      %p599 = scmp.ne.s32.totalorder %s582, %s598
      %p600 = scmp.eq.s32.totalorder %s36, 0
      %p601 = por %p599, %p600
      %p602 = scmp.le.s32.totalorder 1, %s30
      %p603 = scmp.lt.s32.totalorder %s30, 3
      %p604 = pnand %p602, %p603
      %p605 = pneg %p604
      // Predicated region
      $region9: #{tpu_custom_call.1} parent=5 // pred_check
        _
      $region10: #{tpu_custom_call.1} parent=5 // pred_check_branch
        %607 = sbr.rel (%p604) target = $region12
      $region11: #{tpu_custom_call.1} parent=5 // pred_region
        %s608 = ssub.s32 %s30, 1
        // Predicated region
        $region13: #{tpu_custom_call.1} parent=11 // pred_check
          %p609 = pneg %p68
        $region14: #{tpu_custom_call.1} parent=11 // pred_check_branch
          %611 = sbr.rel (%p609) target = $region16
        $region15: #{tpu_custom_call.1} parent=11 // pred_region
          %s612 = smul.u32 2, %s39
          %s614 = ssub.s32 256, 256
          %615 = vsyncadd [#allocation4], %s614
          %s616 = smul.addr %s612, 128
          %s617 = scalar_lea.hbm %s0, %s616
          %s618 = sshll.u32 [#allocation3], 4
          %s619 = int_to_ptr.vmem [resolvable:$true] %s618
          %624 = dma.hbm_to_vmem [thread:$0]  %s617, 256, %s619, [#allocation4], 128, 128, 8
        $region16: #{tpu_custom_call.1} parent=11 // pred_fallthru
          _
        // Predicated region
        $region17: #{tpu_custom_call.1} parent=11 // pred_check
          %p625 = pneg %p89
        $region18: #{tpu_custom_call.1} parent=11 // pred_check_branch
          %627 = sbr.rel (%p625) target = $region20
        $region19: #{tpu_custom_call.1} parent=11 // pred_region
          %s629 = ssub.s32 128, 128
          %630 = vsyncadd [#allocation7], %s629
          %s632 = sshll.u32 [#allocation6], 4
          %s633 = int_to_ptr.vmem [resolvable:$true] %s632
          %635 = dma.hbm_to_vmem [thread:$0]  %s1, 128, %s633, [#allocation7]
        $region20: #{tpu_custom_call.1} parent=11 // pred_fallthru
          _
        // Predicated region
        $region21: #{tpu_custom_call.1} parent=11 // pred_check
          %p636 = pneg %p526
        $region22: #{tpu_custom_call.1} parent=11 // pred_check_branch
          %638 = sbr.rel (%p636) target = $region24
        $region23: #{tpu_custom_call.1} parent=11 // pred_region
          _
        $region24: #{tpu_custom_call.1} parent=11 // pred_fallthru
          _
        // Predicated region
        $region25: #{tpu_custom_call.1} parent=11 // pred_check
          %p639 = pneg %p547
        $region26: #{tpu_custom_call.1} parent=11 // pred_check_branch
          %641 = sbr.rel (%p639) target = $region28
        $region27: #{tpu_custom_call.1} parent=11 // pred_region
          _
        $region28: #{tpu_custom_call.1} parent=11 // pred_fallthru
          _
        // Predicated region
        $region29: #{tpu_custom_call.1} parent=11 // pred_check
          %p642 = pneg %p568
        $region30: #{tpu_custom_call.1} parent=11 // pred_check_branch
          %644 = sbr.rel (%p642) target = $region32
        $region31: #{tpu_custom_call.1} parent=11 // pred_region
          _
        $region32: #{tpu_custom_call.1} parent=11 // pred_fallthru
          _
      $region12: #{tpu_custom_call.1} parent=5 // pred_fallthru
        _
      %p645 = scmp.lt.s32.totalorder %s30, 2
      // Predicated region
      $region33: #{tpu_custom_call.1} parent=5 // pred_check
        %p646 = pneg %p645
      $region34: #{tpu_custom_call.1} parent=5 // pred_check_branch
        %648 = sbr.rel (%p646) target = $region36
      $region35: #{tpu_custom_call.1} parent=5 // pred_region
        // Predicated region
        $region37: #{tpu_custom_call.1} parent=35 // pred_check
          %p649 = pneg %p109
        $region38: #{tpu_custom_call.1} parent=35 // pred_check_branch
          %651 = sbr.rel (%p649) target = $region40
        $region39: #{tpu_custom_call.1} parent=35 // pred_region
          %p652 = scmp.lt.s32.totalorder %s38, 1
          %s653 = scalar_select %p652, %s38, 1
          %s654 = smul.addr %s653, 4
          %s655 = smul.addr %s654, 4
          %s656 = scalar_lea.vmem %s2, %s655
        $region40: #{tpu_custom_call.1} parent=35 // pred_fallthru
          _
        // Predicated region
        $region41: #{tpu_custom_call.1} parent=35 // pred_check
          %p657 = pneg %p135
        $region42: #{tpu_custom_call.1} parent=35 // pred_check_branch
          %659 = sbr.rel (%p657) target = $region44
        $region43: #{tpu_custom_call.1} parent=35 // pred_region
          %s660 = sand.u32 %s30, 1
          %s661 = scalar_lea.sflag [#allocation4], %s660
          %s662 = sand.u32 %s125, 1
          %s663 = scalar_lea.vmem [#allocation8], %s662
          %s665 = ssub.s32 16, 16
          %666 = vsyncadd %s661, %s665
          %s667 = smul.addr %s38, 16
          %s668 = scalar_lea.hbm %s3, %s667
          %s670 = sshll.u32 %s663, 4
          %s671 = int_to_ptr.vmem [resolvable:$true] %s670
          %673 = dma.hbm_to_vmem [thread:$0]  %s668, 16, %s671, %s661
        $region44: #{tpu_custom_call.1} parent=35 // pred_fallthru
          _
        // Predicated region
        $region45: #{tpu_custom_call.1} parent=35 // pred_check
          %p674 = pneg %p161
        $region46: #{tpu_custom_call.1} parent=35 // pred_check_branch
          %676 = sbr.rel (%p674) target = $region48
        $region47: #{tpu_custom_call.1} parent=35 // pred_region
          %p677 = scmp.lt.s32.totalorder %s38, 1
          %s678 = scalar_select %p677, %s38, 1
          %s679 = smul.addr %s678, 4
          %s680 = smul.addr %s679, 4
          %s681 = scalar_lea.vmem %s4, %s680
        $region48: #{tpu_custom_call.1} parent=35 // pred_fallthru
          _
        // Predicated region
        $region49: #{tpu_custom_call.1} parent=35 // pred_check
          %p682 = pneg %p187
        $region50: #{tpu_custom_call.1} parent=35 // pred_check_branch
          %684 = sbr.rel (%p682) target = $region52
        $region51: #{tpu_custom_call.1} parent=35 // pred_region
          %s685 = sand.u32 %s30, 1
          %s686 = scalar_lea.sflag [#allocation4], %s685
          %s687 = sand.u32 %s177, 1
          %s688 = scalar_lea.vmem [#allocation9], %s687
          %s690 = ssub.s32 16, 16
          %691 = vsyncadd %s686, %s690
          %s692 = smul.addr %s38, 16
          %s693 = scalar_lea.hbm %s5, %s692
          %s695 = sshll.u32 %s688, 4
          %s696 = int_to_ptr.vmem [resolvable:$true] %s695
          %698 = dma.hbm_to_vmem [thread:$0]  %s693, 16, %s696, %s686
        $region52: #{tpu_custom_call.1} parent=35 // pred_fallthru
          _
        // Predicated region
        $region53: #{tpu_custom_call.1} parent=35 // pred_check
          %p699 = pneg %p213
        $region54: #{tpu_custom_call.1} parent=35 // pred_check_branch
          %701 = sbr.rel (%p699) target = $region56
        $region55: #{tpu_custom_call.1} parent=35 // pred_region
          %p702 = scmp.lt.s32.totalorder %s38, 1
          %s703 = scalar_select %p702, %s38, 1
          %s704 = smul.addr %s703, 4
          %s705 = smul.addr %s704, 4
          %s706 = scalar_lea.vmem %s6, %s705
        $region56: #{tpu_custom_call.1} parent=35 // pred_fallthru
          _
        // Predicated region
        $region57: #{tpu_custom_call.1} parent=35 // pred_check
          %p707 = pneg %p239
        $region58: #{tpu_custom_call.1} parent=35 // pred_check_branch
          %709 = sbr.rel (%p707) target = $region60
        $region59: #{tpu_custom_call.1} parent=35 // pred_region
          %s710 = sand.u32 %s30, 1
          %s711 = scalar_lea.sflag [#allocation4], %s710
          %s712 = sand.u32 %s229, 1
          %s713 = scalar_lea.vmem [#allocation10], %s712
          %s715 = ssub.s32 16, 16
          %716 = vsyncadd %s711, %s715
          %s717 = smul.addr %s38, 16
          %s718 = scalar_lea.hbm %s7, %s717
          %s720 = sshll.u32 %s713, 4
          %s721 = int_to_ptr.vmem [resolvable:$true] %s720
          %723 = dma.hbm_to_vmem [thread:$0]  %s718, 16, %s721, %s711
        $region60: #{tpu_custom_call.1} parent=35 // pred_fallthru
          _
        // Predicated region
        $region61: #{tpu_custom_call.1} parent=35 // pred_check
          %p724 = pneg %p265
        $region62: #{tpu_custom_call.1} parent=35 // pred_check_branch
          %726 = sbr.rel (%p724) target = $region64
        $region63: #{tpu_custom_call.1} parent=35 // pred_region
          %s727 = sand.u32 %s30, 1
          %s728 = scalar_lea.sflag [#allocation4], %s727
          %s729 = sand.u32 %s255, 1
          %s730 = smul.addr %s729, 16
          %s731 = scalar_lea.vmem [#allocation11], %s730
          %s733 = ssub.s32 256, 256
          %734 = vsyncadd %s728, %s733
          %s735 = smul.addr %s38, 4
          %s736 = smul.addr %s735, 64
          %s737 = scalar_lea.hbm %s8, %s736
          %s738 = sshll.u32 %s731, 4
          %s739 = int_to_ptr.vmem [resolvable:$true] %s738
          %744 = dma.hbm_to_vmem [thread:$0]  %s737, 256, %s739, %s728, 64, 64, 4
        $region64: #{tpu_custom_call.1} parent=35 // pred_fallthru
          _
        // Predicated region
        $region65: #{tpu_custom_call.1} parent=35 // pred_check
          %p745 = pneg %p291
        $region66: #{tpu_custom_call.1} parent=35 // pred_check_branch
          %747 = sbr.rel (%p745) target = $region68
        $region67: #{tpu_custom_call.1} parent=35 // pred_region
          %s748 = sand.u32 %s30, 1
          %s749 = scalar_lea.sflag [#allocation4], %s748
          %s750 = sand.u32 %s281, 1
          %s751 = scalar_lea.vmem [#allocation12], %s750
          %s753 = ssub.s32 16, 16
          %754 = vsyncadd %s749, %s753
          %s755 = smul.addr %s38, 16
          %s756 = scalar_lea.hbm %s9, %s755
          %s758 = sshll.u32 %s751, 4
          %s759 = int_to_ptr.vmem [resolvable:$true] %s758
          %761 = dma.hbm_to_vmem [thread:$0]  %s756, 16, %s759, %s749
        $region68: #{tpu_custom_call.1} parent=35 // pred_fallthru
          _
        // Predicated region
        $region69: #{tpu_custom_call.1} parent=35 // pred_check
          %p762 = pneg %p317
        $region70: #{tpu_custom_call.1} parent=35 // pred_check_branch
          %764 = sbr.rel (%p762) target = $region72
        $region71: #{tpu_custom_call.1} parent=35 // pred_region
          %s765 = sand.u32 %s30, 1
          %s766 = scalar_lea.sflag [#allocation4], %s765
          %s767 = sand.u32 %s307, 1
          %s768 = smul.addr %s767, 16
          %s769 = scalar_lea.vmem [#allocation13], %s768
          %s771 = ssub.s32 256, 256
          %772 = vsyncadd %s766, %s771
          %s773 = smul.addr %s38, 4
          %s774 = smul.addr %s773, 64
          %s775 = scalar_lea.hbm %s10, %s774
          %s776 = sshll.u32 %s769, 4
          %s777 = int_to_ptr.vmem [resolvable:$true] %s776
          %782 = dma.hbm_to_vmem [thread:$0]  %s775, 256, %s777, %s766, 64, 64, 4
        $region72: #{tpu_custom_call.1} parent=35 // pred_fallthru
          _
        // Predicated region
        $region73: #{tpu_custom_call.1} parent=35 // pred_check
          %p783 = pneg %p343
        $region74: #{tpu_custom_call.1} parent=35 // pred_check_branch
          %785 = sbr.rel (%p783) target = $region76
        $region75: #{tpu_custom_call.1} parent=35 // pred_region
          %s786 = sand.u32 %s30, 1
          %s787 = scalar_lea.sflag [#allocation4], %s786
          %s788 = sand.u32 %s333, 1
          %s789 = scalar_lea.vmem [#allocation14], %s788
          %s791 = ssub.s32 16, 16
          %792 = vsyncadd %s787, %s791
          %s793 = smul.addr %s38, 16
          %s794 = scalar_lea.hbm %s11, %s793
          %s796 = sshll.u32 %s789, 4
          %s797 = int_to_ptr.vmem [resolvable:$true] %s796
          %799 = dma.hbm_to_vmem [thread:$0]  %s794, 16, %s797, %s787
        $region76: #{tpu_custom_call.1} parent=35 // pred_fallthru
          _
        // Predicated region
        $region77: #{tpu_custom_call.1} parent=35 // pred_check
          %p800 = pneg %p369
        $region78: #{tpu_custom_call.1} parent=35 // pred_check_branch
          %802 = sbr.rel (%p800) target = $region80
        $region79: #{tpu_custom_call.1} parent=35 // pred_region
          %p803 = scmp.lt.s32.totalorder %s38, 1
          %s804 = scalar_select %p803, %s38, 1
          %s805 = smul.addr %s804, 8
          %s806 = smul.addr %s805, 4
          %s807 = scalar_lea.vmem %s12, %s806
        $region80: #{tpu_custom_call.1} parent=35 // pred_fallthru
          _
        // Predicated region
        $region81: #{tpu_custom_call.1} parent=35 // pred_check
          %p808 = pneg %p395
        $region82: #{tpu_custom_call.1} parent=35 // pred_check_branch
          %810 = sbr.rel (%p808) target = $region84
        $region83: #{tpu_custom_call.1} parent=35 // pred_region
          %s811 = sand.u32 %s30, 1
          %s812 = scalar_lea.sflag [#allocation4], %s811
          %s813 = sand.u32 %s385, 1
          %s814 = scalar_lea.vmem [#allocation15], %s813
          %s816 = ssub.s32 16, 16
          %817 = vsyncadd %s812, %s816
          %s818 = smul.addr %s38, 16
          %s819 = scalar_lea.hbm %s13, %s818
          %s821 = sshll.u32 %s814, 4
          %s822 = int_to_ptr.vmem [resolvable:$true] %s821
          %824 = dma.hbm_to_vmem [thread:$0]  %s819, 16, %s822, %s812
        $region84: #{tpu_custom_call.1} parent=35 // pred_fallthru
          _
        // Predicated region
        $region85: #{tpu_custom_call.1} parent=35 // pred_check
          %p825 = pneg %p421
        $region86: #{tpu_custom_call.1} parent=35 // pred_check_branch
          %827 = sbr.rel (%p825) target = $region88
        $region87: #{tpu_custom_call.1} parent=35 // pred_region
          %p828 = scmp.lt.s32.totalorder %s38, 1
          %s829 = scalar_select %p828, %s38, 1
          %s830 = scalar_lea.vmem %s14, %s829
        $region88: #{tpu_custom_call.1} parent=35 // pred_fallthru
          _
        // Predicated region
        $region89: #{tpu_custom_call.1} parent=35 // pred_check
          %p831 = pneg %p447
        $region90: #{tpu_custom_call.1} parent=35 // pred_check_branch
          %833 = sbr.rel (%p831) target = $region92
        $region91: #{tpu_custom_call.1} parent=35 // pred_region
          %p834 = scmp.lt.s32.totalorder %s38, 1
          %s835 = scalar_select %p834, %s38, 1
          %s836 = scalar_lea.vmem %s15, %s835
        $region92: #{tpu_custom_call.1} parent=35 // pred_fallthru
          _
        // Predicated region
        $region93: #{tpu_custom_call.1} parent=35 // pred_check
          %p837 = pneg %p473
        $region94: #{tpu_custom_call.1} parent=35 // pred_check_branch
          %839 = sbr.rel (%p837) target = $region96
        $region95: #{tpu_custom_call.1} parent=35 // pred_region
          %p840 = scmp.lt.s32.totalorder %s38, 1
          %s841 = scalar_select %p840, %s38, 1
          %s842 = scalar_lea.vmem %s16, %s841
        $region96: #{tpu_custom_call.1} parent=35 // pred_fallthru
          _
        // Predicated region
        $region97: #{tpu_custom_call.1} parent=35 // pred_check
          %p843 = pneg %p499
        $region98: #{tpu_custom_call.1} parent=35 // pred_check_branch
          %845 = sbr.rel (%p843) target = $region100
        $region99: #{tpu_custom_call.1} parent=35 // pred_region
          %p846 = scmp.lt.s32.totalorder %s38, 1
          %s847 = scalar_select %p846, %s38, 1
          %s848 = scalar_lea.vmem %s17, %s847
        $region100: #{tpu_custom_call.1} parent=35 // pred_fallthru
          _
      $region36: #{tpu_custom_call.1} parent=5 // pred_fallthru
        _
      %p849 = scmp.le.s32.totalorder 1, %s30
      %p850 = scmp.lt.s32.totalorder %s30, 3
      %p851 = pnand %p849, %p850
      %p852 = pneg %p851
      // Predicated region
      $region101: #{tpu_custom_call.1} parent=5 // pred_check
        _
      $region102: #{tpu_custom_call.1} parent=5 // pred_check_branch
        %854 = sbr.rel (%p851) target = $region104
      $region103: #{tpu_custom_call.1} parent=5 // pred_region
        %s855 = ssub.s32 %s30, 1
        // Predicated region
        $region105: #{tpu_custom_call.1} parent=103 // pred_check
          %p856 = pneg %p68
        $region106: #{tpu_custom_call.1} parent=103 // pred_check_branch
          %858 = sbr.rel (%p856) target = $region108
        $region107: #{tpu_custom_call.1} parent=103 // pred_region
          %859 = dma.done [#allocation4], 256
        $region108: #{tpu_custom_call.1} parent=103 // pred_fallthru
          _
        // Predicated region
        $region109: #{tpu_custom_call.1} parent=103 // pred_check
          %p860 = pneg %p89
        $region110: #{tpu_custom_call.1} parent=103 // pred_check_branch
          %862 = sbr.rel (%p860) target = $region112
        $region111: #{tpu_custom_call.1} parent=103 // pred_region
          %863 = dma.done [#allocation7], 128
        $region112: #{tpu_custom_call.1} parent=103 // pred_fallthru
          _
        %s864 = sand.u32 %s35, 1
        %s865 = scalar_lea.sflag [#allocation4], %s864
        %s866 = sand.u32 %s128, 1
        %s867 = scalar_lea.vmem [#allocation8], %s866
        // Predicated region
        $region113: #{tpu_custom_call.1} parent=103 // pred_check
          %p868 = pneg %p141
        $region114: #{tpu_custom_call.1} parent=103 // pred_check_branch
          %870 = sbr.rel (%p868) target = $region116
        $region115: #{tpu_custom_call.1} parent=103 // pred_region
          %871 = dma.done %s865, 16
        $region116: #{tpu_custom_call.1} parent=103 // pred_fallthru
          _
        %s872 = sand.u32 %s35, 1
        %s873 = scalar_lea.sflag [#allocation4], %s872
        %s874 = sand.u32 %s180, 1
        %s875 = scalar_lea.vmem [#allocation9], %s874
        // Predicated region
        $region117: #{tpu_custom_call.1} parent=103 // pred_check
          %p876 = pneg %p193
        $region118: #{tpu_custom_call.1} parent=103 // pred_check_branch
          %878 = sbr.rel (%p876) target = $region120
        $region119: #{tpu_custom_call.1} parent=103 // pred_region
          %879 = dma.done %s873, 16
        $region120: #{tpu_custom_call.1} parent=103 // pred_fallthru
          _
        %s880 = sand.u32 %s35, 1
        %s881 = scalar_lea.sflag [#allocation4], %s880
        %s882 = sand.u32 %s232, 1
        %s883 = scalar_lea.vmem [#allocation10], %s882
        // Predicated region
        $region121: #{tpu_custom_call.1} parent=103 // pred_check
          %p884 = pneg %p245
        $region122: #{tpu_custom_call.1} parent=103 // pred_check_branch
          %886 = sbr.rel (%p884) target = $region124
        $region123: #{tpu_custom_call.1} parent=103 // pred_region
          %887 = dma.done %s881, 16
        $region124: #{tpu_custom_call.1} parent=103 // pred_fallthru
          _
        %s888 = sand.u32 %s35, 1
        %s889 = scalar_lea.sflag [#allocation4], %s888
        %s890 = sand.u32 %s258, 1
        %s891 = smul.addr %s890, 16
        %s892 = scalar_lea.vmem [#allocation11], %s891
        // Predicated region
        $region125: #{tpu_custom_call.1} parent=103 // pred_check
          %p893 = pneg %p271
        $region126: #{tpu_custom_call.1} parent=103 // pred_check_branch
          %895 = sbr.rel (%p893) target = $region128
        $region127: #{tpu_custom_call.1} parent=103 // pred_region
          %896 = dma.done %s889, 256
        $region128: #{tpu_custom_call.1} parent=103 // pred_fallthru
          _
        %s897 = sand.u32 %s35, 1
        %s898 = scalar_lea.sflag [#allocation4], %s897
        %s899 = sand.u32 %s284, 1
        %s900 = scalar_lea.vmem [#allocation12], %s899
        // Predicated region
        $region129: #{tpu_custom_call.1} parent=103 // pred_check
          %p901 = pneg %p297
        $region130: #{tpu_custom_call.1} parent=103 // pred_check_branch
          %903 = sbr.rel (%p901) target = $region132
        $region131: #{tpu_custom_call.1} parent=103 // pred_region
          %904 = dma.done %s898, 16
        $region132: #{tpu_custom_call.1} parent=103 // pred_fallthru
          _
        %s905 = sand.u32 %s35, 1
        %s906 = scalar_lea.sflag [#allocation4], %s905
        %s907 = sand.u32 %s310, 1
        %s908 = smul.addr %s907, 16
        %s909 = scalar_lea.vmem [#allocation13], %s908
        // Predicated region
        $region133: #{tpu_custom_call.1} parent=103 // pred_check
          %p910 = pneg %p323
        $region134: #{tpu_custom_call.1} parent=103 // pred_check_branch
          %912 = sbr.rel (%p910) target = $region136
        $region135: #{tpu_custom_call.1} parent=103 // pred_region
          %913 = dma.done %s906, 256
        $region136: #{tpu_custom_call.1} parent=103 // pred_fallthru
          _
        %s914 = sand.u32 %s35, 1
        %s915 = scalar_lea.sflag [#allocation4], %s914
        %s916 = sand.u32 %s336, 1
        %s917 = scalar_lea.vmem [#allocation14], %s916
        // Predicated region
        $region137: #{tpu_custom_call.1} parent=103 // pred_check
          %p918 = pneg %p349
        $region138: #{tpu_custom_call.1} parent=103 // pred_check_branch
          %920 = sbr.rel (%p918) target = $region140
        $region139: #{tpu_custom_call.1} parent=103 // pred_region
          %921 = dma.done %s915, 16
        $region140: #{tpu_custom_call.1} parent=103 // pred_fallthru
          _
        %s922 = sand.u32 %s35, 1
        %s923 = scalar_lea.sflag [#allocation4], %s922
        %s924 = sand.u32 %s388, 1
        %s925 = scalar_lea.vmem [#allocation15], %s924
        // Predicated region
        $region141: #{tpu_custom_call.1} parent=103 // pred_check
          %p926 = pneg %p401
        $region142: #{tpu_custom_call.1} parent=103 // pred_check_branch
          %928 = sbr.rel (%p926) target = $region144
        $region143: #{tpu_custom_call.1} parent=103 // pred_region
          %929 = dma.done %s923, 16
        $region144: #{tpu_custom_call.1} parent=103 // pred_fallthru
          _
        %p930 = pneg %p68
        %p931 = pneg %p65
        %p932 = pneg %p89
        %p933 = pneg %p86
        %p934 = scmp.lt.s32.totalorder %s40, 1
        %s935 = scalar_select %p934, %s40, 1
        %s936 = smul.addr %s935, 4
        %s937 = smul.addr %s936, 4
        %s938 = scalar_lea.vmem %s2, %s937
        %p939 = pneg %p115
        %p940 = pneg %p112
        %s941 = sand.u32 %s35, 1
        %s942 = scalar_lea.sflag [#allocation4], %s941
        %s943 = sand.u32 %s128, 1
        %s944 = scalar_lea.vmem [#allocation8], %s943
        %p945 = pneg %p141
        %p946 = pneg %p138
        %p947 = scmp.lt.s32.totalorder %s40, 1
        %s948 = scalar_select %p947, %s40, 1
        %s949 = smul.addr %s948, 4
        %s950 = smul.addr %s949, 4
        %s951 = scalar_lea.vmem %s4, %s950
        %p952 = pneg %p167
        %p953 = pneg %p164
        %s954 = sand.u32 %s35, 1
        %s955 = scalar_lea.sflag [#allocation4], %s954
        %s956 = sand.u32 %s180, 1
        %s957 = scalar_lea.vmem [#allocation9], %s956
        %p958 = pneg %p193
        %p959 = pneg %p190
        %p960 = scmp.lt.s32.totalorder %s40, 1
        %s961 = scalar_select %p960, %s40, 1
        %s962 = smul.addr %s961, 4
        %s963 = smul.addr %s962, 4
        %s964 = scalar_lea.vmem %s6, %s963
        %p965 = pneg %p219
        %p966 = pneg %p216
        %s967 = sand.u32 %s35, 1
        %s968 = scalar_lea.sflag [#allocation4], %s967
        %s969 = sand.u32 %s232, 1
        %s970 = scalar_lea.vmem [#allocation10], %s969
        %p971 = pneg %p245
        %p972 = pneg %p242
        %s973 = sand.u32 %s35, 1
        %s974 = scalar_lea.sflag [#allocation4], %s973
        %s975 = sand.u32 %s258, 1
        %s976 = smul.addr %s975, 16
        %s977 = scalar_lea.vmem [#allocation11], %s976
        %p978 = pneg %p271
        %p979 = pneg %p268
        %s980 = sand.u32 %s35, 1
        %s981 = scalar_lea.sflag [#allocation4], %s980
        %s982 = sand.u32 %s284, 1
        %s983 = scalar_lea.vmem [#allocation12], %s982
        %p984 = pneg %p297
        %p985 = pneg %p294
        %s986 = sand.u32 %s35, 1
        %s987 = scalar_lea.sflag [#allocation4], %s986
        %s988 = sand.u32 %s310, 1
        %s989 = smul.addr %s988, 16
        %s990 = scalar_lea.vmem [#allocation13], %s989
        %p991 = pneg %p323
        %p992 = pneg %p320
        %s993 = sand.u32 %s35, 1
        %s994 = scalar_lea.sflag [#allocation4], %s993
        %s995 = sand.u32 %s336, 1
        %s996 = scalar_lea.vmem [#allocation14], %s995
        %p997 = pneg %p349
        %p998 = pneg %p346
        %p999 = scmp.lt.s32.totalorder %s40, 1
        %s1000 = scalar_select %p999, %s40, 1
        %s1001 = smul.addr %s1000, 8
        %s1002 = smul.addr %s1001, 4
        %s1003 = scalar_lea.vmem %s12, %s1002
        %p1004 = pneg %p375
        %p1005 = pneg %p372
        %s1006 = sand.u32 %s35, 1
        %s1007 = scalar_lea.sflag [#allocation4], %s1006
        %s1008 = sand.u32 %s388, 1
        %s1009 = scalar_lea.vmem [#allocation15], %s1008
        %p1010 = pneg %p401
        %p1011 = pneg %p398
        %p1012 = scmp.lt.s32.totalorder %s40, 1
        %s1013 = scalar_select %p1012, %s40, 1
        %s1014 = scalar_lea.vmem %s14, %s1013
        %p1015 = pneg %p427
        %p1016 = pneg %p424
        %p1017 = scmp.lt.s32.totalorder %s40, 1
        %s1018 = scalar_select %p1017, %s40, 1
        %s1019 = scalar_lea.vmem %s15, %s1018
        %p1020 = pneg %p453
        %p1021 = pneg %p450
        %p1022 = scmp.lt.s32.totalorder %s40, 1
        %s1023 = scalar_select %p1022, %s40, 1
        %s1024 = scalar_lea.vmem %s16, %s1023
        %p1025 = pneg %p479
        %p1026 = pneg %p476
        %p1027 = scmp.lt.s32.totalorder %s40, 1
        %s1028 = scalar_select %p1027, %s40, 1
        %s1029 = scalar_lea.vmem %s17, %s1028
        %p1030 = pneg %p505
        %p1031 = pneg %p502
        %p1032 = pneg %p526
        %p1033 = pneg %p523
        %p1034 = pneg %p547
        %p1035 = pneg %p544
        %p1036 = pneg %p568
        %p1037 = pneg %p565
        %p1038 = pneg %p594
        %p1039 = pneg %p591
        %s1040 = smul.u32 2, %s39
        %p1041 = scmp.lt.s32.totalorder %s40, 1
        %s1042 = scalar_select %p1041, %s40, 1
        %s1043 = smul.addr %s1042, 4
        %s1044 = smul.addr %s1043, 4
        %s1045 = scalar_lea.vmem %s2, %s1044
        %p1046 = scmp.lt.s32.totalorder %s40, 1
        %s1047 = scalar_select %p1046, %s40, 1
        %s1048 = smul.addr %s1047, 4
        %s1049 = smul.addr %s1048, 4
        %s1050 = scalar_lea.vmem %s4, %s1049
        %p1051 = scmp.lt.s32.totalorder %s40, 1
        %s1052 = scalar_select %p1051, %s40, 1
        %s1053 = smul.addr %s1052, 4
        %s1054 = smul.addr %s1053, 4
        %s1055 = scalar_lea.vmem %s6, %s1054
        %p1056 = scmp.lt.s32.totalorder %s40, 1
        %s1057 = scalar_select %p1056, %s40, 1
        %s1058 = smul.addr %s1057, 8
        %s1059 = smul.addr %s1058, 4
        %s1060 = scalar_lea.vmem %s12, %s1059
        %p1061 = scmp.lt.s32.totalorder %s40, 1
        %s1062 = scalar_select %p1061, %s40, 1
        %s1063 = scalar_lea.vmem %s14, %s1062
        %p1064 = scmp.lt.s32.totalorder %s40, 1
        %s1065 = scalar_select %p1064, %s40, 1
        %s1066 = scalar_lea.vmem %s15, %s1065
        %p1067 = scmp.lt.s32.totalorder %s40, 1
        %s1068 = scalar_select %p1067, %s40, 1
        %s1069 = scalar_lea.vmem %s16, %s1068
        %p1070 = scmp.lt.s32.totalorder %s40, 1
        %s1071 = scalar_select %p1070, %s40, 1
        %s1072 = scalar_lea.vmem %s17, %s1071
        %s1073 = smul.u32 2, %s39
        %p1075 = scmp.eq.s32.totalorder %s40, 0
        // Predicated region
        $region145: #{tpu_custom_call.1} parent=103 // pred_check
          %p1076 = pneg %p1075
        $region146: #{tpu_custom_call.1} parent=103 // pred_check_branch
          %1078 = sbr.rel (%p1076) target = $region148
        $region147: #{tpu_custom_call.1} parent=103 // pred_region
          %v1079 = vld [vmem:[#allocation3] sm:$0xff]
          %v1080 = vld [vmem:[#allocation3 + $0x8] sm:$0xff]
          %vm1081 = vcmask 261120
          %1082 = vst.msk [vmem:[#allocation2] sm:$0xff] %vm1081, %v1079
          %1083 = vst.msk [vmem:[#allocation2 + $0x8] sm:$0xff] %vm1081, %v1080
        $region148: #{tpu_custom_call.1} parent=103 // pred_fallthru
          _
        %v1084 = vld [vmem:[#allocation2] sm:$0xff]
        %v1085 = vld [vmem:[#allocation2 + $0x8] sm:$0xff]
        %v1086 = vld [vmem:[#allocation6] sm:$0xff]
        %v1087 = vadd.f32 %v1084, %v1086
        %v1088 = vadd.f32 %v1085, %v1086
        %v1089 = vpack.c.bf16 %v1088, %v1087
        %v1090 = vld [vmem:[%s1045] sm:$0xf]
        %v1091 = vld [vmem:[%s1045 + $0x4] sm:$0xf]
        %v1092 = vld [vmem:[%s1045 + $0x8] sm:$0xf]
        %v1093 = vld [vmem:[%s1045 + $0xc] sm:$0xf]
        %v1094 = vld [vmem:[%s867] sm:$0x1]
        %v1096 = vlaneseq
        %v1097 = vshrl.u32 %v1096, 7
        %v1098 = vsub.s32 0, %v1097
        %v1099 = vrot.slane %v1094, %v1098
        %v1105 = vunpack.c.l.b16 %v1090
        %v1106 = vunpack.c.l.b16 %v1091
        %v1107 = vunpack.c.l.b16 %v1092
        %v1108 = vunpack.c.l.b16 %v1093
        %v1109 = vpack.c.b16 %v1106, %v1105
        %v1110 = vpack.c.b16 %v1108, %v1107
        %vm1113 = vcmask 261120
        %v1115 = vsel %vm1113, %v1089, 0
        %1117 = vmatprep.subr.bf16.mxu0 0
        %1118 = vmatpush1.bf16.msra.mxu0 %v1109
        %1119 = vmatprep.subr.bf16.mxu0 0
        %1120 = vmatpush1.bf16.msra.mxu0 %v1110
        %1121 = vmatprep.subr.bf16.mxu0 0
        %1122 = vmatpush1.bf16.msra.mxu0 0
        %1123 = vmatprep.subr.bf16.mxu0 0
        %1124 = vmatpush1.bf16.msra.mxu0 0
        %1125 = vmatprep.subr.bf16.mxu0 0
        %1126 = vmatpush1.bf16.msra.mxu0 0
        %1127 = vmatprep.subr.bf16.mxu0 0
        %1128 = vmatpush1.bf16.msra.mxu0 0
        %1129 = vmatprep.subr.bf16.mxu0 0
        %1130 = vmatpush1.bf16.msra.mxu0 0
        %1131 = vmatprep.subr.bf16.mxu0 0
        %1132 = vmatpush1.bf16.msra.mxu0 0
        %1133 = vmatprep.subr.bf16.mxu0 0
        %1134 = vmatpush1.bf16.msra.mxu0 0
        %1135 = vmatprep.subr.bf16.mxu0 0
        %1136 = vmatpush1.bf16.msra.mxu0 0
        %1137 = vmatprep.subr.bf16.mxu0 0
        %1138 = vmatpush1.bf16.msra.mxu0 0
        %1139 = vmatprep.subr.bf16.mxu0 0
        %1140 = vmatpush1.bf16.msra.mxu0 0
        %1141 = vmatprep.subr.bf16.mxu0 0
        %1142 = vmatpush1.bf16.msra.mxu0 0
        %1143 = vmatprep.subr.bf16.mxu0 0
        %1144 = vmatpush1.bf16.msra.mxu0 0
        %1145 = vmatprep.subr.bf16.mxu0 0
        %1146 = vmatpush1.bf16.msra.mxu0 0
        %1147 = vmatprep.subr.bf16.mxu0 0
        %1148 = vmatpush1.bf16.msra.mxu0 0
        %1149 = vmatprep.mubr.bf16.mxu0 0
        %1150 = vmatmul.mubr.bf16.gmra.mrb[0].mxu0 %v1115
        %v1151 = vpop.f32.mrb[0].mxu0
        %v1152 = vadd.f32 %v1099, %v1151
        %v1153 = vpop.f32.mrb[0].mxu0
        %v1154 = vpop.f32.mrb[0].mxu0
        %v1155 = vadd.f32 %v1099, %v1154
        %v1156 = vpop.f32.mrb[0].mxu0
        %1157 = vdwg.mxu0
        %v1158 = vld [vmem:[%s1050] sm:$0xf]
        %v1159 = vld [vmem:[%s1050 + $0x4] sm:$0xf]
        %v1160 = vld [vmem:[%s1050 + $0x8] sm:$0xf]
        %v1161 = vld [vmem:[%s1050 + $0xc] sm:$0xf]
        %v1162 = vld [vmem:[%s875] sm:$0x1]
        %v1164 = vlaneseq
        %v1165 = vshrl.u32 %v1164, 7
        %v1166 = vsub.s32 0, %v1165
        %v1167 = vrot.slane %v1162, %v1166
        %v1173 = vunpack.c.l.b16 %v1158
        %v1174 = vunpack.c.l.b16 %v1159
        %v1175 = vunpack.c.l.b16 %v1160
        %v1176 = vunpack.c.l.b16 %v1161
        %v1177 = vpack.c.b16 %v1174, %v1173
        %v1178 = vpack.c.b16 %v1176, %v1175
        %1181 = vmatprep.subr.bf16.mxu0 0
        %1182 = vmatpush1.bf16.msra.mxu0 %v1177
        %1183 = vmatprep.subr.bf16.mxu0 0
        %1184 = vmatpush1.bf16.msra.mxu0 %v1178
        %1185 = vmatprep.subr.bf16.mxu0 0
        %1186 = vmatpush1.bf16.msra.mxu0 0
        %1187 = vmatprep.subr.bf16.mxu0 0
        %1188 = vmatpush1.bf16.msra.mxu0 0
        %1189 = vmatprep.subr.bf16.mxu0 0
        %1190 = vmatpush1.bf16.msra.mxu0 0
        %1191 = vmatprep.subr.bf16.mxu0 0
        %1192 = vmatpush1.bf16.msra.mxu0 0
        %1193 = vmatprep.subr.bf16.mxu0 0
        %1194 = vmatpush1.bf16.msra.mxu0 0
        %1195 = vmatprep.subr.bf16.mxu0 0
        %1196 = vmatpush1.bf16.msra.mxu0 0
        %1197 = vmatprep.subr.bf16.mxu0 0
        %1198 = vmatpush1.bf16.msra.mxu0 0
        %1199 = vmatprep.subr.bf16.mxu0 0
        %1200 = vmatpush1.bf16.msra.mxu0 0
        %1201 = vmatprep.subr.bf16.mxu0 0
        %1202 = vmatpush1.bf16.msra.mxu0 0
        %1203 = vmatprep.subr.bf16.mxu0 0
        %1204 = vmatpush1.bf16.msra.mxu0 0
        %1205 = vmatprep.subr.bf16.mxu0 0
        %1206 = vmatpush1.bf16.msra.mxu0 0
        %1207 = vmatprep.subr.bf16.mxu0 0
        %1208 = vmatpush1.bf16.msra.mxu0 0
        %1209 = vmatprep.subr.bf16.mxu0 0
        %1210 = vmatpush1.bf16.msra.mxu0 0
        %1211 = vmatprep.subr.bf16.mxu0 0
        %1212 = vmatpush1.bf16.msra.mxu0 0
        %1213 = vmatprep.mubr.bf16.mxu0 0
        %1214 = vmatmul.mubr.bf16.gmra.mrb[0].mxu0 %v1115
        %v1215 = vpop.f32.mrb[0].mxu0
        %v1216 = vadd.f32 %v1167, %v1215
        %v1217 = vpop.f32.mrb[0].mxu0
        %v1218 = vpop.f32.mrb[0].mxu0
        %v1219 = vadd.f32 %v1167, %v1218
        %v1220 = vpop.f32.mrb[0].mxu0
        %1221 = vdwg.mxu0
        %v1222 = vpack.c.bf16 %v1085, %v1084
        %v1223 = vld [vmem:[%s1055] sm:$0xf]
        %v1224 = vld [vmem:[%s1055 + $0x4] sm:$0xf]
        %v1225 = vld [vmem:[%s1055 + $0x8] sm:$0xf]
        %v1226 = vld [vmem:[%s1055 + $0xc] sm:$0xf]
        %v1227 = vld [vmem:[%s883] sm:$0x1]
        %v1229 = vlaneseq
        %v1230 = vshrl.u32 %v1229, 7
        %v1231 = vsub.s32 0, %v1230
        %v1232 = vrot.slane %v1227, %v1231
        %v1238 = vunpack.c.l.b16 %v1223
        %v1239 = vunpack.c.l.b16 %v1224
        %v1240 = vunpack.c.l.b16 %v1225
        %v1241 = vunpack.c.l.b16 %v1226
        %v1242 = vpack.c.b16 %v1239, %v1238
        %v1243 = vpack.c.b16 %v1241, %v1240
        %v1247 = vsel %vm1113, %v1222, 0
        %1249 = vmatprep.subr.bf16.mxu0 0
        %1250 = vmatpush1.bf16.msra.mxu0 %v1242
        %1251 = vmatprep.subr.bf16.mxu0 0
        %1252 = vmatpush1.bf16.msra.mxu0 %v1243
        %1253 = vmatprep.subr.bf16.mxu0 0
        %1254 = vmatpush1.bf16.msra.mxu0 0
        %1255 = vmatprep.subr.bf16.mxu0 0
        %1256 = vmatpush1.bf16.msra.mxu0 0
        %1257 = vmatprep.subr.bf16.mxu0 0
        %1258 = vmatpush1.bf16.msra.mxu0 0
        %1259 = vmatprep.subr.bf16.mxu0 0
        %1260 = vmatpush1.bf16.msra.mxu0 0
        %1261 = vmatprep.subr.bf16.mxu0 0
        %1262 = vmatpush1.bf16.msra.mxu0 0
        %1263 = vmatprep.subr.bf16.mxu0 0
        %1264 = vmatpush1.bf16.msra.mxu0 0
        %1265 = vmatprep.subr.bf16.mxu0 0
        %1266 = vmatpush1.bf16.msra.mxu0 0
        %1267 = vmatprep.subr.bf16.mxu0 0
        %1268 = vmatpush1.bf16.msra.mxu0 0
        %1269 = vmatprep.subr.bf16.mxu0 0
        %1270 = vmatpush1.bf16.msra.mxu0 0
        %1271 = vmatprep.subr.bf16.mxu0 0
        %1272 = vmatpush1.bf16.msra.mxu0 0
        %1273 = vmatprep.subr.bf16.mxu0 0
        %1274 = vmatpush1.bf16.msra.mxu0 0
        %1275 = vmatprep.subr.bf16.mxu0 0
        %1276 = vmatpush1.bf16.msra.mxu0 0
        %1277 = vmatprep.subr.bf16.mxu0 0
        %1278 = vmatpush1.bf16.msra.mxu0 0
        %1279 = vmatprep.subr.bf16.mxu0 0
        %1280 = vmatpush1.bf16.msra.mxu0 0
        %1281 = vmatprep.mubr.bf16.mxu0 0
        %1282 = vmatmul.mubr.bf16.gmra.mrb[0].mxu0 %v1247
        %v1283 = vpop.f32.mrb[0].mxu0
        %v1284 = vadd.f32 %v1232, %v1283
        %v1285 = vpop.f32.mrb[0].mxu0
        %v1286 = vpop.f32.mrb[0].mxu0
        %v1287 = vadd.f32 %v1232, %v1286
        %v1288 = vpop.f32.mrb[0].mxu0
        %1289 = vdwg.mxu0
        %1292 = vrot.lane.b32.xlu0 %v1152, 120
        %v1293 = vpop.permute.xlu0 %1292
        %1294 = vrot.lane.b32.xlu0 %v1155, 120
        %v1295 = vpop.permute.xlu0 %1294
        %1298 = vrot.lane.b32.xlu0 %v1152, 112
        %v1299 = vpop.permute.xlu0 %1298
        %1300 = vrot.lane.b32.xlu0 %v1155, 112
        %v1301 = vpop.permute.xlu0 %1300
        %1304 = vrot.lane.b32.xlu0 %v1152, 104
        %v1305 = vpop.permute.xlu0 %1304
        %1306 = vrot.lane.b32.xlu0 %v1155, 104
        %v1307 = vpop.permute.xlu0 %1306
        %1312 = vrot.lane.b32.xlu0 %v1216, 120
        %v1313 = vpop.permute.xlu0 %1312
        %1314 = vrot.lane.b32.xlu0 %v1219, 120
        %v1315 = vpop.permute.xlu0 %1314
        %1318 = vrot.lane.b32.xlu0 %v1216, 112
        %v1319 = vpop.permute.xlu0 %1318
        %1320 = vrot.lane.b32.xlu0 %v1219, 112
        %v1321 = vpop.permute.xlu0 %1320
        %1324 = vrot.lane.b32.xlu0 %v1216, 104
        %v1325 = vpop.permute.xlu0 %1324
        %1326 = vrot.lane.b32.xlu0 %v1219, 104
        %v1327 = vpop.permute.xlu0 %1326
        %1332 = vrot.lane.b32.xlu0 %v1284, 120
        %v1333 = vpop.permute.xlu0 %1332
        %1334 = vrot.lane.b32.xlu0 %v1287, 120
        %v1335 = vpop.permute.xlu0 %1334
        %1338 = vrot.lane.b32.xlu0 %v1284, 112
        %v1339 = vpop.permute.xlu0 %1338
        %1340 = vrot.lane.b32.xlu0 %v1287, 112
        %v1341 = vpop.permute.xlu0 %1340
        %1344 = vrot.lane.b32.xlu0 %v1284, 104
        %v1345 = vpop.permute.xlu0 %1344
        %1346 = vrot.lane.b32.xlu0 %v1287, 104
        %v1347 = vpop.permute.xlu0 %1346
        %v1350 = vpack.c.bf16 %v1152, %v1152
        %v1351 = vpack.c.bf16 %v1155, %v1155
        %v1352 = vpack.c.bf16 %v1293, %v1293
        %v1353 = vpack.c.bf16 %v1295, %v1295
        %v1354 = vpack.c.bf16 %v1299, %v1299
        %v1355 = vpack.c.bf16 %v1301, %v1301
        %v1356 = vpack.c.bf16 %v1305, %v1305
        %v1357 = vpack.c.bf16 %v1307, %v1307
        %v1358 = vpack.c.bf16 %v1216, %v1216
        %v1359 = vpack.c.bf16 %v1219, %v1219
        %v1360 = vpack.c.bf16 %v1313, %v1313
        %v1361 = vpack.c.bf16 %v1315, %v1315
        %v1362 = vpack.c.bf16 %v1319, %v1319
        %v1363 = vpack.c.bf16 %v1321, %v1321
        %v1364 = vpack.c.bf16 %v1325, %v1325
        %v1365 = vpack.c.bf16 %v1327, %v1327
        %vm1366 = vcmask 64512
        %v1368 = vsel %vm1366, %v1350, 0
        %v1371 = vsel %vm1366, %v1358, 0
        %1373 = vmatprep.subr.bf16.mxu0 0
        %1374 = vmatpush1.bf16.xpose.msra.mxu0 %v1371
        %1375 = vmatprep.subr.bf16.mxu0 0
        %1376 = vmatpush1.bf16.xpose.msra.mxu0 0
        %1377 = vmatprep.subr.bf16.mxu0 0
        %1378 = vmatpush1.bf16.xpose.msra.mxu0 0
        %1379 = vmatprep.subr.bf16.mxu0 0
        %1380 = vmatpush1.bf16.xpose.msra.mxu0 0
        %1381 = vmatprep.subr.bf16.mxu0 0
        %1382 = vmatpush1.bf16.xpose.msra.mxu0 0
        %1383 = vmatprep.subr.bf16.mxu0 0
        %1384 = vmatpush1.bf16.xpose.msra.mxu0 0
        %1385 = vmatprep.subr.bf16.mxu0 0
        %1386 = vmatpush1.bf16.xpose.msra.mxu0 0
        %1387 = vmatprep.subr.bf16.mxu0 0
        %1388 = vmatpush1.bf16.xpose.msra.mxu0 0
        %1389 = vmatprep.subr.bf16.mxu0 0
        %1390 = vmatpush1.bf16.xpose.msra.mxu0 0
        %1391 = vmatprep.subr.bf16.mxu0 0
        %1392 = vmatpush1.bf16.xpose.msra.mxu0 0
        %1393 = vmatprep.subr.bf16.mxu0 0
        %1394 = vmatpush1.bf16.xpose.msra.mxu0 0
        %1395 = vmatprep.subr.bf16.mxu0 0
        %1396 = vmatpush1.bf16.xpose.msra.mxu0 0
        %1397 = vmatprep.subr.bf16.mxu0 0
        %1398 = vmatpush1.bf16.xpose.msra.mxu0 0
        %1399 = vmatprep.subr.bf16.mxu0 0
        %1400 = vmatpush1.bf16.xpose.msra.mxu0 0
        %1401 = vmatprep.subr.bf16.mxu0 0
        %1402 = vmatpush1.bf16.xpose.msra.mxu0 0
        %1403 = vmatprep.subr.bf16.mxu0 0
        %1404 = vmatpush1.bf16.xpose.msra.mxu0 0
        %1405 = vmatprep.mubr.bf16.mxu0 0
        %1406 = vmatmul.mubr.bf16.gmra.mrb[0].mxu0 %v1368
        %v1407 = vpop.f32.mrb[0].mxu0
        %v1408 = vadd.f32 0.0, %v1407
        %v1409 = vpop.f32.mrb[0].mxu0
        %v1410 = vpop.f32.mrb[0].mxu0
        %v1411 = vpop.f32.mrb[0].mxu0
        %1412 = vdwg.mxu0
        %v1414 = vsel %vm1366, %v1351, 0
        %v1417 = vsel %vm1366, %v1359, 0
        %1419 = vmatprep.subr.bf16.mxu0 0
        %1420 = vmatpush1.bf16.xpose.msra.mxu0 %v1417
        %1421 = vmatprep.subr.bf16.mxu0 0
        %1422 = vmatpush1.bf16.xpose.msra.mxu0 0
        %1423 = vmatprep.subr.bf16.mxu0 0
        %1424 = vmatpush1.bf16.xpose.msra.mxu0 0
        %1425 = vmatprep.subr.bf16.mxu0 0
        %1426 = vmatpush1.bf16.xpose.msra.mxu0 0
        %1427 = vmatprep.subr.bf16.mxu0 0
        %1428 = vmatpush1.bf16.xpose.msra.mxu0 0
        %1429 = vmatprep.subr.bf16.mxu0 0
        %1430 = vmatpush1.bf16.xpose.msra.mxu0 0
        %1431 = vmatprep.subr.bf16.mxu0 0
        %1432 = vmatpush1.bf16.xpose.msra.mxu0 0
        %1433 = vmatprep.subr.bf16.mxu0 0
        %1434 = vmatpush1.bf16.xpose.msra.mxu0 0
        %1435 = vmatprep.subr.bf16.mxu0 0
        %1436 = vmatpush1.bf16.xpose.msra.mxu0 0
        %1437 = vmatprep.subr.bf16.mxu0 0
        %1438 = vmatpush1.bf16.xpose.msra.mxu0 0
        %1439 = vmatprep.subr.bf16.mxu0 0
        %1440 = vmatpush1.bf16.xpose.msra.mxu0 0
        %1441 = vmatprep.subr.bf16.mxu0 0
        %1442 = vmatpush1.bf16.xpose.msra.mxu0 0
        %1443 = vmatprep.subr.bf16.mxu0 0
        %1444 = vmatpush1.bf16.xpose.msra.mxu0 0
        %1445 = vmatprep.subr.bf16.mxu0 0
        %1446 = vmatpush1.bf16.xpose.msra.mxu0 0
        %1447 = vmatprep.subr.bf16.mxu0 0
        %1448 = vmatpush1.bf16.xpose.msra.mxu0 0
        %1449 = vmatprep.subr.bf16.mxu0 0
        %1450 = vmatpush1.bf16.xpose.msra.mxu0 0
        %1451 = vmatprep.mubr.bf16.mxu0 0
        %1452 = vmatmul.mubr.bf16.gmra.mrb[0].mxu0 %v1414
        %v1453 = vpop.f32.mrb[0].mxu0
        %v1454 = vadd.f32 0.0, %v1453
        %v1455 = vpop.f32.mrb[0].mxu0
        %v1456 = vpop.f32.mrb[0].mxu0
        %v1457 = vpop.f32.mrb[0].mxu0
        %1458 = vdwg.mxu0
        %v1460 = vsel %vm1366, %v1352, 0
        %v1463 = vsel %vm1366, %v1360, 0
        %1465 = vmatprep.subr.bf16.mxu0 0
        %1466 = vmatpush1.bf16.xpose.msra.mxu0 %v1463
        %1467 = vmatprep.subr.bf16.mxu0 0
        %1468 = vmatpush1.bf16.xpose.msra.mxu0 0
        %1469 = vmatprep.subr.bf16.mxu0 0
        %1470 = vmatpush1.bf16.xpose.msra.mxu0 0
        %1471 = vmatprep.subr.bf16.mxu0 0
        %1472 = vmatpush1.bf16.xpose.msra.mxu0 0
        %1473 = vmatprep.subr.bf16.mxu0 0
        %1474 = vmatpush1.bf16.xpose.msra.mxu0 0
        %1475 = vmatprep.subr.bf16.mxu0 0
        %1476 = vmatpush1.bf16.xpose.msra.mxu0 0
        %1477 = vmatprep.subr.bf16.mxu0 0
        %1478 = vmatpush1.bf16.xpose.msra.mxu0 0
        %1479 = vmatprep.subr.bf16.mxu0 0
        %1480 = vmatpush1.bf16.xpose.msra.mxu0 0
        %1481 = vmatprep.subr.bf16.mxu0 0
        %1482 = vmatpush1.bf16.xpose.msra.mxu0 0
        %1483 = vmatprep.subr.bf16.mxu0 0
        %1484 = vmatpush1.bf16.xpose.msra.mxu0 0
        %1485 = vmatprep.subr.bf16.mxu0 0
        %1486 = vmatpush1.bf16.xpose.msra.mxu0 0
        %1487 = vmatprep.subr.bf16.mxu0 0
        %1488 = vmatpush1.bf16.xpose.msra.mxu0 0
        %1489 = vmatprep.subr.bf16.mxu0 0
        %1490 = vmatpush1.bf16.xpose.msra.mxu0 0
        %1491 = vmatprep.subr.bf16.mxu0 0
        %1492 = vmatpush1.bf16.xpose.msra.mxu0 0
        %1493 = vmatprep.subr.bf16.mxu0 0
        %1494 = vmatpush1.bf16.xpose.msra.mxu0 0
        %1495 = vmatprep.subr.bf16.mxu0 0
        %1496 = vmatpush1.bf16.xpose.msra.mxu0 0
        %1497 = vmatprep.mubr.bf16.mxu0 0
        %1498 = vmatmul.mubr.bf16.gmra.mrb[0].mxu0 %v1460
        %v1499 = vpop.f32.mrb[0].mxu0
        %v1500 = vadd.f32 0.0, %v1499
        %v1501 = vpop.f32.mrb[0].mxu0
        %v1502 = vpop.f32.mrb[0].mxu0
        %v1503 = vpop.f32.mrb[0].mxu0
        %1504 = vdwg.mxu0
        %v1506 = vsel %vm1366, %v1353, 0
        %v1509 = vsel %vm1366, %v1361, 0
        %1511 = vmatprep.subr.bf16.mxu0 0
        %1512 = vmatpush1.bf16.xpose.msra.mxu0 %v1509
        %1513 = vmatprep.subr.bf16.mxu0 0
        %1514 = vmatpush1.bf16.xpose.msra.mxu0 0
        %1515 = vmatprep.subr.bf16.mxu0 0
        %1516 = vmatpush1.bf16.xpose.msra.mxu0 0
        %1517 = vmatprep.subr.bf16.mxu0 0
        %1518 = vmatpush1.bf16.xpose.msra.mxu0 0
        %1519 = vmatprep.subr.bf16.mxu0 0
        %1520 = vmatpush1.bf16.xpose.msra.mxu0 0
        %1521 = vmatprep.subr.bf16.mxu0 0
        %1522 = vmatpush1.bf16.xpose.msra.mxu0 0
        %1523 = vmatprep.subr.bf16.mxu0 0
        %1524 = vmatpush1.bf16.xpose.msra.mxu0 0
        %1525 = vmatprep.subr.bf16.mxu0 0
        %1526 = vmatpush1.bf16.xpose.msra.mxu0 0
        %1527 = vmatprep.subr.bf16.mxu0 0
        %1528 = vmatpush1.bf16.xpose.msra.mxu0 0
        %1529 = vmatprep.subr.bf16.mxu0 0
        %1530 = vmatpush1.bf16.xpose.msra.mxu0 0
        %1531 = vmatprep.subr.bf16.mxu0 0
        %1532 = vmatpush1.bf16.xpose.msra.mxu0 0
        %1533 = vmatprep.subr.bf16.mxu0 0
        %1534 = vmatpush1.bf16.xpose.msra.mxu0 0
        %1535 = vmatprep.subr.bf16.mxu0 0
        %1536 = vmatpush1.bf16.xpose.msra.mxu0 0
        %1537 = vmatprep.subr.bf16.mxu0 0
        %1538 = vmatpush1.bf16.xpose.msra.mxu0 0
        %1539 = vmatprep.subr.bf16.mxu0 0
        %1540 = vmatpush1.bf16.xpose.msra.mxu0 0
        %1541 = vmatprep.subr.bf16.mxu0 0
        %1542 = vmatpush1.bf16.xpose.msra.mxu0 0
        %1543 = vmatprep.mubr.bf16.mxu0 0
        %1544 = vmatmul.mubr.bf16.gmra.mrb[0].mxu0 %v1506
        %v1545 = vpop.f32.mrb[0].mxu0
        %v1546 = vadd.f32 0.0, %v1545
        %v1547 = vpop.f32.mrb[0].mxu0
        %v1548 = vpop.f32.mrb[0].mxu0
        %v1549 = vpop.f32.mrb[0].mxu0
        %1550 = vdwg.mxu0
        %v1552 = vsel %vm1366, %v1354, 0
        %v1555 = vsel %vm1366, %v1362, 0
        %1557 = vmatprep.subr.bf16.mxu0 0
        %1558 = vmatpush1.bf16.xpose.msra.mxu0 %v1555
        %1559 = vmatprep.subr.bf16.mxu0 0
        %1560 = vmatpush1.bf16.xpose.msra.mxu0 0
        %1561 = vmatprep.subr.bf16.mxu0 0
        %1562 = vmatpush1.bf16.xpose.msra.mxu0 0
        %1563 = vmatprep.subr.bf16.mxu0 0
        %1564 = vmatpush1.bf16.xpose.msra.mxu0 0
        %1565 = vmatprep.subr.bf16.mxu0 0
        %1566 = vmatpush1.bf16.xpose.msra.mxu0 0
        %1567 = vmatprep.subr.bf16.mxu0 0
        %1568 = vmatpush1.bf16.xpose.msra.mxu0 0
        %1569 = vmatprep.subr.bf16.mxu0 0
        %1570 = vmatpush1.bf16.xpose.msra.mxu0 0
        %1571 = vmatprep.subr.bf16.mxu0 0
        %1572 = vmatpush1.bf16.xpose.msra.mxu0 0
        %1573 = vmatprep.subr.bf16.mxu0 0
        %1574 = vmatpush1.bf16.xpose.msra.mxu0 0
        %1575 = vmatprep.subr.bf16.mxu0 0
        %1576 = vmatpush1.bf16.xpose.msra.mxu0 0
        %1577 = vmatprep.subr.bf16.mxu0 0
        %1578 = vmatpush1.bf16.xpose.msra.mxu0 0
        %1579 = vmatprep.subr.bf16.mxu0 0
        %1580 = vmatpush1.bf16.xpose.msra.mxu0 0
        %1581 = vmatprep.subr.bf16.mxu0 0
        %1582 = vmatpush1.bf16.xpose.msra.mxu0 0
        %1583 = vmatprep.subr.bf16.mxu0 0
        %1584 = vmatpush1.bf16.xpose.msra.mxu0 0
        %1585 = vmatprep.subr.bf16.mxu0 0
        %1586 = vmatpush1.bf16.xpose.msra.mxu0 0
        %1587 = vmatprep.subr.bf16.mxu0 0
        %1588 = vmatpush1.bf16.xpose.msra.mxu0 0
        %1589 = vmatprep.mubr.bf16.mxu0 0
        %1590 = vmatmul.mubr.bf16.gmra.mrb[0].mxu0 %v1552
        %v1591 = vpop.f32.mrb[0].mxu0
        %v1592 = vadd.f32 0.0, %v1591
        %v1593 = vpop.f32.mrb[0].mxu0
        %v1594 = vpop.f32.mrb[0].mxu0
        %v1595 = vpop.f32.mrb[0].mxu0
        %1596 = vdwg.mxu0
        %v1598 = vsel %vm1366, %v1355, 0
        %v1601 = vsel %vm1366, %v1363, 0
        %1603 = vmatprep.subr.bf16.mxu0 0
        %1604 = vmatpush1.bf16.xpose.msra.mxu0 %v1601
        %1605 = vmatprep.subr.bf16.mxu0 0
        %1606 = vmatpush1.bf16.xpose.msra.mxu0 0
        %1607 = vmatprep.subr.bf16.mxu0 0
        %1608 = vmatpush1.bf16.xpose.msra.mxu0 0
        %1609 = vmatprep.subr.bf16.mxu0 0
        %1610 = vmatpush1.bf16.xpose.msra.mxu0 0
        %1611 = vmatprep.subr.bf16.mxu0 0
        %1612 = vmatpush1.bf16.xpose.msra.mxu0 0
        %1613 = vmatprep.subr.bf16.mxu0 0
        %1614 = vmatpush1.bf16.xpose.msra.mxu0 0
        %1615 = vmatprep.subr.bf16.mxu0 0
        %1616 = vmatpush1.bf16.xpose.msra.mxu0 0
        %1617 = vmatprep.subr.bf16.mxu0 0
        %1618 = vmatpush1.bf16.xpose.msra.mxu0 0
        %1619 = vmatprep.subr.bf16.mxu0 0
        %1620 = vmatpush1.bf16.xpose.msra.mxu0 0
        %1621 = vmatprep.subr.bf16.mxu0 0
        %1622 = vmatpush1.bf16.xpose.msra.mxu0 0
        %1623 = vmatprep.subr.bf16.mxu0 0
        %1624 = vmatpush1.bf16.xpose.msra.mxu0 0
        %1625 = vmatprep.subr.bf16.mxu0 0
        %1626 = vmatpush1.bf16.xpose.msra.mxu0 0
        %1627 = vmatprep.subr.bf16.mxu0 0
        %1628 = vmatpush1.bf16.xpose.msra.mxu0 0
        %1629 = vmatprep.subr.bf16.mxu0 0
        %1630 = vmatpush1.bf16.xpose.msra.mxu0 0
        %1631 = vmatprep.subr.bf16.mxu0 0
        %1632 = vmatpush1.bf16.xpose.msra.mxu0 0
        %1633 = vmatprep.subr.bf16.mxu0 0
        %1634 = vmatpush1.bf16.xpose.msra.mxu0 0
        %1635 = vmatprep.mubr.bf16.mxu0 0
        %1636 = vmatmul.mubr.bf16.gmra.mrb[0].mxu0 %v1598
        %v1637 = vpop.f32.mrb[0].mxu0
        %v1638 = vadd.f32 0.0, %v1637
        %v1639 = vpop.f32.mrb[0].mxu0
        %v1640 = vpop.f32.mrb[0].mxu0
        %v1641 = vpop.f32.mrb[0].mxu0
        %1642 = vdwg.mxu0
        %v1644 = vsel %vm1366, %v1356, 0
        %v1647 = vsel %vm1366, %v1364, 0
        %1649 = vmatprep.subr.bf16.mxu0 0
        %1650 = vmatpush1.bf16.xpose.msra.mxu0 %v1647
        %1651 = vmatprep.subr.bf16.mxu0 0
        %1652 = vmatpush1.bf16.xpose.msra.mxu0 0
        %1653 = vmatprep.subr.bf16.mxu0 0
        %1654 = vmatpush1.bf16.xpose.msra.mxu0 0
        %1655 = vmatprep.subr.bf16.mxu0 0
        %1656 = vmatpush1.bf16.xpose.msra.mxu0 0
        %1657 = vmatprep.subr.bf16.mxu0 0
        %1658 = vmatpush1.bf16.xpose.msra.mxu0 0
        %1659 = vmatprep.subr.bf16.mxu0 0
        %1660 = vmatpush1.bf16.xpose.msra.mxu0 0
        %1661 = vmatprep.subr.bf16.mxu0 0
        %1662 = vmatpush1.bf16.xpose.msra.mxu0 0
        %1663 = vmatprep.subr.bf16.mxu0 0
        %1664 = vmatpush1.bf16.xpose.msra.mxu0 0
        %1665 = vmatprep.subr.bf16.mxu0 0
        %1666 = vmatpush1.bf16.xpose.msra.mxu0 0
        %1667 = vmatprep.subr.bf16.mxu0 0
        %1668 = vmatpush1.bf16.xpose.msra.mxu0 0
        %1669 = vmatprep.subr.bf16.mxu0 0
        %1670 = vmatpush1.bf16.xpose.msra.mxu0 0
        %1671 = vmatprep.subr.bf16.mxu0 0
        %1672 = vmatpush1.bf16.xpose.msra.mxu0 0
        %1673 = vmatprep.subr.bf16.mxu0 0
        %1674 = vmatpush1.bf16.xpose.msra.mxu0 0
        %1675 = vmatprep.subr.bf16.mxu0 0
        %1676 = vmatpush1.bf16.xpose.msra.mxu0 0
        %1677 = vmatprep.subr.bf16.mxu0 0
        %1678 = vmatpush1.bf16.xpose.msra.mxu0 0
        %1679 = vmatprep.subr.bf16.mxu0 0
        %1680 = vmatpush1.bf16.xpose.msra.mxu0 0
        %1681 = vmatprep.mubr.bf16.mxu0 0
        %1682 = vmatmul.mubr.bf16.gmra.mrb[0].mxu0 %v1644
        %v1683 = vpop.f32.mrb[0].mxu0
        %v1684 = vadd.f32 0.0, %v1683
        %v1685 = vpop.f32.mrb[0].mxu0
        %v1686 = vpop.f32.mrb[0].mxu0
        %v1687 = vpop.f32.mrb[0].mxu0
        %1688 = vdwg.mxu0
        %v1690 = vsel %vm1366, %v1357, 0
        %v1693 = vsel %vm1366, %v1365, 0
        %1695 = vmatprep.subr.bf16.mxu0 0
        %1696 = vmatpush1.bf16.xpose.msra.mxu0 %v1693
        %1697 = vmatprep.subr.bf16.mxu0 0
        %1698 = vmatpush1.bf16.xpose.msra.mxu0 0
        %1699 = vmatprep.subr.bf16.mxu0 0
        %1700 = vmatpush1.bf16.xpose.msra.mxu0 0
        %1701 = vmatprep.subr.bf16.mxu0 0
        %1702 = vmatpush1.bf16.xpose.msra.mxu0 0
        %1703 = vmatprep.subr.bf16.mxu0 0
        %1704 = vmatpush1.bf16.xpose.msra.mxu0 0
        %1705 = vmatprep.subr.bf16.mxu0 0
        %1706 = vmatpush1.bf16.xpose.msra.mxu0 0
        %1707 = vmatprep.subr.bf16.mxu0 0
        %1708 = vmatpush1.bf16.xpose.msra.mxu0 0
        %1709 = vmatprep.subr.bf16.mxu0 0
        %1710 = vmatpush1.bf16.xpose.msra.mxu0 0
        %1711 = vmatprep.subr.bf16.mxu0 0
        %1712 = vmatpush1.bf16.xpose.msra.mxu0 0
        %1713 = vmatprep.subr.bf16.mxu0 0
        %1714 = vmatpush1.bf16.xpose.msra.mxu0 0
        %1715 = vmatprep.subr.bf16.mxu0 0
        %1716 = vmatpush1.bf16.xpose.msra.mxu0 0
        %1717 = vmatprep.subr.bf16.mxu0 0
        %1718 = vmatpush1.bf16.xpose.msra.mxu0 0
        %1719 = vmatprep.subr.bf16.mxu0 0
        %1720 = vmatpush1.bf16.xpose.msra.mxu0 0
        %1721 = vmatprep.subr.bf16.mxu0 0
        %1722 = vmatpush1.bf16.xpose.msra.mxu0 0
        %1723 = vmatprep.subr.bf16.mxu0 0
        %1724 = vmatpush1.bf16.xpose.msra.mxu0 0
        %1725 = vmatprep.subr.bf16.mxu0 0
        %1726 = vmatpush1.bf16.xpose.msra.mxu0 0
        %1727 = vmatprep.mubr.bf16.mxu0 0
        %1728 = vmatmul.mubr.bf16.gmra.mrb[0].mxu0 %v1690
        %v1729 = vpop.f32.mrb[0].mxu0
        %v1730 = vadd.f32 0.0, %v1729
        %v1731 = vpop.f32.mrb[0].mxu0
        %v1732 = vpop.f32.mrb[0].mxu0
        %v1733 = vpop.f32.mrb[0].mxu0
        %1734 = vdwg.mxu0
        %v1735 = vmul.f32 %v1408, 0.35355338
        %v1736 = vmul.f32 %v1454, 0.35355338
        %v1737 = vmul.f32 %v1500, 0.35355338
        %v1738 = vmul.f32 %v1546, 0.35355338
        %v1739 = vmul.f32 %v1592, 0.35355338
        %v1740 = vmul.f32 %v1638, 0.35355338
        %v1741 = vmul.f32 %v1684, 0.35355338
        %v1742 = vmul.f32 %v1730, 0.35355338
        %v1743 = vlaneseq
        %v1744 = vshrl.u32 %v1743, 7
        %v1745 = vlaneseq
        %v1746 = vand.u32 %v1745, 127
        %vm1747 = vcmp.le.s32.totalorder %v1746, %v1744
        %v1748 = vsel %vm1747, 1, 0
        %vm1749 = vcmp.eq.s32.totalorder %v1748, 1
        %v1750 = vsel %vm1749, %v1735, -1e+30
        %v1751 = vsel %vm1749, %v1736, -1e+30
        %v1752 = vsel %vm1749, %v1737, -1e+30
        %v1753 = vsel %vm1749, %v1738, -1e+30
        %v1754 = vsel %vm1749, %v1739, -1e+30
        %v1755 = vsel %vm1749, %v1740, -1e+30
        %v1756 = vsel %vm1749, %v1741, -1e+30
        %v1757 = vsel %vm1749, %v1742, -1e+30
        %v1758 = vsel %vm1366, %v1750, -inf
        %1759 = vmax.xlane.f32.xlu0 %v1758
        %v1760 = vpop.xlane.xlu0 %1759
        %v1761 = vsel %vm1366, %v1751, -inf
        %1762 = vmax.xlane.f32.xlu0 %v1761
        %v1763 = vpop.xlane.xlu0 %1762
        %v1764 = vsel %vm1366, %v1752, -inf
        %1765 = vmax.xlane.f32.xlu0 %v1764
        %v1766 = vpop.xlane.xlu0 %1765
        %v1767 = vsel %vm1366, %v1753, -inf
        %1768 = vmax.xlane.f32.xlu0 %v1767
        %v1769 = vpop.xlane.xlu0 %1768
        %v1770 = vsel %vm1366, %v1754, -inf
        %1771 = vmax.xlane.f32.xlu0 %v1770
        %v1772 = vpop.xlane.xlu0 %1771
        %v1773 = vsel %vm1366, %v1755, -inf
        %1774 = vmax.xlane.f32.xlu0 %v1773
        %v1775 = vpop.xlane.xlu0 %1774
        %v1776 = vsel %vm1366, %v1756, -inf
        %1777 = vmax.xlane.f32.xlu0 %v1776
        %v1778 = vpop.xlane.xlu0 %1777
        %v1779 = vsel %vm1366, %v1757, -inf
        %1780 = vmax.xlane.f32.xlu0 %v1779
        %v1781 = vpop.xlane.xlu0 %1780
        %v1782 = vsub.f32 %v1750, %v1760
        %v1783 = vsub.f32 %v1751, %v1763
        %v1784 = vsub.f32 %v1752, %v1766
        %v1785 = vsub.f32 %v1753, %v1769
        %v1786 = vsub.f32 %v1754, %v1772
        %v1787 = vsub.f32 %v1755, %v1775
        %v1788 = vsub.f32 %v1756, %v1778
        %v1789 = vsub.f32 %v1757, %v1781
        %v1790 = vmul.f32 %v1782, 1.442695
        %v1791 = vpow.pop %v1790
        %v1792 = vmul.f32 %v1783, 1.442695
        %v1793 = vpow.pop %v1792
        %v1794 = vmul.f32 %v1784, 1.442695
        %v1795 = vpow.pop %v1794
        %v1796 = vmul.f32 %v1785, 1.442695
        %v1797 = vpow.pop %v1796
        %v1798 = vmul.f32 %v1786, 1.442695
        %v1799 = vpow.pop %v1798
        %v1800 = vmul.f32 %v1787, 1.442695
        %v1801 = vpow.pop %v1800
        %v1802 = vmul.f32 %v1788, 1.442695
        %v1803 = vpow.pop %v1802
        %v1804 = vmul.f32 %v1789, 1.442695
        %v1805 = vpow.pop %v1804
        %v1806 = vsel %vm1366, %v1791, 0.0
        %1807 = vadd.xlane.f32.xlu0 %v1806
        %v1808 = vpop.xlane.xlu0 %1807
        %v1809 = vsel %vm1366, %v1793, 0.0
        %1810 = vadd.xlane.f32.xlu0 %v1809
        %v1811 = vpop.xlane.xlu0 %1810
        %v1812 = vsel %vm1366, %v1795, 0.0
        %1813 = vadd.xlane.f32.xlu0 %v1812
        %v1814 = vpop.xlane.xlu0 %1813
        %v1815 = vsel %vm1366, %v1797, 0.0
        %1816 = vadd.xlane.f32.xlu0 %v1815
        %v1817 = vpop.xlane.xlu0 %1816
        %v1818 = vsel %vm1366, %v1799, 0.0
        %1819 = vadd.xlane.f32.xlu0 %v1818
        %v1820 = vpop.xlane.xlu0 %1819
        %v1821 = vsel %vm1366, %v1801, 0.0
        %1822 = vadd.xlane.f32.xlu0 %v1821
        %v1823 = vpop.xlane.xlu0 %1822
        %v1824 = vsel %vm1366, %v1803, 0.0
        %1825 = vadd.xlane.f32.xlu0 %v1824
        %v1826 = vpop.xlane.xlu0 %1825
        %v1827 = vsel %vm1366, %v1805, 0.0
        %1828 = vadd.xlane.f32.xlu0 %v1827
        %v1829 = vpop.xlane.xlu0 %1828
        %v1830 = vrcp.pop %v1808
        %v1831 = vrcp.pop %v1811
        %v1832 = vrcp.pop %v1814
        %v1833 = vrcp.pop %v1817
        %v1834 = vrcp.pop %v1820
        %v1835 = vrcp.pop %v1823
        %v1836 = vrcp.pop %v1826
        %v1837 = vrcp.pop %v1829
        %v1838 = vmul.f32 %v1791, %v1830
        %v1839 = vmul.f32 %v1793, %v1831
        %v1840 = vmul.f32 %v1795, %v1832
        %v1841 = vmul.f32 %v1797, %v1833
        %v1842 = vmul.f32 %v1799, %v1834
        %v1843 = vmul.f32 %v1801, %v1835
        %v1844 = vmul.f32 %v1803, %v1836
        %v1845 = vmul.f32 %v1805, %v1837
        %v1846 = vpack.c.bf16 %v1838, %v1838
        %v1847 = vpack.c.bf16 %v1839, %v1839
        %v1848 = vpack.c.bf16 %v1840, %v1840
        %v1849 = vpack.c.bf16 %v1841, %v1841
        %v1850 = vpack.c.bf16 %v1842, %v1842
        %v1851 = vpack.c.bf16 %v1843, %v1843
        %v1852 = vpack.c.bf16 %v1844, %v1844
        %v1853 = vpack.c.bf16 %v1845, %v1845
        %v1854 = vpack.c.bf16 %v1284, %v1284
        %v1855 = vpack.c.bf16 %v1287, %v1287
        %v1856 = vpack.c.bf16 %v1333, %v1333
        %v1857 = vpack.c.bf16 %v1335, %v1335
        %v1858 = vpack.c.bf16 %v1339, %v1339
        %v1859 = vpack.c.bf16 %v1341, %v1341
        %v1860 = vpack.c.bf16 %v1345, %v1345
        %v1861 = vpack.c.bf16 %v1347, %v1347
        %v1863 = vsel %vm1366, %v1846, 0
        %vm1865 = vcmask 1043456
        %v1867 = vsel %vm1865, %v1854, 0
        %1869 = vmatprep.subr.bf16.mxu0 0
        %1870 = vmatpush1.bf16.msra.mxu0 %v1867
        %1871 = vmatprep.subr.bf16.mxu0 0
        %1872 = vmatpush1.bf16.msra.mxu0 0
        %1873 = vmatprep.subr.bf16.mxu0 0
        %1874 = vmatpush1.bf16.msra.mxu0 0
        %1875 = vmatprep.subr.bf16.mxu0 0
        %1876 = vmatpush1.bf16.msra.mxu0 0
        %1877 = vmatprep.subr.bf16.mxu0 0
        %1878 = vmatpush1.bf16.msra.mxu0 0
        %1879 = vmatprep.subr.bf16.mxu0 0
        %1880 = vmatpush1.bf16.msra.mxu0 0
        %1881 = vmatprep.subr.bf16.mxu0 0
        %1882 = vmatpush1.bf16.msra.mxu0 0
        %1883 = vmatprep.subr.bf16.mxu0 0
        %1884 = vmatpush1.bf16.msra.mxu0 0
        %1885 = vmatprep.subr.bf16.mxu0 0
        %1886 = vmatpush1.bf16.msra.mxu0 0
        %1887 = vmatprep.subr.bf16.mxu0 0
        %1888 = vmatpush1.bf16.msra.mxu0 0
        %1889 = vmatprep.subr.bf16.mxu0 0
        %1890 = vmatpush1.bf16.msra.mxu0 0
        %1891 = vmatprep.subr.bf16.mxu0 0
        %1892 = vmatpush1.bf16.msra.mxu0 0
        %1893 = vmatprep.subr.bf16.mxu0 0
        %1894 = vmatpush1.bf16.msra.mxu0 0
        %1895 = vmatprep.subr.bf16.mxu0 0
        %1896 = vmatpush1.bf16.msra.mxu0 0
        %1897 = vmatprep.subr.bf16.mxu0 0
        %1898 = vmatpush1.bf16.msra.mxu0 0
        %1899 = vmatprep.subr.bf16.mxu0 0
        %1900 = vmatpush1.bf16.msra.mxu0 0
        %1901 = vmatprep.mubr.bf16.mxu0 0
        %1902 = vmatmul.mubr.bf16.gmra.mrb[0].mxu0 %v1863
        %v1903 = vpop.f32.mrb[0].mxu0
        %v1904 = vadd.f32 0.0, %v1903
        %v1905 = vpop.f32.mrb[0].mxu0
        %v1906 = vpop.f32.mrb[0].mxu0
        %v1907 = vpop.f32.mrb[0].mxu0
        %1908 = vdwg.mxu0
        %v1910 = vsel %vm1366, %v1847, 0
        %v1913 = vsel %vm1865, %v1855, 0
        %1915 = vmatprep.subr.bf16.mxu0 0
        %1916 = vmatpush1.bf16.msra.mxu0 %v1913
        %1917 = vmatprep.subr.bf16.mxu0 0
        %1918 = vmatpush1.bf16.msra.mxu0 0
        %1919 = vmatprep.subr.bf16.mxu0 0
        %1920 = vmatpush1.bf16.msra.mxu0 0
        %1921 = vmatprep.subr.bf16.mxu0 0
        %1922 = vmatpush1.bf16.msra.mxu0 0
        %1923 = vmatprep.subr.bf16.mxu0 0
        %1924 = vmatpush1.bf16.msra.mxu0 0
        %1925 = vmatprep.subr.bf16.mxu0 0
        %1926 = vmatpush1.bf16.msra.mxu0 0
        %1927 = vmatprep.subr.bf16.mxu0 0
        %1928 = vmatpush1.bf16.msra.mxu0 0
        %1929 = vmatprep.subr.bf16.mxu0 0
        %1930 = vmatpush1.bf16.msra.mxu0 0
        %1931 = vmatprep.subr.bf16.mxu0 0
        %1932 = vmatpush1.bf16.msra.mxu0 0
        %1933 = vmatprep.subr.bf16.mxu0 0
        %1934 = vmatpush1.bf16.msra.mxu0 0
        %1935 = vmatprep.subr.bf16.mxu0 0
        %1936 = vmatpush1.bf16.msra.mxu0 0
        %1937 = vmatprep.subr.bf16.mxu0 0
        %1938 = vmatpush1.bf16.msra.mxu0 0
        %1939 = vmatprep.subr.bf16.mxu0 0
        %1940 = vmatpush1.bf16.msra.mxu0 0
        %1941 = vmatprep.subr.bf16.mxu0 0
        %1942 = vmatpush1.bf16.msra.mxu0 0
        %1943 = vmatprep.subr.bf16.mxu0 0
        %1944 = vmatpush1.bf16.msra.mxu0 0
        %1945 = vmatprep.subr.bf16.mxu0 0
        %1946 = vmatpush1.bf16.msra.mxu0 0
        %1947 = vmatprep.mubr.bf16.mxu0 0
        %1948 = vmatmul.mubr.bf16.gmra.mrb[0].mxu0 %v1910
        %v1949 = vpop.f32.mrb[0].mxu0
        %v1950 = vadd.f32 0.0, %v1949
        %v1951 = vpop.f32.mrb[0].mxu0
        %v1952 = vpop.f32.mrb[0].mxu0
        %v1953 = vpop.f32.mrb[0].mxu0
        %1954 = vdwg.mxu0
        %v1956 = vsel %vm1366, %v1848, 0
        %v1959 = vsel %vm1865, %v1856, 0
        %1961 = vmatprep.subr.bf16.mxu0 0
        %1962 = vmatpush1.bf16.msra.mxu0 %v1959
        %1963 = vmatprep.subr.bf16.mxu0 0
        %1964 = vmatpush1.bf16.msra.mxu0 0
        %1965 = vmatprep.subr.bf16.mxu0 0
        %1966 = vmatpush1.bf16.msra.mxu0 0
        %1967 = vmatprep.subr.bf16.mxu0 0
        %1968 = vmatpush1.bf16.msra.mxu0 0
        %1969 = vmatprep.subr.bf16.mxu0 0
        %1970 = vmatpush1.bf16.msra.mxu0 0
        %1971 = vmatprep.subr.bf16.mxu0 0
        %1972 = vmatpush1.bf16.msra.mxu0 0
        %1973 = vmatprep.subr.bf16.mxu0 0
        %1974 = vmatpush1.bf16.msra.mxu0 0
        %1975 = vmatprep.subr.bf16.mxu0 0
        %1976 = vmatpush1.bf16.msra.mxu0 0
        %1977 = vmatprep.subr.bf16.mxu0 0
        %1978 = vmatpush1.bf16.msra.mxu0 0
        %1979 = vmatprep.subr.bf16.mxu0 0
        %1980 = vmatpush1.bf16.msra.mxu0 0
        %1981 = vmatprep.subr.bf16.mxu0 0
        %1982 = vmatpush1.bf16.msra.mxu0 0
        %1983 = vmatprep.subr.bf16.mxu0 0
        %1984 = vmatpush1.bf16.msra.mxu0 0
        %1985 = vmatprep.subr.bf16.mxu0 0
        %1986 = vmatpush1.bf16.msra.mxu0 0
        %1987 = vmatprep.subr.bf16.mxu0 0
        %1988 = vmatpush1.bf16.msra.mxu0 0
        %1989 = vmatprep.subr.bf16.mxu0 0
        %1990 = vmatpush1.bf16.msra.mxu0 0
        %1991 = vmatprep.subr.bf16.mxu0 0
        %1992 = vmatpush1.bf16.msra.mxu0 0
        %1993 = vmatprep.mubr.bf16.mxu0 0
        %1994 = vmatmul.mubr.bf16.gmra.mrb[0].mxu0 %v1956
        %v1995 = vpop.f32.mrb[0].mxu0
        %v1996 = vadd.f32 0.0, %v1995
        %v1997 = vpop.f32.mrb[0].mxu0
        %v1998 = vpop.f32.mrb[0].mxu0
        %v1999 = vpop.f32.mrb[0].mxu0
        %2000 = vdwg.mxu0
        %v2002 = vsel %vm1366, %v1849, 0
        %v2005 = vsel %vm1865, %v1857, 0
        %2007 = vmatprep.subr.bf16.mxu0 0
        %2008 = vmatpush1.bf16.msra.mxu0 %v2005
        %2009 = vmatprep.subr.bf16.mxu0 0
        %2010 = vmatpush1.bf16.msra.mxu0 0
        %2011 = vmatprep.subr.bf16.mxu0 0
        %2012 = vmatpush1.bf16.msra.mxu0 0
        %2013 = vmatprep.subr.bf16.mxu0 0
        %2014 = vmatpush1.bf16.msra.mxu0 0
        %2015 = vmatprep.subr.bf16.mxu0 0
        %2016 = vmatpush1.bf16.msra.mxu0 0
        %2017 = vmatprep.subr.bf16.mxu0 0
        %2018 = vmatpush1.bf16.msra.mxu0 0
        %2019 = vmatprep.subr.bf16.mxu0 0
        %2020 = vmatpush1.bf16.msra.mxu0 0
        %2021 = vmatprep.subr.bf16.mxu0 0
        %2022 = vmatpush1.bf16.msra.mxu0 0
        %2023 = vmatprep.subr.bf16.mxu0 0
        %2024 = vmatpush1.bf16.msra.mxu0 0
        %2025 = vmatprep.subr.bf16.mxu0 0
        %2026 = vmatpush1.bf16.msra.mxu0 0
        %2027 = vmatprep.subr.bf16.mxu0 0
        %2028 = vmatpush1.bf16.msra.mxu0 0
        %2029 = vmatprep.subr.bf16.mxu0 0
        %2030 = vmatpush1.bf16.msra.mxu0 0
        %2031 = vmatprep.subr.bf16.mxu0 0
        %2032 = vmatpush1.bf16.msra.mxu0 0
        %2033 = vmatprep.subr.bf16.mxu0 0
        %2034 = vmatpush1.bf16.msra.mxu0 0
        %2035 = vmatprep.subr.bf16.mxu0 0
        %2036 = vmatpush1.bf16.msra.mxu0 0
        %2037 = vmatprep.subr.bf16.mxu0 0
        %2038 = vmatpush1.bf16.msra.mxu0 0
        %2039 = vmatprep.mubr.bf16.mxu0 0
        %2040 = vmatmul.mubr.bf16.gmra.mrb[0].mxu0 %v2002
        %v2041 = vpop.f32.mrb[0].mxu0
        %v2042 = vadd.f32 0.0, %v2041
        %v2043 = vpop.f32.mrb[0].mxu0
        %v2044 = vpop.f32.mrb[0].mxu0
        %v2045 = vpop.f32.mrb[0].mxu0
        %2046 = vdwg.mxu0
        %v2048 = vsel %vm1366, %v1850, 0
        %v2051 = vsel %vm1865, %v1858, 0
        %2053 = vmatprep.subr.bf16.mxu0 0
        %2054 = vmatpush1.bf16.msra.mxu0 %v2051
        %2055 = vmatprep.subr.bf16.mxu0 0
        %2056 = vmatpush1.bf16.msra.mxu0 0
        %2057 = vmatprep.subr.bf16.mxu0 0
        %2058 = vmatpush1.bf16.msra.mxu0 0
        %2059 = vmatprep.subr.bf16.mxu0 0
        %2060 = vmatpush1.bf16.msra.mxu0 0
        %2061 = vmatprep.subr.bf16.mxu0 0
        %2062 = vmatpush1.bf16.msra.mxu0 0
        %2063 = vmatprep.subr.bf16.mxu0 0
        %2064 = vmatpush1.bf16.msra.mxu0 0
        %2065 = vmatprep.subr.bf16.mxu0 0
        %2066 = vmatpush1.bf16.msra.mxu0 0
        %2067 = vmatprep.subr.bf16.mxu0 0
        %2068 = vmatpush1.bf16.msra.mxu0 0
        %2069 = vmatprep.subr.bf16.mxu0 0
        %2070 = vmatpush1.bf16.msra.mxu0 0
        %2071 = vmatprep.subr.bf16.mxu0 0
        %2072 = vmatpush1.bf16.msra.mxu0 0
        %2073 = vmatprep.subr.bf16.mxu0 0
        %2074 = vmatpush1.bf16.msra.mxu0 0
        %2075 = vmatprep.subr.bf16.mxu0 0
        %2076 = vmatpush1.bf16.msra.mxu0 0
        %2077 = vmatprep.subr.bf16.mxu0 0
        %2078 = vmatpush1.bf16.msra.mxu0 0
        %2079 = vmatprep.subr.bf16.mxu0 0
        %2080 = vmatpush1.bf16.msra.mxu0 0
        %2081 = vmatprep.subr.bf16.mxu0 0
        %2082 = vmatpush1.bf16.msra.mxu0 0
        %2083 = vmatprep.subr.bf16.mxu0 0
        %2084 = vmatpush1.bf16.msra.mxu0 0
        %2085 = vmatprep.mubr.bf16.mxu0 0
        %2086 = vmatmul.mubr.bf16.gmra.mrb[0].mxu0 %v2048
        %v2087 = vpop.f32.mrb[0].mxu0
        %v2088 = vadd.f32 0.0, %v2087
        %v2089 = vpop.f32.mrb[0].mxu0
        %v2090 = vpop.f32.mrb[0].mxu0
        %v2091 = vpop.f32.mrb[0].mxu0
        %2092 = vdwg.mxu0
        %v2094 = vsel %vm1366, %v1851, 0
        %v2097 = vsel %vm1865, %v1859, 0
        %2099 = vmatprep.subr.bf16.mxu0 0
        %2100 = vmatpush1.bf16.msra.mxu0 %v2097
        %2101 = vmatprep.subr.bf16.mxu0 0
        %2102 = vmatpush1.bf16.msra.mxu0 0
        %2103 = vmatprep.subr.bf16.mxu0 0
        %2104 = vmatpush1.bf16.msra.mxu0 0
        %2105 = vmatprep.subr.bf16.mxu0 0
        %2106 = vmatpush1.bf16.msra.mxu0 0
        %2107 = vmatprep.subr.bf16.mxu0 0
        %2108 = vmatpush1.bf16.msra.mxu0 0
        %2109 = vmatprep.subr.bf16.mxu0 0
        %2110 = vmatpush1.bf16.msra.mxu0 0
        %2111 = vmatprep.subr.bf16.mxu0 0
        %2112 = vmatpush1.bf16.msra.mxu0 0
        %2113 = vmatprep.subr.bf16.mxu0 0
        %2114 = vmatpush1.bf16.msra.mxu0 0
        %2115 = vmatprep.subr.bf16.mxu0 0
        %2116 = vmatpush1.bf16.msra.mxu0 0
        %2117 = vmatprep.subr.bf16.mxu0 0
        %2118 = vmatpush1.bf16.msra.mxu0 0
        %2119 = vmatprep.subr.bf16.mxu0 0
        %2120 = vmatpush1.bf16.msra.mxu0 0
        %2121 = vmatprep.subr.bf16.mxu0 0
        %2122 = vmatpush1.bf16.msra.mxu0 0
        %2123 = vmatprep.subr.bf16.mxu0 0
        %2124 = vmatpush1.bf16.msra.mxu0 0
        %2125 = vmatprep.subr.bf16.mxu0 0
        %2126 = vmatpush1.bf16.msra.mxu0 0
        %2127 = vmatprep.subr.bf16.mxu0 0
        %2128 = vmatpush1.bf16.msra.mxu0 0
        %2129 = vmatprep.subr.bf16.mxu0 0
        %2130 = vmatpush1.bf16.msra.mxu0 0
        %2131 = vmatprep.mubr.bf16.mxu0 0
        %2132 = vmatmul.mubr.bf16.gmra.mrb[0].mxu0 %v2094
        %v2133 = vpop.f32.mrb[0].mxu0
        %v2134 = vadd.f32 0.0, %v2133
        %v2135 = vpop.f32.mrb[0].mxu0
        %v2136 = vpop.f32.mrb[0].mxu0
        %v2137 = vpop.f32.mrb[0].mxu0
        %2138 = vdwg.mxu0
        %v2140 = vsel %vm1366, %v1852, 0
        %v2143 = vsel %vm1865, %v1860, 0
        %2145 = vmatprep.subr.bf16.mxu0 0
        %2146 = vmatpush1.bf16.msra.mxu0 %v2143
        %2147 = vmatprep.subr.bf16.mxu0 0
        %2148 = vmatpush1.bf16.msra.mxu0 0
        %2149 = vmatprep.subr.bf16.mxu0 0
        %2150 = vmatpush1.bf16.msra.mxu0 0
        %2151 = vmatprep.subr.bf16.mxu0 0
        %2152 = vmatpush1.bf16.msra.mxu0 0
        %2153 = vmatprep.subr.bf16.mxu0 0
        %2154 = vmatpush1.bf16.msra.mxu0 0
        %2155 = vmatprep.subr.bf16.mxu0 0
        %2156 = vmatpush1.bf16.msra.mxu0 0
        %2157 = vmatprep.subr.bf16.mxu0 0
        %2158 = vmatpush1.bf16.msra.mxu0 0
        %2159 = vmatprep.subr.bf16.mxu0 0
        %2160 = vmatpush1.bf16.msra.mxu0 0
        %2161 = vmatprep.subr.bf16.mxu0 0
        %2162 = vmatpush1.bf16.msra.mxu0 0
        %2163 = vmatprep.subr.bf16.mxu0 0
        %2164 = vmatpush1.bf16.msra.mxu0 0
        %2165 = vmatprep.subr.bf16.mxu0 0
        %2166 = vmatpush1.bf16.msra.mxu0 0
        %2167 = vmatprep.subr.bf16.mxu0 0
        %2168 = vmatpush1.bf16.msra.mxu0 0
        %2169 = vmatprep.subr.bf16.mxu0 0
        %2170 = vmatpush1.bf16.msra.mxu0 0
        %2171 = vmatprep.subr.bf16.mxu0 0
        %2172 = vmatpush1.bf16.msra.mxu0 0
        %2173 = vmatprep.subr.bf16.mxu0 0
        %2174 = vmatpush1.bf16.msra.mxu0 0
        %2175 = vmatprep.subr.bf16.mxu0 0
        %2176 = vmatpush1.bf16.msra.mxu0 0
        %2177 = vmatprep.mubr.bf16.mxu0 0
        %2178 = vmatmul.mubr.bf16.gmra.mrb[0].mxu0 %v2140
        %v2179 = vpop.f32.mrb[0].mxu0
        %v2180 = vadd.f32 0.0, %v2179
        %v2181 = vpop.f32.mrb[0].mxu0
        %v2182 = vpop.f32.mrb[0].mxu0
        %v2183 = vpop.f32.mrb[0].mxu0
        %2184 = vdwg.mxu0
        %v2186 = vsel %vm1366, %v1853, 0
        %v2189 = vsel %vm1865, %v1861, 0
        %2191 = vmatprep.subr.bf16.mxu0 0
        %2192 = vmatpush1.bf16.msra.mxu0 %v2189
        %2193 = vmatprep.subr.bf16.mxu0 0
        %2194 = vmatpush1.bf16.msra.mxu0 0
        %2195 = vmatprep.subr.bf16.mxu0 0
        %2196 = vmatpush1.bf16.msra.mxu0 0
        %2197 = vmatprep.subr.bf16.mxu0 0
        %2198 = vmatpush1.bf16.msra.mxu0 0
        %2199 = vmatprep.subr.bf16.mxu0 0
        %2200 = vmatpush1.bf16.msra.mxu0 0
        %2201 = vmatprep.subr.bf16.mxu0 0
        %2202 = vmatpush1.bf16.msra.mxu0 0
        %2203 = vmatprep.subr.bf16.mxu0 0
        %2204 = vmatpush1.bf16.msra.mxu0 0
        %2205 = vmatprep.subr.bf16.mxu0 0
        %2206 = vmatpush1.bf16.msra.mxu0 0
        %2207 = vmatprep.subr.bf16.mxu0 0
        %2208 = vmatpush1.bf16.msra.mxu0 0
        %2209 = vmatprep.subr.bf16.mxu0 0
        %2210 = vmatpush1.bf16.msra.mxu0 0
        %2211 = vmatprep.subr.bf16.mxu0 0
        %2212 = vmatpush1.bf16.msra.mxu0 0
        %2213 = vmatprep.subr.bf16.mxu0 0
        %2214 = vmatpush1.bf16.msra.mxu0 0
        %2215 = vmatprep.subr.bf16.mxu0 0
        %2216 = vmatpush1.bf16.msra.mxu0 0
        %2217 = vmatprep.subr.bf16.mxu0 0
        %2218 = vmatpush1.bf16.msra.mxu0 0
        %2219 = vmatprep.subr.bf16.mxu0 0
        %2220 = vmatpush1.bf16.msra.mxu0 0
        %2221 = vmatprep.subr.bf16.mxu0 0
        %2222 = vmatpush1.bf16.msra.mxu0 0
        %2223 = vmatprep.mubr.bf16.mxu0 0
        %2224 = vmatmul.mubr.bf16.gmra.mrb[0].mxu0 %v2186
        %v2225 = vpop.f32.mrb[0].mxu0
        %v2226 = vadd.f32 0.0, %v2225
        %v2227 = vpop.f32.mrb[0].mxu0
        %v2228 = vpop.f32.mrb[0].mxu0
        %v2229 = vpop.f32.mrb[0].mxu0
        %2230 = vdwg.mxu0
        %2233 = vrot.lane.b32.xlu0 %v1996, 8
        %v2234 = vpop.permute.xlu0 %2233
        %2235 = vrot.lane.b32.xlu0 %v2042, 8
        %v2236 = vpop.permute.xlu0 %2235
        %2241 = vrot.lane.b32.xlu0 %v2088, 16
        %v2242 = vpop.permute.xlu0 %2241
        %2243 = vrot.lane.b32.xlu0 %v2134, 16
        %v2244 = vpop.permute.xlu0 %2243
        %2249 = vrot.lane.b32.xlu0 %v2180, 24
        %v2250 = vpop.permute.xlu0 %2249
        %2251 = vrot.lane.b32.xlu0 %v2226, 24
        %v2252 = vpop.permute.xlu0 %2251
        %v2255 = vsel %vm1366, %v1904, %v2234
        %v2256 = vsel %vm1366, %v1950, %v2236
        %vm2257 = vcmask 130048
        %v2258 = vsel %vm2257, %v2255, %v2242
        %v2259 = vsel %vm2257, %v2256, %v2244
        %vm2260 = vcmask 195584
        %v2261 = vsel %vm2260, %v2258, %v2250
        %v2262 = vsel %vm2260, %v2259, %v2252
        %v2263 = vpack.c.bf16 %v2262, %v2261
        %v2264 = vld [vmem:[%s892] sm:$0xf]
        %v2265 = vld [vmem:[%s892 + $0x4] sm:$0xf]
        %v2266 = vld [vmem:[%s892 + $0x8] sm:$0xf]
        %v2267 = vld [vmem:[%s892 + $0xc] sm:$0xf]
        %v2268 = vld [vmem:[%s900] sm:$0x1]
        %v2270 = vlaneseq
        %v2271 = vshrl.u32 %v2270, 7
        %v2272 = vsub.s32 0, %v2271
        %v2273 = vrot.slane %v2268, %v2272
        %v2279 = vunpack.c.l.b16 %v2264
        %v2280 = vunpack.c.l.b16 %v2265
        %v2281 = vunpack.c.l.b16 %v2266
        %v2282 = vunpack.c.l.b16 %v2267
        %v2283 = vpack.c.b16 %v2280, %v2279
        %v2284 = vpack.c.b16 %v2282, %v2281
        %v2288 = vsel %vm1113, %v2263, 0
        %2290 = vmatprep.subr.bf16.mxu0 0
        %2291 = vmatpush1.bf16.msra.mxu0 %v2283
        %2292 = vmatprep.subr.bf16.mxu0 0
        %2293 = vmatpush1.bf16.msra.mxu0 %v2284
        %2294 = vmatprep.subr.bf16.mxu0 0
        %2295 = vmatpush1.bf16.msra.mxu0 0
        %2296 = vmatprep.subr.bf16.mxu0 0
        %2297 = vmatpush1.bf16.msra.mxu0 0
        %2298 = vmatprep.subr.bf16.mxu0 0
        %2299 = vmatpush1.bf16.msra.mxu0 0
        %2300 = vmatprep.subr.bf16.mxu0 0
        %2301 = vmatpush1.bf16.msra.mxu0 0
        %2302 = vmatprep.subr.bf16.mxu0 0
        %2303 = vmatpush1.bf16.msra.mxu0 0
        %2304 = vmatprep.subr.bf16.mxu0 0
        %2305 = vmatpush1.bf16.msra.mxu0 0
        %2306 = vmatprep.subr.bf16.mxu0 0
        %2307 = vmatpush1.bf16.msra.mxu0 0
        %2308 = vmatprep.subr.bf16.mxu0 0
        %2309 = vmatpush1.bf16.msra.mxu0 0
        %2310 = vmatprep.subr.bf16.mxu0 0
        %2311 = vmatpush1.bf16.msra.mxu0 0
        %2312 = vmatprep.subr.bf16.mxu0 0
        %2313 = vmatpush1.bf16.msra.mxu0 0
        %2314 = vmatprep.subr.bf16.mxu0 0
        %2315 = vmatpush1.bf16.msra.mxu0 0
        %2316 = vmatprep.subr.bf16.mxu0 0
        %2317 = vmatpush1.bf16.msra.mxu0 0
        %2318 = vmatprep.subr.bf16.mxu0 0
        %2319 = vmatpush1.bf16.msra.mxu0 0
        %2320 = vmatprep.subr.bf16.mxu0 0
        %2321 = vmatpush1.bf16.msra.mxu0 0
        %2322 = vmatprep.mubr.bf16.mxu0 0
        %2323 = vmatmul.mubr.bf16.gmra.mrb[0].mxu0 %v2288
        %v2324 = vpop.f32.mrb[0].mxu0
        %v2325 = vadd.f32 %v2273, %v2324
        %v2326 = vpop.f32.mrb[0].mxu0
        %v2327 = vpop.f32.mrb[0].mxu0
        %v2328 = vadd.f32 %v2273, %v2327
        %v2329 = vpop.f32.mrb[0].mxu0
        %2330 = vdwg.mxu0
        %v2331 = vadd.f32 %v1084, %v2325
        %v2332 = vadd.f32 %v1085, %v2328
        %v2333 = vld [vmem:[%s1063] sm:$0x1]
        %v2334 = vld [vmem:[%s1066] sm:$0x1]
        %v2335 = vsel %vm1113, %v2331, 0.0
        %2336 = vadd.xlane.f32.xlu0 %v2335
        %v2337 = vpop.xlane.xlu0 %2336
        %v2338 = vsel %vm1113, %v2332, 0.0
        %2339 = vadd.xlane.f32.xlu0 %v2338
        %v2340 = vpop.xlane.xlu0 %2339
        %v2341 = vrcp.pop 32.0
        %v2342 = vmul.f32 %v2337, %v2341
        %v2343 = vmul.f32 %v2340, %v2341
        %v2344 = vsub.f32 %v2331, %v2342
        %v2345 = vsub.f32 %v2332, %v2343
        %v2346 = vmul.f32 %v2344, %v2344
        %v2347 = vmul.f32 %v2345, %v2345
        %v2348 = vsel %vm1113, %v2346, 0.0
        %2349 = vadd.xlane.f32.xlu0 %v2348
        %v2350 = vpop.xlane.xlu0 %2349
        %v2351 = vsel %vm1113, %v2347, 0.0
        %2352 = vadd.xlane.f32.xlu0 %v2351
        %v2353 = vpop.xlane.xlu0 %2352
        %v2354 = vmul.f32 %v2350, %v2341
        %v2355 = vmul.f32 %v2353, %v2341
        %v2356 = vadd.f32 %v2354, 1e-05
        %v2357 = vadd.f32 %v2355, 1e-05
        %v2358 = vrsqrt.pop %v2356
        %v2359 = vrsqrt.pop %v2357
        %v2360 = vmul.f32 %v2344, %v2358
        %v2361 = vmul.f32 %v2345, %v2359
        %v2363 = vlaneseq
        %v2364 = vshrl.u32 %v2363, 7
        %v2365 = vsub.s32 0, %v2364
        %v2366 = vrot.slane %v2333, %v2365
        %v2368 = vmul.f32 %v2360, %v2366
        %v2369 = vmul.f32 %v2361, %v2366
        %v2371 = vlaneseq
        %v2372 = vshrl.u32 %v2371, 7
        %v2373 = vsub.s32 0, %v2372
        %v2374 = vrot.slane %v2334, %v2373
        %v2376 = vadd.f32 %v2368, %v2374
        %v2377 = vadd.f32 %v2369, %v2374
        %v2378 = vpack.c.bf16 %v2377, %v2376
        %v2379 = vld [vmem:[%s909] sm:$0xf]
        %v2380 = vld [vmem:[%s909 + $0x4] sm:$0xf]
        %v2381 = vld [vmem:[%s909 + $0x8] sm:$0xf]
        %v2382 = vld [vmem:[%s909 + $0xc] sm:$0xf]
        %v2383 = vld [vmem:[%s917] sm:$0x1]
        %v2385 = vlaneseq
        %v2386 = vshrl.u32 %v2385, 7
        %v2387 = vsub.s32 0, %v2386
        %v2388 = vrot.slane %v2383, %v2387
        %v2394 = vunpack.c.l.b16 %v2379
        %v2395 = vunpack.c.l.b16 %v2380
        %v2396 = vunpack.c.l.b16 %v2381
        %v2397 = vunpack.c.l.b16 %v2382
        %v2398 = vpack.c.b16 %v2395, %v2394
        %v2399 = vpack.c.b16 %v2397, %v2396
        %v2403 = vsel %vm1113, %v2378, 0
        %2405 = vmatprep.subr.bf16.mxu0 0
        %2406 = vmatpush1.bf16.msra.mxu0 %v2398
        %2407 = vmatprep.subr.bf16.mxu0 0
        %2408 = vmatpush1.bf16.msra.mxu0 %v2399
        %2409 = vmatprep.subr.bf16.mxu0 0
        %2410 = vmatpush1.bf16.msra.mxu0 0
        %2411 = vmatprep.subr.bf16.mxu0 0
        %2412 = vmatpush1.bf16.msra.mxu0 0
        %2413 = vmatprep.subr.bf16.mxu0 0
        %2414 = vmatpush1.bf16.msra.mxu0 0
        %2415 = vmatprep.subr.bf16.mxu0 0
        %2416 = vmatpush1.bf16.msra.mxu0 0
        %2417 = vmatprep.subr.bf16.mxu0 0
        %2418 = vmatpush1.bf16.msra.mxu0 0
        %2419 = vmatprep.subr.bf16.mxu0 0
        %2420 = vmatpush1.bf16.msra.mxu0 0
        %2421 = vmatprep.subr.bf16.mxu0 0
        %2422 = vmatpush1.bf16.msra.mxu0 0
        %2423 = vmatprep.subr.bf16.mxu0 0
        %2424 = vmatpush1.bf16.msra.mxu0 0
        %2425 = vmatprep.subr.bf16.mxu0 0
        %2426 = vmatpush1.bf16.msra.mxu0 0
        %2427 = vmatprep.subr.bf16.mxu0 0
        %2428 = vmatpush1.bf16.msra.mxu0 0
        %2429 = vmatprep.subr.bf16.mxu0 0
        %2430 = vmatpush1.bf16.msra.mxu0 0
        %2431 = vmatprep.subr.bf16.mxu0 0
        %2432 = vmatpush1.bf16.msra.mxu0 0
        %2433 = vmatprep.subr.bf16.mxu0 0
        %2434 = vmatpush1.bf16.msra.mxu0 0
        %2435 = vmatprep.subr.bf16.mxu0 0
        %2436 = vmatpush1.bf16.msra.mxu0 0
        %2437 = vmatprep.mubr.bf16.mxu0 0
        %2438 = vmatmul.mubr.bf16.gmra.mrb[0].mxu0 %v2403
        %v2439 = vpop.f32.mrb[0].mxu0
        %v2440 = vadd.f32 %v2388, %v2439
        %v2441 = vpop.f32.mrb[0].mxu0
        %v2442 = vpop.f32.mrb[0].mxu0
        %v2443 = vadd.f32 %v2388, %v2442
        %v2444 = vpop.f32.mrb[0].mxu0
        %2445 = vdwg.mxu0
        %v2446 = vmul.f32 %v2440, 0.5
        %v2447 = vmul.f32 %v2443, 0.5
        %v2448 = vmul.f32 %v2440, 0.70710677
        %v2449 = vmul.f32 %v2443, 0.70710677
        %v2450 = verf.f32.pop %v2448
        %v2451 = verf.f32.pop %v2449
        %v2452 = vadd.f32 %v2450, 1.0
        %v2453 = vadd.f32 %v2451, 1.0
        %v2454 = vmul.f32 %v2446, %v2452
        %v2455 = vmul.f32 %v2447, %v2453
        %v2456 = vpack.c.bf16 %v2455, %v2454
        %v2457 = vld [vmem:[%s1060] sm:$0xf]
        %v2458 = vld [vmem:[%s1060 + $0x4] sm:$0xf]
        %v2459 = vld [vmem:[%s1060 + $0x8] sm:$0xf]
        %v2460 = vld [vmem:[%s1060 + $0xc] sm:$0xf]
        %v2461 = vld [vmem:[%s1060 + $0x10] sm:$0xf]
        %v2462 = vld [vmem:[%s1060 + $0x14] sm:$0xf]
        %v2463 = vld [vmem:[%s1060 + $0x18] sm:$0xf]
        %v2464 = vld [vmem:[%s1060 + $0x1c] sm:$0xf]
        %v2465 = vld [vmem:[%s925] sm:$0x1]
        %v2467 = vlaneseq
        %v2468 = vshrl.u32 %v2467, 7
        %v2469 = vsub.s32 0, %v2468
        %v2470 = vrot.slane %v2465, %v2469
        %v2480 = vunpack.c.l.b16 %v2457
        %v2481 = vunpack.c.l.b16 %v2458
        %v2482 = vunpack.c.l.b16 %v2459
        %v2483 = vunpack.c.l.b16 %v2460
        %v2484 = vunpack.c.l.b16 %v2461
        %v2485 = vunpack.c.l.b16 %v2462
        %v2486 = vunpack.c.l.b16 %v2463
        %v2487 = vunpack.c.l.b16 %v2464
        %v2488 = vpack.c.b16 %v2481, %v2480
        %v2489 = vpack.c.b16 %v2483, %v2482
        %v2490 = vpack.c.b16 %v2485, %v2484
        %v2491 = vpack.c.b16 %v2487, %v2486
        %vm2496 = vcmask 523264
        %v2498 = vsel %vm2496, %v2456, 0
        %2500 = vmatprep.subr.bf16.mxu0 0
        %2501 = vmatpush1.bf16.msra.mxu0 %v2488
        %2502 = vmatprep.subr.bf16.mxu0 0
        %2503 = vmatpush1.bf16.msra.mxu0 %v2489
        %2504 = vmatprep.subr.bf16.mxu0 0
        %2505 = vmatpush1.bf16.msra.mxu0 %v2490
        %2506 = vmatprep.subr.bf16.mxu0 0
        %2507 = vmatpush1.bf16.msra.mxu0 %v2491
        %2508 = vmatprep.subr.bf16.mxu0 0
        %2509 = vmatpush1.bf16.msra.mxu0 0
        %2510 = vmatprep.subr.bf16.mxu0 0
        %2511 = vmatpush1.bf16.msra.mxu0 0
        %2512 = vmatprep.subr.bf16.mxu0 0
        %2513 = vmatpush1.bf16.msra.mxu0 0
        %2514 = vmatprep.subr.bf16.mxu0 0
        %2515 = vmatpush1.bf16.msra.mxu0 0
        %2516 = vmatprep.subr.bf16.mxu0 0
        %2517 = vmatpush1.bf16.msra.mxu0 0
        %2518 = vmatprep.subr.bf16.mxu0 0
        %2519 = vmatpush1.bf16.msra.mxu0 0
        %2520 = vmatprep.subr.bf16.mxu0 0
        %2521 = vmatpush1.bf16.msra.mxu0 0
        %2522 = vmatprep.subr.bf16.mxu0 0
        %2523 = vmatpush1.bf16.msra.mxu0 0
        %2524 = vmatprep.subr.bf16.mxu0 0
        %2525 = vmatpush1.bf16.msra.mxu0 0
        %2526 = vmatprep.subr.bf16.mxu0 0
        %2527 = vmatpush1.bf16.msra.mxu0 0
        %2528 = vmatprep.subr.bf16.mxu0 0
        %2529 = vmatpush1.bf16.msra.mxu0 0
        %2530 = vmatprep.subr.bf16.mxu0 0
        %2531 = vmatpush1.bf16.msra.mxu0 0
        %2532 = vmatprep.mubr.bf16.mxu0 0
        %2533 = vmatmul.mubr.bf16.gmra.mrb[0].mxu0 %v2498
        %v2534 = vpop.f32.mrb[0].mxu0
        %v2535 = vadd.f32 %v2470, %v2534
        %v2536 = vpop.f32.mrb[0].mxu0
        %v2537 = vpop.f32.mrb[0].mxu0
        %v2538 = vadd.f32 %v2470, %v2537
        %v2539 = vpop.f32.mrb[0].mxu0
        %2540 = vdwg.mxu0
        %v2541 = vadd.f32 %v2376, %v2535
        %v2542 = vadd.f32 %v2377, %v2538
        %v2543 = vld [vmem:[%s1069] sm:$0x1]
        %v2544 = vld [vmem:[%s1072] sm:$0x1]
        %v2545 = vsel %vm1113, %v2541, 0.0
        %2546 = vadd.xlane.f32.xlu0 %v2545
        %v2547 = vpop.xlane.xlu0 %2546
        %v2548 = vsel %vm1113, %v2542, 0.0
        %2549 = vadd.xlane.f32.xlu0 %v2548
        %v2550 = vpop.xlane.xlu0 %2549
        %v2551 = vmul.f32 %v2547, %v2341
        %v2552 = vmul.f32 %v2550, %v2341
        %v2553 = vsub.f32 %v2541, %v2551
        %v2554 = vsub.f32 %v2542, %v2552
        %v2555 = vmul.f32 %v2553, %v2553
        %v2556 = vmul.f32 %v2554, %v2554
        %v2557 = vsel %vm1113, %v2555, 0.0
        %2558 = vadd.xlane.f32.xlu0 %v2557
        %v2559 = vpop.xlane.xlu0 %2558
        %v2560 = vsel %vm1113, %v2556, 0.0
        %2561 = vadd.xlane.f32.xlu0 %v2560
        %v2562 = vpop.xlane.xlu0 %2561
        %v2563 = vmul.f32 %v2559, %v2341
        %v2564 = vmul.f32 %v2562, %v2341
        %v2565 = vadd.f32 %v2563, 1e-05
        %v2566 = vadd.f32 %v2564, 1e-05
        %v2567 = vrsqrt.pop %v2565
        %v2568 = vrsqrt.pop %v2566
        %v2569 = vmul.f32 %v2553, %v2567
        %v2570 = vmul.f32 %v2554, %v2568
        %v2572 = vlaneseq
        %v2573 = vshrl.u32 %v2572, 7
        %v2574 = vsub.s32 0, %v2573
        %v2575 = vrot.slane %v2543, %v2574
        %v2577 = vmul.f32 %v2569, %v2575
        %v2578 = vmul.f32 %v2570, %v2575
        %v2580 = vlaneseq
        %v2581 = vshrl.u32 %v2580, 7
        %v2582 = vsub.s32 0, %v2581
        %v2583 = vrot.slane %v2544, %v2582
        %v2585 = vadd.f32 %v2577, %v2583
        %v2586 = vadd.f32 %v2578, %v2583
        %2587 = vst.msk [vmem:[#allocation2] sm:$0xff] %vm1113, %v2585
        %2588 = vst.msk [vmem:[#allocation2 + $0x8] sm:$0xff] %vm1113, %v2586
        %p2589 = scmp.eq.s32.totalorder %s40, 1
        // Predicated region
        $region149: #{tpu_custom_call.1} parent=103 // pred_check
          %p2590 = pneg %p2589
        $region150: #{tpu_custom_call.1} parent=103 // pred_check_branch
          %2592 = sbr.rel (%p2590) target = $region152
        $region151: #{tpu_custom_call.1} parent=103 // pred_region
          %v2593 = vld [vmem:[%s18] sm:$0x1]
          %v2594 = vld [vmem:[%s19] sm:$0x1]
          %v2595 = vsel %vm1113, %v2585, 0.0
          %2596 = vadd.xlane.f32.xlu0 %v2595
          %v2597 = vpop.xlane.xlu0 %2596
          %v2598 = vsel %vm1113, %v2586, 0.0
          %2599 = vadd.xlane.f32.xlu0 %v2598
          %v2600 = vpop.xlane.xlu0 %2599
          %v2601 = vmul.f32 %v2597, %v2341
          %v2602 = vmul.f32 %v2600, %v2341
          %v2603 = vsub.f32 %v2585, %v2601
          %v2604 = vsub.f32 %v2586, %v2602
          %v2605 = vmul.f32 %v2603, %v2603
          %v2606 = vmul.f32 %v2604, %v2604
          %v2607 = vsel %vm1113, %v2605, 0.0
          %2608 = vadd.xlane.f32.xlu0 %v2607
          %v2609 = vpop.xlane.xlu0 %2608
          %v2610 = vsel %vm1113, %v2606, 0.0
          %2611 = vadd.xlane.f32.xlu0 %v2610
          %v2612 = vpop.xlane.xlu0 %2611
          %v2613 = vmul.f32 %v2609, %v2341
          %v2614 = vmul.f32 %v2612, %v2341
          %v2615 = vadd.f32 %v2613, 1e-05
          %v2616 = vadd.f32 %v2614, 1e-05
          %v2617 = vrsqrt.pop %v2615
          %v2618 = vrsqrt.pop %v2616
          %v2619 = vmul.f32 %v2603, %v2617
          %v2620 = vmul.f32 %v2604, %v2618
          %v2622 = vlaneseq
          %v2623 = vshrl.u32 %v2622, 7
          %v2624 = vsub.s32 0, %v2623
          %v2625 = vrot.slane %v2593, %v2624
          %v2627 = vmul.f32 %v2619, %v2625
          %v2628 = vmul.f32 %v2620, %v2625
          %v2630 = vlaneseq
          %v2631 = vshrl.u32 %v2630, 7
          %v2632 = vsub.s32 0, %v2631
          %v2633 = vrot.slane %v2594, %v2632
          %v2635 = vadd.f32 %v2627, %v2633
          %v2636 = vadd.f32 %v2628, %v2633
          %v2637 = vpack.c.bf16 %v2636, %v2635
          %v2638 = vld [vmem:[%s20] sm:$0xf]
          %v2639 = vld [vmem:[%s20 + $0x4] sm:$0xf]
          %v2640 = vld [vmem:[%s20 + $0x8] sm:$0xf]
          %v2641 = vld [vmem:[%s20 + $0xc] sm:$0xf]
          %v2646 = vunpack.c.l.b16 %v2638
          %v2647 = vunpack.c.l.b16 %v2639
          %v2648 = vunpack.c.l.b16 %v2640
          %v2649 = vunpack.c.l.b16 %v2641
          %v2650 = vpack.c.b16 %v2647, %v2646
          %v2651 = vpack.c.b16 %v2649, %v2648
          %v2655 = vsel %vm1113, %v2637, 0
          %2657 = vmatprep.subr.bf16.mxu0 0
          %2658 = vmatpush1.bf16.msra.mxu0 %v2650
          %2659 = vmatprep.subr.bf16.mxu0 0
          %2660 = vmatpush1.bf16.msra.mxu0 %v2651
          %2661 = vmatprep.subr.bf16.mxu0 0
          %2662 = vmatpush1.bf16.msra.mxu0 0
          %2663 = vmatprep.subr.bf16.mxu0 0
          %2664 = vmatpush1.bf16.msra.mxu0 0
          %2665 = vmatprep.subr.bf16.mxu0 0
          %2666 = vmatpush1.bf16.msra.mxu0 0
          %2667 = vmatprep.subr.bf16.mxu0 0
          %2668 = vmatpush1.bf16.msra.mxu0 0
          %2669 = vmatprep.subr.bf16.mxu0 0
          %2670 = vmatpush1.bf16.msra.mxu0 0
          %2671 = vmatprep.subr.bf16.mxu0 0
          %2672 = vmatpush1.bf16.msra.mxu0 0
          %2673 = vmatprep.subr.bf16.mxu0 0
          %2674 = vmatpush1.bf16.msra.mxu0 0
          %2675 = vmatprep.subr.bf16.mxu0 0
          %2676 = vmatpush1.bf16.msra.mxu0 0
          %2677 = vmatprep.subr.bf16.mxu0 0
          %2678 = vmatpush1.bf16.msra.mxu0 0
          %2679 = vmatprep.subr.bf16.mxu0 0
          %2680 = vmatpush1.bf16.msra.mxu0 0
          %2681 = vmatprep.subr.bf16.mxu0 0
          %2682 = vmatpush1.bf16.msra.mxu0 0
          %2683 = vmatprep.subr.bf16.mxu0 0
          %2684 = vmatpush1.bf16.msra.mxu0 0
          %2685 = vmatprep.subr.bf16.mxu0 0
          %2686 = vmatpush1.bf16.msra.mxu0 0
          %2687 = vmatprep.subr.bf16.mxu0 0
          %2688 = vmatpush1.bf16.msra.mxu0 0
          %2689 = vmatprep.mubr.bf16.mxu0 0
          %2690 = vmatmul.mubr.bf16.gmra.mrb[0].mxu0 %v2655
          %v2691 = vpop.f32.mrb[0].mxu0
          %v2692 = vadd.f32 0.0, %v2691
          %v2693 = vpop.f32.mrb[0].mxu0
          %v2694 = vpop.f32.mrb[0].mxu0
          %v2695 = vadd.f32 0.0, %v2694
          %v2696 = vpop.f32.mrb[0].mxu0
          %2697 = vdwg.mxu0
          %2698 = vst [vmem:[#allocation16] sm:$0xff] %v2692
          %2699 = vst [vmem:[#allocation16 + $0x8] sm:$0xff] %v2695
        $region152: #{tpu_custom_call.1} parent=103 // pred_fallthru
          _
        // Predicated region
        $region153: #{tpu_custom_call.1} parent=103 // pred_check
          %p2700 = pneg %p591
        $region154: #{tpu_custom_call.1} parent=103 // pred_check_branch
          %2702 = sbr.rel (%p2700) target = $region156
        $region155: #{tpu_custom_call.1} parent=103 // pred_region
          %s2703 = smul.u32 2, %s39
          %s2705 = ssub.s32 256, 256
          %2706 = vsyncadd [#allocation5], %s2705
          %s2707 = smul.addr %s2703, 128
          %s2708 = scalar_lea.hbm %s21, %s2707
          %s2709 = sshll.u32 [#allocation16], 4
          %s2710 = int_to_ptr.vmem [resolvable:$true] %s2709
          %2715 = dma.vmem_to_hbm [thread:$0]  %s2710, 256, %s2708, [#allocation5], 128, 128, 8
        $region156: #{tpu_custom_call.1} parent=103 // pred_fallthru
          _
        // Predicated region
        $region157: #{tpu_custom_call.1} parent=103 // pred_check
          %p2716 = pneg %p591
        $region158: #{tpu_custom_call.1} parent=103 // pred_check_branch
          %2718 = sbr.rel (%p2716) target = $region160
        $region159: #{tpu_custom_call.1} parent=103 // pred_region
          %2719 = dma.done [#allocation5], 256
        $region160: #{tpu_custom_call.1} parent=103 // pred_fallthru
          _
      $region104: #{tpu_custom_call.1} parent=5 // pred_fallthru
        _
      %p2720 = scmp.le.s32.totalorder 2, %s30
      // Predicated region
      $region161: #{tpu_custom_call.1} parent=5 // pred_check
        %p2721 = pneg %p2720
      $region162: #{tpu_custom_call.1} parent=5 // pred_check_branch
        %2723 = sbr.rel (%p2721) target = $region164
      $region163: #{tpu_custom_call.1} parent=5 // pred_region
        %s2724 = ssub.s32 %s30, 2
      $region164: #{tpu_custom_call.1} parent=5 // pred_fallthru
        _
    $region6: #{tpu_custom_call.1} parent=1 // loop_footer
      %s34 = sadd.s32 1, %s30
    $region7: #{tpu_custom_call.1} parent=1 // loop_footer_branch
      %29 = sbr.rel target = $region3
    $region8: #{tpu_custom_call.1} parent=1 // loop_exit
      _
    %2725 = vsyncpa [#allocation4], 1
    %s2726 = scalar_lea.sflag [#allocation4], 1
    %2727 = vsyncpa %s2726, 1
    %2728 = vsyncpa [#allocation7], 1
    %2729 = vsyncpa [#allocation5], 1
    %s2730 = scalar_lea.sflag [#allocation5], 1
    %2731 = vsyncpa %s2730, 1

</llo_original>
